<compile_context>
chip_gen: v6e
topology: v6e:2x2x1
jax: 0.10.0
libtpu: 0.0.40
codegen_flags: <defaults>
</compile_context>

<pallas_src>
import functools

import jax
import jax.numpy as jnp
import numpy as np
from jax.experimental import pallas as pl
from jax.experimental.pallas import tpu as pltpu


def _round_up(x, m):
    return (x + m - 1) // m * m


def _pad_to(a, shape):
    pads = [(0, t - s) for s, t in zip(a.shape, shape)]
    if all(p == (0, 0) for p in pads):
        return a
    return jnp.pad(a, pads)


def _layer_norm(v, g, b, d_true, lane_mask, eps=1e-5):
    # v: (M, Dp) f32 with zeros in the padded lanes; g, b: (1, Dp).
    inv_d = 1.0 / float(d_true)
    mu = jnp.sum(v, axis=-1, keepdims=True) * inv_d
    diff = jnp.where(lane_mask, v - mu, 0.0)
    var = jnp.sum(diff * diff, axis=-1, keepdims=True) * inv_d
    return diff * jax.lax.rsqrt(var + eps) * g + b


def sas_encoder_kernel(depth, d_true,
                       x_ref, bias_ref,
                       wq_ref, bq_ref, wk_ref, bk_ref, wv_ref, bv_ref,
                       wo_ref, bo_ref, w1_ref, b1_ref, w2_ref, b2_ref,
                       lng_ref, lnb_ref, fng_ref, fnb_ref,
                       o_ref):
    bb, s, dp = x_ref.shape
    m = bb * s
    bf16 = jnp.bfloat16
    f32 = jnp.float32

    lane_mask = jax.lax.broadcasted_iota(jnp.int32, (1, dp), 1) < d_true
    scale = 1.0 / float(d_true) ** 0.5

    # Fold batch into the matmul M dimension.
    x = x_ref[...].astype(f32).reshape(m, dp)          # (BB*S, Dp)
    bias = bias_ref[...].astype(f32)                   # (BB, S, S) mask pre-folded

    for l in range(depth):                             # depth static -> unrolled
        lg = lng_ref[l]                                # (2, Dp) f32
        lb = lnb_ref[l]

        # ---- sublayer 0: structure-aware self-attention (pre-norm residual) ----
        xn = _layer_norm(x, lg[0:1], lb[0:1], d_true, lane_mask)
        xb = xn.astype(bf16)
        q = jnp.dot(xb, wq_ref[l], preferred_element_type=f32) + bq_ref[l]
        k = jnp.dot(xb, wk_ref[l], preferred_element_type=f32) + bk_ref[l]
        v = jnp.dot(xb, wv_ref[l], preferred_element_type=f32) + bv_ref[l]

        q3 = q.reshape(bb, s, dp).astype(bf16)
        k3 = k.reshape(bb, s, dp).astype(bf16)
        v3 = v.reshape(bb, s, dp).astype(bf16)

        scores = jnp.einsum("bqd,bkd->bqk", q3, k3,
                            preferred_element_type=f32) * scale + bias
        scores = scores - jnp.max(scores, axis=-1, keepdims=True)
        p = jnp.exp(scores)
        p = p * pl.reciprocal(jnp.sum(p, axis=-1, keepdims=True), approx=True)

        ctx = jnp.einsum("bqk,bkd->bqd", p.astype(bf16), v3,
                         preferred_element_type=f32).reshape(m, dp)
        attn = jnp.dot(ctx.astype(bf16), wo_ref[l],
                       preferred_element_type=f32) + bo_ref[l]
        x = x + attn

        # ---- sublayer 1: position-wise feed-forward (pre-norm residual) ----
        xn = _layer_norm(x, lg[1:2], lb[1:2], d_true, lane_mask)
        h = jnp.maximum(
            jnp.dot(xn.astype(bf16), w1_ref[l], preferred_element_type=f32)
            + b1_ref[l], 0.0)
        ff = jnp.dot(h.astype(bf16), w2_ref[l],
                     preferred_element_type=f32) + b2_ref[l]
        x = x + ff

    # Final LayerNorm (the explicit self.norm of SASEncoder).
    out = _layer_norm(x, fng_ref[...], fnb_ref[...], d_true, lane_mask)
    o_ref[...] = out.reshape(bb, s, dp).astype(o_ref.dtype)


def sas_encoder(x, str_mat, attn_mask, params, *, batch_block=None,
                vmem_limit_bytes=48 * 1024 * 1024):
    B, S, D = x.shape
    depth = params["wq"].shape[0]
    d_ff = params["w1"].shape[-1]

    Dp = _round_up(D, 128)          # lane-dense feature dim
    Fp = _round_up(d_ff, 128)       # lane-dense FFN dim

    if batch_block is None:
        batch_block = max(1, _round_up(256, S) // S)   # target BB*S >= 256 rows
    BB = min(batch_block, B)
    Bp = _round_up(B, BB)

    f32, bf16 = jnp.float32, jnp.bfloat16

    # Pre-fold the attention mask into str_mat (replacement, not additive).
    bias = jnp.where(attn_mask == 0, jnp.float32(-1e9), str_mat.astype(f32))
    bias = _pad_to(bias, (Bp, S, S))
    x_p = _pad_to(x.astype(f32), (Bp, S, Dp))

    def wpad(name, shp):            # matmul weights -> bf16, zero-padded
        return _pad_to(params[name], shp).astype(bf16)

    def bpad(name, last):           # biases -> f32 (depth, 1, last)
        return _pad_to(params[name][:, None, :], (depth, 1, last)).astype(f32)

    wq = wpad("wq", (depth, Dp, Dp)); bq = bpad("bq", Dp)
    wk = wpad("wk", (depth, Dp, Dp)); bk = bpad("bk", Dp)
    wv = wpad("wv", (depth, Dp, Dp)); bv = bpad("bv", Dp)
    wo = wpad("wo", (depth, Dp, Dp)); bo = bpad("bo", Dp)
    w1 = wpad("w1", (depth, Dp, Fp)); b1 = bpad("b1", Fp)
    w2 = wpad("w2", (depth, Fp, Dp)); b2 = bpad("b2", Dp)
    lng = _pad_to(params["ln_g"], (depth, 2, Dp)).astype(f32)
    lnb = _pad_to(params["ln_b"], (depth, 2, Dp)).astype(f32)
    fng = _pad_to(params["fn_g"][None, :], (1, Dp)).astype(f32)
    fnb = _pad_to(params["fn_b"][None, :], (1, Dp)).astype(f32)

    def rep(shape):
        # Replicated parameter: same full block every grid step (fetched once).
        return pl.BlockSpec(shape, lambda b: (0,) * len(shape))

    in_specs = [
        pl.BlockSpec((BB, S, Dp), lambda b: (b, 0, 0)),   # x (padded)
        pl.BlockSpec((BB, S, S), lambda b: (b, 0, 0)),    # folded attn bias
        rep((depth, Dp, Dp)), rep((depth, 1, Dp)),        # Wq, bq
        rep((depth, Dp, Dp)), rep((depth, 1, Dp)),        # Wk, bk
        rep((depth, Dp, Dp)), rep((depth, 1, Dp)),        # Wv, bv
        rep((depth, Dp, Dp)), rep((depth, 1, Dp)),        # Wo, bo
        rep((depth, Dp, Fp)), rep((depth, 1, Fp)),        # W1, b1
        rep((depth, Fp, Dp)), rep((depth, 1, Dp)),        # W2, b2
        rep((depth, 2, Dp)), rep((depth, 2, Dp)),         # per-sublayer LN gamma/beta
        rep((1, Dp)), rep((1, Dp)),                       # final LN gamma/beta
    ]

    kernel = functools.partial(sas_encoder_kernel, depth, D)
    out = pl.pallas_call(
        kernel,
        out_shape=jax.ShapeDtypeStruct((Bp, S, Dp), jnp.float32),
        grid=(Bp // BB,),
        in_specs=in_specs,
        out_specs=pl.BlockSpec((BB, S, Dp), lambda b: (b, 0, 0)),
        compiler_params=pltpu.CompilerParams(
            dimension_semantics=("parallel",),
            vmem_limit_bytes=vmem_limit_bytes),
    )(x_p, bias, wq, bq, wk, bk, wv, bv, wo, bo, w1, b1, w2, b2,
      lng, lnb, fng, fnb)

    return out[:B, :, :D].astype(x.dtype)


# ---------------- pure-JAX reference (for correctness check) ----------------
# Mirrors the kernel's precision policy (bf16 matmul operands, f32 accumulate,
# f32 LayerNorm) so the check can be tight.  Relative to a pure-f32 reference
# the bf16 rounding contributes ~1e-2; structural errors would be far larger.
def sas_encoder_ref(x, str_mat, mask, p):
    bf = jnp.bfloat16

    def ln(v, g, b):
        mu = v.mean(-1, keepdims=True)
        var = ((v - mu) ** 2).mean(-1, keepdims=True)
        return (v - mu) / jnp.sqrt(var + 1e-5) * g + b

    def mm(a, w):
        return jnp.dot(a.astype(bf), w.astype(bf), preferred_element_type=jnp.float32)

    depth = p["wq"].shape[0]
    D = x.shape[-1]
    x = x.astype(jnp.float32)
    for l in range(depth):
        xn = ln(x, p["ln_g"][l, 0], p["ln_b"][l, 0])
        q = mm(xn, p["wq"][l]) + p["bq"][l]
        k = mm(xn, p["wk"][l]) + p["bk"][l]
        v = mm(xn, p["wv"][l]) + p["bv"][l]
        s = jnp.einsum("bqd,bkd->bqk", q.astype(bf), k.astype(bf),
                       preferred_element_type=jnp.float32) / jnp.sqrt(jnp.float32(D))
        s = s + str_mat
        s = jnp.where(mask == 0, -1e9, s)
        a = jax.nn.softmax(s, axis=-1)
        ctx = jnp.einsum("bqk,bkd->bqd", a.astype(bf), v.astype(bf),
                         preferred_element_type=jnp.float32)
        x = x + mm(ctx, p["wo"][l]) + p["bo"][l]
        xn = ln(x, p["ln_g"][l, 1], p["ln_b"][l, 1])
        h = jax.nn.relu(mm(xn, p["w1"][l]) + p["b1"][l])
        x = x + mm(h, p["w2"][l]) + p["b2"][l]
    return ln(x, p["fn_g"], p["fn_b"])


def init_params(key, depth, D, d_ff):
    ks = jax.random.split(key, 12)
    sc = 0.05
    f32 = jnp.float32
    return dict(
        wq=jax.random.normal(ks[0], (depth, D, D), f32) * sc,
        bq=jax.random.normal(ks[1], (depth, D), f32) * sc,
        wk=jax.random.normal(ks[2], (depth, D, D), f32) * sc,
        bk=jax.random.normal(ks[3], (depth, D), f32) * sc,
        wv=jax.random.normal(ks[4], (depth, D, D), f32) * sc,
        bv=jax.random.normal(ks[5], (depth, D), f32) * sc,
        wo=jax.random.normal(ks[6], (depth, D, D), f32) * sc,
        bo=jax.random.normal(ks[7], (depth, D), f32) * sc,
        w1=jax.random.normal(ks[8], (depth, D, d_ff), f32) * sc,
        b1=jax.random.normal(ks[9], (depth, d_ff), f32) * sc,
        w2=jax.random.normal(ks[10], (depth, d_ff, D), f32) * sc,
        b2=jax.random.normal(ks[11], (depth, D), f32) * sc,
        ln_g=jnp.ones((depth, 2, D), f32),
        ln_b=jnp.zeros((depth, 2, D), f32),
        fn_g=jnp.ones((D,), f32),
        fn_b=jnp.zeros((D,), f32),
    )


if __name__ == "__main__":
    B, S, D, d_ff, depth = 8, 8, 32, 64, 2

    key = jax.random.PRNGKey(0)
    kx, ks_, kp = jax.random.split(key, 3)

    x = jax.random.normal(kx, (B, S, D), jnp.float32)
    str_mat = jax.random.normal(ks_, (B, S, S), jnp.float32) * 0.1
    # SASRec-style causal attention mask (attend to self & past).
    attn_mask = jnp.broadcast_to(
        jnp.tril(jnp.ones((S, S), jnp.int32)), (B, S, S)).astype(jnp.int32)

    params = init_params(kp, depth, D, d_ff)

    out = sas_encoder(x, str_mat, attn_mask, params, batch_block=4)
    out = jax.block_until_ready(out)

    ref = jax.block_until_ready(sas_encoder_ref(x, str_mat, attn_mask, params))
    np.testing.assert_allclose(np.asarray(out), np.asarray(ref), rtol=2e-3, atol=2e-3)

    print("KERNEL_OK")
</pallas_src>

<mosaic_0001>
module attributes {stable_mosaic.version = 11 : i64} {
  func.func @sas_encoder_kernel(%arg0: i32, %arg1: memref<4x8x128xf32, #tpu.memory_space<vmem>>, %arg2: memref<4x8x8xf32, #tpu.memory_space<vmem>>, %arg3: memref<2x128x128xbf16, #tpu.memory_space<vmem>>, %arg4: memref<2x1x128xf32, #tpu.memory_space<vmem>>, %arg5: memref<2x128x128xbf16, #tpu.memory_space<vmem>>, %arg6: memref<2x1x128xf32, #tpu.memory_space<vmem>>, %arg7: memref<2x128x128xbf16, #tpu.memory_space<vmem>>, %arg8: memref<2x1x128xf32, #tpu.memory_space<vmem>>, %arg9: memref<2x128x128xbf16, #tpu.memory_space<vmem>>, %arg10: memref<2x1x128xf32, #tpu.memory_space<vmem>>, %arg11: memref<2x128x128xbf16, #tpu.memory_space<vmem>>, %arg12: memref<2x1x128xf32, #tpu.memory_space<vmem>>, %arg13: memref<2x128x128xbf16, #tpu.memory_space<vmem>>, %arg14: memref<2x1x128xf32, #tpu.memory_space<vmem>>, %arg15: memref<2x2x128xf32, #tpu.memory_space<vmem>>, %arg16: memref<2x2x128xf32, #tpu.memory_space<vmem>>, %arg17: memref<1x128xf32, #tpu.memory_space<vmem>>, %arg18: memref<1x128xf32, #tpu.memory_space<vmem>>, %arg19: memref<4x8x128xf32, #tpu.memory_space<vmem>>) attributes {dimension_semantics = [#tpu.dimension_semantics<parallel>], iteration_bounds = array<i64: 2>, scalar_prefetch = 0 : i64, scratch_operands = 0 : i64, tpu.core_type = #tpu.core_type<tc>, window_params = [{transform_indices = @transform_0, window_bounds = array<i64: 4, 8, 128>}, {transform_indices = @transform_1, window_bounds = array<i64: 4, 8, 8>}, {pipeline_mode = #tpu.pipeline_mode<synchronous>, transform_indices = @transform_2, window_bounds = array<i64: 2, 128, 128>}, {pipeline_mode = #tpu.pipeline_mode<synchronous>, transform_indices = @transform_3, window_bounds = array<i64: 2, 1, 128>}, {pipeline_mode = #tpu.pipeline_mode<synchronous>, transform_indices = @transform_4, window_bounds = array<i64: 2, 128, 128>}, {pipeline_mode = #tpu.pipeline_mode<synchronous>, transform_indices = @transform_5, window_bounds = array<i64: 2, 1, 128>}, {pipeline_mode = #tpu.pipeline_mode<synchronous>, transform_indices = @transform_6, window_bounds = array<i64: 2, 128, 128>}, {pipeline_mode = #tpu.pipeline_mode<synchronous>, transform_indices = @transform_7, window_bounds = array<i64: 2, 1, 128>}, {pipeline_mode = #tpu.pipeline_mode<synchronous>, transform_indices = @transform_8, window_bounds = array<i64: 2, 128, 128>}, {pipeline_mode = #tpu.pipeline_mode<synchronous>, transform_indices = @transform_9, window_bounds = array<i64: 2, 1, 128>}, {pipeline_mode = #tpu.pipeline_mode<synchronous>, transform_indices = @transform_10, window_bounds = array<i64: 2, 128, 128>}, {pipeline_mode = #tpu.pipeline_mode<synchronous>, transform_indices = @transform_11, window_bounds = array<i64: 2, 1, 128>}, {pipeline_mode = #tpu.pipeline_mode<synchronous>, transform_indices = @transform_12, window_bounds = array<i64: 2, 128, 128>}, {pipeline_mode = #tpu.pipeline_mode<synchronous>, transform_indices = @transform_13, window_bounds = array<i64: 2, 1, 128>}, {pipeline_mode = #tpu.pipeline_mode<synchronous>, transform_indices = @transform_14, window_bounds = array<i64: 2, 2, 128>}, {pipeline_mode = #tpu.pipeline_mode<synchronous>, transform_indices = @transform_15, window_bounds = array<i64: 2, 2, 128>}, {pipeline_mode = #tpu.pipeline_mode<synchronous>, transform_indices = @transform_16, window_bounds = array<i64: 1, 128>}, {pipeline_mode = #tpu.pipeline_mode<synchronous>, transform_indices = @transform_17, window_bounds = array<i64: 1, 128>}, {transform_indices = @transform_18, window_bounds = array<i64: 4, 8, 128>}]} {
    %0 = tpu.iota {dimensions = array<i32: 1>} : vector<1x128xi32>
    %c32_i32 = arith.constant 32 : i32
    %1 = vector.broadcast %c32_i32 : i32 to vector<1x128xi32>
    %2 = arith.cmpi slt, %0, %1 : vector<1x128xi32>
    %c0 = arith.constant 0 : index
    %c0_0 = arith.constant 0 : index
    %c0_1 = arith.constant 0 : index
    %3 = vector.load %arg1[%c0, %c0_0, %c0_1] : memref<4x8x128xf32, #tpu.memory_space<vmem>>, vector<4x8x128xf32>
    %4 = vector.shape_cast %3 : vector<4x8x128xf32> to vector<32x128xf32>
    %c0_2 = arith.constant 0 : index
    %c0_3 = arith.constant 0 : index
    %c0_4 = arith.constant 0 : index
    %5 = vector.load %arg2[%c0_2, %c0_3, %c0_4] : memref<4x8x8xf32, #tpu.memory_space<vmem>>, vector<4x8x8xf32>
    %c0_5 = arith.constant 0 : index
    %c0_6 = arith.constant 0 : index
    %c0_7 = arith.constant 0 : index
    %6 = vector.load %arg15[%c0_5, %c0_6, %c0_7] : memref<2x2x128xf32, #tpu.memory_space<vmem>>, vector<1x2x128xf32>
    %7 = vector.shape_cast %6 : vector<1x2x128xf32> to vector<2x128xf32>
    %c0_8 = arith.constant 0 : index
    %c0_9 = arith.constant 0 : index
    %c0_10 = arith.constant 0 : index
    %8 = vector.load %arg16[%c0_8, %c0_9, %c0_10] : memref<2x2x128xf32, #tpu.memory_space<vmem>>, vector<1x2x128xf32>
    %9 = vector.shape_cast %8 : vector<1x2x128xf32> to vector<2x128xf32>
    %10 = vector.extract_strided_slice %7 {offsets = [0, 0], sizes = [1, 128], strides = [1, 1]} : vector<2x128xf32> to vector<1x128xf32>
    %11 = vector.extract_strided_slice %9 {offsets = [0, 0], sizes = [1, 128], strides = [1, 1]} : vector<2x128xf32> to vector<1x128xf32>
    %cst = arith.constant dense<0.000000e+00> : vector<32xf32>
    %12 = vector.multi_reduction <add>, %4, %cst [1] : vector<32x128xf32> to vector<32xf32>
    %13 = vector.shape_cast %12 : vector<32xf32> to vector<32x1xf32>
    %cst_11 = arith.constant 3.125000e-02 : f32
    %14 = vector.broadcast %cst_11 : f32 to vector<32x1xf32>
    %15 = arith.mulf %13, %14 : vector<32x1xf32>
    %16 = vector.broadcast %15 : vector<32x1xf32> to vector<32x128xf32>
    %17 = arith.subf %4, %16 : vector<32x128xf32>
    %cst_12 = arith.constant 0.000000e+00 : f32
    %18 = vector.shape_cast %2 : vector<1x128xi1> to vector<1x128xi1>
    %19 = vector.broadcast %18 : vector<1x128xi1> to vector<32x128xi1>
    %20 = vector.broadcast %cst_12 : f32 to vector<32x128xf32>
    %21 = arith.select %19, %17, %20 : vector<32x128xi1>, vector<32x128xf32>
    %22 = arith.mulf %21, %21 : vector<32x128xf32>
    %cst_13 = arith.constant dense<0.000000e+00> : vector<32xf32>
    %23 = vector.multi_reduction <add>, %22, %cst_13 [1] : vector<32x128xf32> to vector<32xf32>
    %24 = vector.shape_cast %23 : vector<32xf32> to vector<32x1xf32>
    %cst_14 = arith.constant 3.125000e-02 : f32
    %25 = vector.broadcast %cst_14 : f32 to vector<32x1xf32>
    %26 = arith.mulf %24, %25 : vector<32x1xf32>
    %cst_15 = arith.constant 9.99999974E-6 : f32
    %27 = vector.broadcast %cst_15 : f32 to vector<32x1xf32>
    %28 = arith.addf %26, %27 : vector<32x1xf32>
    %29 = math.rsqrt %28 : vector<32x1xf32>
    %30 = vector.broadcast %29 : vector<32x1xf32> to vector<32x128xf32>
    %31 = arith.mulf %21, %30 : vector<32x128xf32>
    %32 = vector.broadcast %10 : vector<1x128xf32> to vector<32x128xf32>
    %33 = arith.mulf %31, %32 : vector<32x128xf32>
    %34 = vector.broadcast %11 : vector<1x128xf32> to vector<32x128xf32>
    %35 = arith.addf %33, %34 : vector<32x128xf32>
    %36 = arith.truncf %35 : vector<32x128xf32> to vector<32x128xbf16>
    %c0_16 = arith.constant 0 : index
    %c0_17 = arith.constant 0 : index
    %c0_18 = arith.constant 0 : index
    %37 = vector.load %arg3[%c0_16, %c0_17, %c0_18] : memref<2x128x128xbf16, #tpu.memory_space<vmem>>, vector<1x128x128xbf16>
    %38 = vector.shape_cast %37 : vector<1x128x128xbf16> to vector<128x128xbf16>
    %cst_19 = arith.constant dense<0.000000e+00> : vector<32x128xf32>
    %39 = tpu.matmul %36, %38, %cst_19 {dimension_numbers = #tpu.dot_dimension_numbers<[1], [0], [0], [1], [0, 0, 1, 1], [], []>} : vector<32x128xbf16>, vector<128x128xbf16>, vector<32x128xf32> -> vector<32x128xf32>
    %c0_20 = arith.constant 0 : index
    %c0_21 = arith.constant 0 : index
    %c0_22 = arith.constant 0 : index
    %40 = vector.load %arg4[%c0_20, %c0_21, %c0_22] : memref<2x1x128xf32, #tpu.memory_space<vmem>>, vector<1x1x128xf32>
    %41 = vector.shape_cast %40 : vector<1x1x128xf32> to vector<1x128xf32>
    %42 = vector.broadcast %41 : vector<1x128xf32> to vector<32x128xf32>
    %43 = arith.addf %39, %42 : vector<32x128xf32>
    %c0_23 = arith.constant 0 : index
    %c0_24 = arith.constant 0 : index
    %c0_25 = arith.constant 0 : index
    %44 = vector.load %arg5[%c0_23, %c0_24, %c0_25] : memref<2x128x128xbf16, #tpu.memory_space<vmem>>, vector<1x128x128xbf16>
    %45 = vector.shape_cast %44 : vector<1x128x128xbf16> to vector<128x128xbf16>
    %cst_26 = arith.constant dense<0.000000e+00> : vector<32x128xf32>
    %46 = tpu.matmul %36, %45, %cst_26 {dimension_numbers = #tpu.dot_dimension_numbers<[1], [0], [0], [1], [0, 0, 1, 1], [], []>} : vector<32x128xbf16>, vector<128x128xbf16>, vector<32x128xf32> -> vector<32x128xf32>
    %c0_27 = arith.constant 0 : index
    %c0_28 = arith.constant 0 : index
    %c0_29 = arith.constant 0 : index
    %47 = vector.load %arg6[%c0_27, %c0_28, %c0_29] : memref<2x1x128xf32, #tpu.memory_space<vmem>>, vector<1x1x128xf32>
    %48 = vector.shape_cast %47 : vector<1x1x128xf32> to vector<1x128xf32>
    %49 = vector.broadcast %48 : vector<1x128xf32> to vector<32x128xf32>
    %50 = arith.addf %46, %49 : vector<32x128xf32>
    %c0_30 = arith.constant 0 : index
    %c0_31 = arith.constant 0 : index
    %c0_32 = arith.constant 0 : index
    %51 = vector.load %arg7[%c0_30, %c0_31, %c0_32] : memref<2x128x128xbf16, #tpu.memory_space<vmem>>, vector<1x128x128xbf16>
    %52 = vector.shape_cast %51 : vector<1x128x128xbf16> to vector<128x128xbf16>
    %cst_33 = arith.constant dense<0.000000e+00> : vector<32x128xf32>
    %53 = tpu.matmul %36, %52, %cst_33 {dimension_numbers = #tpu.dot_dimension_numbers<[1], [0], [0], [1], [0, 0, 1, 1], [], []>} : vector<32x128xbf16>, vector<128x128xbf16>, vector<32x128xf32> -> vector<32x128xf32>
    %c0_34 = arith.constant 0 : index
    %c0_35 = arith.constant 0 : index
    %c0_36 = arith.constant 0 : index
    %54 = vector.load %arg8[%c0_34, %c0_35, %c0_36] : memref<2x1x128xf32, #tpu.memory_space<vmem>>, vector<1x1x128xf32>
    %55 = vector.shape_cast %54 : vector<1x1x128xf32> to vector<1x128xf32>
    %56 = vector.broadcast %55 : vector<1x128xf32> to vector<32x128xf32>
    %57 = arith.addf %53, %56 : vector<32x128xf32>
    %58 = vector.shape_cast %43 : vector<32x128xf32> to vector<4x8x128xf32>
    %59 = arith.truncf %58 : vector<4x8x128xf32> to vector<4x8x128xbf16>
    %60 = vector.shape_cast %50 : vector<32x128xf32> to vector<4x8x128xf32>
    %61 = arith.truncf %60 : vector<4x8x128xf32> to vector<4x8x128xbf16>
    %62 = vector.shape_cast %57 : vector<32x128xf32> to vector<4x8x128xf32>
    %63 = arith.truncf %62 : vector<4x8x128xf32> to vector<4x8x128xbf16>
    "tpu.trace_start"() <{level = 10 : i32, message = "bqd,bkd->bqk"}> : () -> ()
    %cst_37 = arith.constant dense<0.000000e+00> : vector<4x8x8xf32>
    %64 = tpu.matmul %59, %61, %cst_37 {dimension_numbers = #tpu.dot_dimension_numbers<[2], [2], [1], [1], [0, 0, 0, 1, 1, 1], [0], [0]>} : vector<4x8x128xbf16>, vector<4x8x128xbf16>, vector<4x8x8xf32> -> vector<4x8x8xf32>
    "tpu.trace_stop"() : () -> ()
    %cst_38 = arith.constant 0.176776692 : f32
    %65 = vector.broadcast %cst_38 : f32 to vector<4x8x8xf32>
    %66 = arith.mulf %64, %65 : vector<4x8x8xf32>
    %67 = arith.addf %66, %5 : vector<4x8x8xf32>
    %cst_39 = arith.constant dense<0xFF800000> : vector<4x8xf32>
    %68 = vector.multi_reduction <maximumf>, %67, %cst_39 [2] : vector<4x8x8xf32> to vector<4x8xf32>
    %69 = vector.shape_cast %68 : vector<4x8xf32> to vector<4x8x1xf32>
    %70 = vector.broadcast %69 : vector<4x8x1xf32> to vector<4x8x8xf32>
    %71 = arith.subf %67, %70 : vector<4x8x8xf32>
    %72 = math.exp %71 : vector<4x8x8xf32>
    %cst_40 = arith.constant dense<0.000000e+00> : vector<4x8xf32>
    %73 = vector.multi_reduction <add>, %72, %cst_40 [2] : vector<4x8x8xf32> to vector<4x8xf32>
    %74 = vector.shape_cast %73 : vector<4x8xf32> to vector<4x8x1xf32>
    %75 = tpu.reciprocal %74 {approx = true} : vector<4x8x1xf32> -> vector<4x8x1xf32>
    %76 = vector.broadcast %75 : vector<4x8x1xf32> to vector<4x8x8xf32>
    %77 = arith.mulf %72, %76 : vector<4x8x8xf32>
    %78 = arith.truncf %77 : vector<4x8x8xf32> to vector<4x8x8xbf16>
    "tpu.trace_start"() <{level = 10 : i32, message = "bqk,bkd->bqd"}> : () -> ()
    %cst_41 = arith.constant dense<0.000000e+00> : vector<4x8x128xf32>
    %79 = tpu.matmul %78, %63, %cst_41 {dimension_numbers = #tpu.dot_dimension_numbers<[2], [1], [1], [2], [0, 0, 0, 1, 1, 2], [0], [0]>} : vector<4x8x8xbf16>, vector<4x8x128xbf16>, vector<4x8x128xf32> -> vector<4x8x128xf32>
    "tpu.trace_stop"() : () -> ()
    %80 = vector.shape_cast %79 : vector<4x8x128xf32> to vector<32x128xf32>
    %81 = arith.truncf %80 : vector<32x128xf32> to vector<32x128xbf16>
    %c0_42 = arith.constant 0 : index
    %c0_43 = arith.constant 0 : index
    %c0_44 = arith.constant 0 : index
    %82 = vector.load %arg9[%c0_42, %c0_43, %c0_44] : memref<2x128x128xbf16, #tpu.memory_space<vmem>>, vector<1x128x128xbf16>
    %83 = vector.shape_cast %82 : vector<1x128x128xbf16> to vector<128x128xbf16>
    %cst_45 = arith.constant dense<0.000000e+00> : vector<32x128xf32>
    %84 = tpu.matmul %81, %83, %cst_45 {dimension_numbers = #tpu.dot_dimension_numbers<[1], [0], [0], [1], [0, 0, 1, 1], [], []>} : vector<32x128xbf16>, vector<128x128xbf16>, vector<32x128xf32> -> vector<32x128xf32>
    %c0_46 = arith.constant 0 : index
    %c0_47 = arith.constant 0 : index
    %c0_48 = arith.constant 0 : index
    %85 = vector.load %arg10[%c0_46, %c0_47, %c0_48] : memref<2x1x128xf32, #tpu.memory_space<vmem>>, vector<1x1x128xf32>
    %86 = vector.shape_cast %85 : vector<1x1x128xf32> to vector<1x128xf32>
    %87 = vector.broadcast %86 : vector<1x128xf32> to vector<32x128xf32>
    %88 = arith.addf %84, %87 : vector<32x128xf32>
    %89 = arith.addf %4, %88 : vector<32x128xf32>
    %90 = vector.extract_strided_slice %7 {offsets = [1, 0], sizes = [1, 128], strides = [1, 1]} : vector<2x128xf32> to vector<1x128xf32>
    %91 = vector.extract_strided_slice %9 {offsets = [1, 0], sizes = [1, 128], strides = [1, 1]} : vector<2x128xf32> to vector<1x128xf32>
    %cst_49 = arith.constant dense<0.000000e+00> : vector<32xf32>
    %92 = vector.multi_reduction <add>, %89, %cst_49 [1] : vector<32x128xf32> to vector<32xf32>
    %93 = vector.shape_cast %92 : vector<32xf32> to vector<32x1xf32>
    %cst_50 = arith.constant 3.125000e-02 : f32
    %94 = vector.broadcast %cst_50 : f32 to vector<32x1xf32>
    %95 = arith.mulf %93, %94 : vector<32x1xf32>
    %96 = vector.broadcast %95 : vector<32x1xf32> to vector<32x128xf32>
    %97 = arith.subf %89, %96 : vector<32x128xf32>
    %cst_51 = arith.constant 0.000000e+00 : f32
    %98 = vector.shape_cast %2 : vector<1x128xi1> to vector<1x128xi1>
    %99 = vector.broadcast %98 : vector<1x128xi1> to vector<32x128xi1>
    %100 = vector.broadcast %cst_51 : f32 to vector<32x128xf32>
    %101 = arith.select %99, %97, %100 : vector<32x128xi1>, vector<32x128xf32>
    %102 = arith.mulf %101, %101 : vector<32x128xf32>
    %cst_52 = arith.constant dense<0.000000e+00> : vector<32xf32>
    %103 = vector.multi_reduction <add>, %102, %cst_52 [1] : vector<32x128xf32> to vector<32xf32>
    %104 = vector.shape_cast %103 : vector<32xf32> to vector<32x1xf32>
    %cst_53 = arith.constant 3.125000e-02 : f32
    %105 = vector.broadcast %cst_53 : f32 to vector<32x1xf32>
    %106 = arith.mulf %104, %105 : vector<32x1xf32>
    %cst_54 = arith.constant 9.99999974E-6 : f32
    %107 = vector.broadcast %cst_54 : f32 to vector<32x1xf32>
    %108 = arith.addf %106, %107 : vector<32x1xf32>
    %109 = math.rsqrt %108 : vector<32x1xf32>
    %110 = vector.broadcast %109 : vector<32x1xf32> to vector<32x128xf32>
    %111 = arith.mulf %101, %110 : vector<32x128xf32>
    %112 = vector.broadcast %90 : vector<1x128xf32> to vector<32x128xf32>
    %113 = arith.mulf %111, %112 : vector<32x128xf32>
    %114 = vector.broadcast %91 : vector<1x128xf32> to vector<32x128xf32>
    %115 = arith.addf %113, %114 : vector<32x128xf32>
    %116 = arith.truncf %115 : vector<32x128xf32> to vector<32x128xbf16>
    %c0_55 = arith.constant 0 : index
    %c0_56 = arith.constant 0 : index
    %c0_57 = arith.constant 0 : index
    %117 = vector.load %arg11[%c0_55, %c0_56, %c0_57] : memref<2x128x128xbf16, #tpu.memory_space<vmem>>, vector<1x128x128xbf16>
    %118 = vector.shape_cast %117 : vector<1x128x128xbf16> to vector<128x128xbf16>
    %cst_58 = arith.constant dense<0.000000e+00> : vector<32x128xf32>
    %119 = tpu.matmul %116, %118, %cst_58 {dimension_numbers = #tpu.dot_dimension_numbers<[1], [0], [0], [1], [0, 0, 1, 1], [], []>} : vector<32x128xbf16>, vector<128x128xbf16>, vector<32x128xf32> -> vector<32x128xf32>
    %c0_59 = arith.constant 0 : index
    %c0_60 = arith.constant 0 : index
    %c0_61 = arith.constant 0 : index
    %120 = vector.load %arg12[%c0_59, %c0_60, %c0_61] : memref<2x1x128xf32, #tpu.memory_space<vmem>>, vector<1x1x128xf32>
    %121 = vector.shape_cast %120 : vector<1x1x128xf32> to vector<1x128xf32>
    %122 = vector.broadcast %121 : vector<1x128xf32> to vector<32x128xf32>
    %123 = arith.addf %119, %122 : vector<32x128xf32>
    %cst_62 = arith.constant 0.000000e+00 : f32
    %124 = vector.broadcast %cst_62 : f32 to vector<32x128xf32>
    %125 = arith.maximumf %123, %124 : vector<32x128xf32>
    %126 = arith.truncf %125 : vector<32x128xf32> to vector<32x128xbf16>
    %c0_63 = arith.constant 0 : index
    %c0_64 = arith.constant 0 : index
    %c0_65 = arith.constant 0 : index
    %127 = vector.load %arg13[%c0_63, %c0_64, %c0_65] : memref<2x128x128xbf16, #tpu.memory_space<vmem>>, vector<1x128x128xbf16>
    %128 = vector.shape_cast %127 : vector<1x128x128xbf16> to vector<128x128xbf16>
    %cst_66 = arith.constant dense<0.000000e+00> : vector<32x128xf32>
    %129 = tpu.matmul %126, %128, %cst_66 {dimension_numbers = #tpu.dot_dimension_numbers<[1], [0], [0], [1], [0, 0, 1, 1], [], []>} : vector<32x128xbf16>, vector<128x128xbf16>, vector<32x128xf32> -> vector<32x128xf32>
    %c0_67 = arith.constant 0 : index
    %c0_68 = arith.constant 0 : index
    %c0_69 = arith.constant 0 : index
    %130 = vector.load %arg14[%c0_67, %c0_68, %c0_69] : memref<2x1x128xf32, #tpu.memory_space<vmem>>, vector<1x1x128xf32>
    %131 = vector.shape_cast %130 : vector<1x1x128xf32> to vector<1x128xf32>
    %132 = vector.broadcast %131 : vector<1x128xf32> to vector<32x128xf32>
    %133 = arith.addf %129, %132 : vector<32x128xf32>
    %134 = arith.addf %89, %133 : vector<32x128xf32>
    %c1 = arith.constant 1 : index
    %c0_70 = arith.constant 0 : index
    %c0_71 = arith.constant 0 : index
    %135 = vector.load %arg15[%c1, %c0_70, %c0_71] : memref<2x2x128xf32, #tpu.memory_space<vmem>>, vector<1x2x128xf32>
    %136 = vector.shape_cast %135 : vector<1x2x128xf32> to vector<2x128xf32>
    %c1_72 = arith.constant 1 : index
    %c0_73 = arith.constant 0 : index
    %c0_74 = arith.constant 0 : index
    %137 = vector.load %arg16[%c1_72, %c0_73, %c0_74] : memref<2x2x128xf32, #tpu.memory_space<vmem>>, vector<1x2x128xf32>
    %138 = vector.shape_cast %137 : vector<1x2x128xf32> to vector<2x128xf32>
    %139 = vector.extract_strided_slice %136 {offsets = [0, 0], sizes = [1, 128], strides = [1, 1]} : vector<2x128xf32> to vector<1x128xf32>
    %140 = vector.extract_strided_slice %138 {offsets = [0, 0], sizes = [1, 128], strides = [1, 1]} : vector<2x128xf32> to vector<1x128xf32>
    %cst_75 = arith.constant dense<0.000000e+00> : vector<32xf32>
    %141 = vector.multi_reduction <add>, %134, %cst_75 [1] : vector<32x128xf32> to vector<32xf32>
    %142 = vector.shape_cast %141 : vector<32xf32> to vector<32x1xf32>
    %cst_76 = arith.constant 3.125000e-02 : f32
    %143 = vector.broadcast %cst_76 : f32 to vector<32x1xf32>
    %144 = arith.mulf %142, %143 : vector<32x1xf32>
    %145 = vector.broadcast %144 : vector<32x1xf32> to vector<32x128xf32>
    %146 = arith.subf %134, %145 : vector<32x128xf32>
    %cst_77 = arith.constant 0.000000e+00 : f32
    %147 = vector.shape_cast %2 : vector<1x128xi1> to vector<1x128xi1>
    %148 = vector.broadcast %147 : vector<1x128xi1> to vector<32x128xi1>
    %149 = vector.broadcast %cst_77 : f32 to vector<32x128xf32>
    %150 = arith.select %148, %146, %149 : vector<32x128xi1>, vector<32x128xf32>
    %151 = arith.mulf %150, %150 : vector<32x128xf32>
    %cst_78 = arith.constant dense<0.000000e+00> : vector<32xf32>
    %152 = vector.multi_reduction <add>, %151, %cst_78 [1] : vector<32x128xf32> to vector<32xf32>
    %153 = vector.shape_cast %152 : vector<32xf32> to vector<32x1xf32>
    %cst_79 = arith.constant 3.125000e-02 : f32
    %154 = vector.broadcast %cst_79 : f32 to vector<32x1xf32>
    %155 = arith.mulf %153, %154 : vector<32x1xf32>
    %cst_80 = arith.constant 9.99999974E-6 : f32
    %156 = vector.broadcast %cst_80 : f32 to vector<32x1xf32>
    %157 = arith.addf %155, %156 : vector<32x1xf32>
    %158 = math.rsqrt %157 : vector<32x1xf32>
    %159 = vector.broadcast %158 : vector<32x1xf32> to vector<32x128xf32>
    %160 = arith.mulf %150, %159 : vector<32x128xf32>
    %161 = vector.broadcast %139 : vector<1x128xf32> to vector<32x128xf32>
    %162 = arith.mulf %160, %161 : vector<32x128xf32>
    %163 = vector.broadcast %140 : vector<1x128xf32> to vector<32x128xf32>
    %164 = arith.addf %162, %163 : vector<32x128xf32>
    %165 = arith.truncf %164 : vector<32x128xf32> to vector<32x128xbf16>
    %c1_81 = arith.constant 1 : index
    %c0_82 = arith.constant 0 : index
    %c0_83 = arith.constant 0 : index
    %166 = vector.load %arg3[%c1_81, %c0_82, %c0_83] : memref<2x128x128xbf16, #tpu.memory_space<vmem>>, vector<1x128x128xbf16>
    %167 = vector.shape_cast %166 : vector<1x128x128xbf16> to vector<128x128xbf16>
    %cst_84 = arith.constant dense<0.000000e+00> : vector<32x128xf32>
    %168 = tpu.matmul %165, %167, %cst_84 {dimension_numbers = #tpu.dot_dimension_numbers<[1], [0], [0], [1], [0, 0, 1, 1], [], []>} : vector<32x128xbf16>, vector<128x128xbf16>, vector<32x128xf32> -> vector<32x128xf32>
    %c1_85 = arith.constant 1 : index
    %c0_86 = arith.constant 0 : index
    %c0_87 = arith.constant 0 : index
    %169 = vector.load %arg4[%c1_85, %c0_86, %c0_87] : memref<2x1x128xf32, #tpu.memory_space<vmem>>, vector<1x1x128xf32>
    %170 = vector.shape_cast %169 : vector<1x1x128xf32> to vector<1x128xf32>
    %171 = vector.broadcast %170 : vector<1x128xf32> to vector<32x128xf32>
    %172 = arith.addf %168, %171 : vector<32x128xf32>
    %c1_88 = arith.constant 1 : index
    %c0_89 = arith.constant 0 : index
    %c0_90 = arith.constant 0 : index
    %173 = vector.load %arg5[%c1_88, %c0_89, %c0_90] : memref<2x128x128xbf16, #tpu.memory_space<vmem>>, vector<1x128x128xbf16>
    %174 = vector.shape_cast %173 : vector<1x128x128xbf16> to vector<128x128xbf16>
    %cst_91 = arith.constant dense<0.000000e+00> : vector<32x128xf32>
    %175 = tpu.matmul %165, %174, %cst_91 {dimension_numbers = #tpu.dot_dimension_numbers<[1], [0], [0], [1], [0, 0, 1, 1], [], []>} : vector<32x128xbf16>, vector<128x128xbf16>, vector<32x128xf32> -> vector<32x128xf32>
    %c1_92 = arith.constant 1 : index
    %c0_93 = arith.constant 0 : index
    %c0_94 = arith.constant 0 : index
    %176 = vector.load %arg6[%c1_92, %c0_93, %c0_94] : memref<2x1x128xf32, #tpu.memory_space<vmem>>, vector<1x1x128xf32>
    %177 = vector.shape_cast %176 : vector<1x1x128xf32> to vector<1x128xf32>
    %178 = vector.broadcast %177 : vector<1x128xf32> to vector<32x128xf32>
    %179 = arith.addf %175, %178 : vector<32x128xf32>
    %c1_95 = arith.constant 1 : index
    %c0_96 = arith.constant 0 : index
    %c0_97 = arith.constant 0 : index
    %180 = vector.load %arg7[%c1_95, %c0_96, %c0_97] : memref<2x128x128xbf16, #tpu.memory_space<vmem>>, vector<1x128x128xbf16>
    %181 = vector.shape_cast %180 : vector<1x128x128xbf16> to vector<128x128xbf16>
    %cst_98 = arith.constant dense<0.000000e+00> : vector<32x128xf32>
    %182 = tpu.matmul %165, %181, %cst_98 {dimension_numbers = #tpu.dot_dimension_numbers<[1], [0], [0], [1], [0, 0, 1, 1], [], []>} : vector<32x128xbf16>, vector<128x128xbf16>, vector<32x128xf32> -> vector<32x128xf32>
    %c1_99 = arith.constant 1 : index
    %c0_100 = arith.constant 0 : index
    %c0_101 = arith.constant 0 : index
    %183 = vector.load %arg8[%c1_99, %c0_100, %c0_101] : memref<2x1x128xf32, #tpu.memory_space<vmem>>, vector<1x1x128xf32>
    %184 = vector.shape_cast %183 : vector<1x1x128xf32> to vector<1x128xf32>
    %185 = vector.broadcast %184 : vector<1x128xf32> to vector<32x128xf32>
    %186 = arith.addf %182, %185 : vector<32x128xf32>
    %187 = vector.shape_cast %172 : vector<32x128xf32> to vector<4x8x128xf32>
    %188 = arith.truncf %187 : vector<4x8x128xf32> to vector<4x8x128xbf16>
    %189 = vector.shape_cast %179 : vector<32x128xf32> to vector<4x8x128xf32>
    %190 = arith.truncf %189 : vector<4x8x128xf32> to vector<4x8x128xbf16>
    %191 = vector.shape_cast %186 : vector<32x128xf32> to vector<4x8x128xf32>
    %192 = arith.truncf %191 : vector<4x8x128xf32> to vector<4x8x128xbf16>
    "tpu.trace_start"() <{level = 10 : i32, message = "bqd,bkd->bqk"}> : () -> ()
    %cst_102 = arith.constant dense<0.000000e+00> : vector<4x8x8xf32>
    %193 = tpu.matmul %188, %190, %cst_102 {dimension_numbers = #tpu.dot_dimension_numbers<[2], [2], [1], [1], [0, 0, 0, 1, 1, 1], [0], [0]>} : vector<4x8x128xbf16>, vector<4x8x128xbf16>, vector<4x8x8xf32> -> vector<4x8x8xf32>
    "tpu.trace_stop"() : () -> ()
    %cst_103 = arith.constant 0.176776692 : f32
    %194 = vector.broadcast %cst_103 : f32 to vector<4x8x8xf32>
    %195 = arith.mulf %193, %194 : vector<4x8x8xf32>
    %196 = arith.addf %195, %5 : vector<4x8x8xf32>
    %cst_104 = arith.constant dense<0xFF800000> : vector<4x8xf32>
    %197 = vector.multi_reduction <maximumf>, %196, %cst_104 [2] : vector<4x8x8xf32> to vector<4x8xf32>
    %198 = vector.shape_cast %197 : vector<4x8xf32> to vector<4x8x1xf32>
    %199 = vector.broadcast %198 : vector<4x8x1xf32> to vector<4x8x8xf32>
    %200 = arith.subf %196, %199 : vector<4x8x8xf32>
    %201 = math.exp %200 : vector<4x8x8xf32>
    %cst_105 = arith.constant dense<0.000000e+00> : vector<4x8xf32>
    %202 = vector.multi_reduction <add>, %201, %cst_105 [2] : vector<4x8x8xf32> to vector<4x8xf32>
    %203 = vector.shape_cast %202 : vector<4x8xf32> to vector<4x8x1xf32>
    %204 = tpu.reciprocal %203 {approx = true} : vector<4x8x1xf32> -> vector<4x8x1xf32>
    %205 = vector.broadcast %204 : vector<4x8x1xf32> to vector<4x8x8xf32>
    %206 = arith.mulf %201, %205 : vector<4x8x8xf32>
    %207 = arith.truncf %206 : vector<4x8x8xf32> to vector<4x8x8xbf16>
    "tpu.trace_start"() <{level = 10 : i32, message = "bqk,bkd->bqd"}> : () -> ()
    %cst_106 = arith.constant dense<0.000000e+00> : vector<4x8x128xf32>
    %208 = tpu.matmul %207, %192, %cst_106 {dimension_numbers = #tpu.dot_dimension_numbers<[2], [1], [1], [2], [0, 0, 0, 1, 1, 2], [0], [0]>} : vector<4x8x8xbf16>, vector<4x8x128xbf16>, vector<4x8x128xf32> -> vector<4x8x128xf32>
    "tpu.trace_stop"() : () -> ()
    %209 = vector.shape_cast %208 : vector<4x8x128xf32> to vector<32x128xf32>
    %210 = arith.truncf %209 : vector<32x128xf32> to vector<32x128xbf16>
    %c1_107 = arith.constant 1 : index
    %c0_108 = arith.constant 0 : index
    %c0_109 = arith.constant 0 : index
    %211 = vector.load %arg9[%c1_107, %c0_108, %c0_109] : memref<2x128x128xbf16, #tpu.memory_space<vmem>>, vector<1x128x128xbf16>
    %212 = vector.shape_cast %211 : vector<1x128x128xbf16> to vector<128x128xbf16>
    %cst_110 = arith.constant dense<0.000000e+00> : vector<32x128xf32>
    %213 = tpu.matmul %210, %212, %cst_110 {dimension_numbers = #tpu.dot_dimension_numbers<[1], [0], [0], [1], [0, 0, 1, 1], [], []>} : vector<32x128xbf16>, vector<128x128xbf16>, vector<32x128xf32> -> vector<32x128xf32>
    %c1_111 = arith.constant 1 : index
    %c0_112 = arith.constant 0 : index
    %c0_113 = arith.constant 0 : index
    %214 = vector.load %arg10[%c1_111, %c0_112, %c0_113] : memref<2x1x128xf32, #tpu.memory_space<vmem>>, vector<1x1x128xf32>
    %215 = vector.shape_cast %214 : vector<1x1x128xf32> to vector<1x128xf32>
    %216 = vector.broadcast %215 : vector<1x128xf32> to vector<32x128xf32>
    %217 = arith.addf %213, %216 : vector<32x128xf32>
    %218 = arith.addf %134, %217 : vector<32x128xf32>
    %219 = vector.extract_strided_slice %136 {offsets = [1, 0], sizes = [1, 128], strides = [1, 1]} : vector<2x128xf32> to vector<1x128xf32>
    %220 = vector.extract_strided_slice %138 {offsets = [1, 0], sizes = [1, 128], strides = [1, 1]} : vector<2x128xf32> to vector<1x128xf32>
    %cst_114 = arith.constant dense<0.000000e+00> : vector<32xf32>
    %221 = vector.multi_reduction <add>, %218, %cst_114 [1] : vector<32x128xf32> to vector<32xf32>
    %222 = vector.shape_cast %221 : vector<32xf32> to vector<32x1xf32>
    %cst_115 = arith.constant 3.125000e-02 : f32
    %223 = vector.broadcast %cst_115 : f32 to vector<32x1xf32>
    %224 = arith.mulf %222, %223 : vector<32x1xf32>
    %225 = vector.broadcast %224 : vector<32x1xf32> to vector<32x128xf32>
    %226 = arith.subf %218, %225 : vector<32x128xf32>
    %cst_116 = arith.constant 0.000000e+00 : f32
    %227 = vector.shape_cast %2 : vector<1x128xi1> to vector<1x128xi1>
    %228 = vector.broadcast %227 : vector<1x128xi1> to vector<32x128xi1>
    %229 = vector.broadcast %cst_116 : f32 to vector<32x128xf32>
    %230 = arith.select %228, %226, %229 : vector<32x128xi1>, vector<32x128xf32>
    %231 = arith.mulf %230, %230 : vector<32x128xf32>
    %cst_117 = arith.constant dense<0.000000e+00> : vector<32xf32>
    %232 = vector.multi_reduction <add>, %231, %cst_117 [1] : vector<32x128xf32> to vector<32xf32>
    %233 = vector.shape_cast %232 : vector<32xf32> to vector<32x1xf32>
    %cst_118 = arith.constant 3.125000e-02 : f32
    %234 = vector.broadcast %cst_118 : f32 to vector<32x1xf32>
    %235 = arith.mulf %233, %234 : vector<32x1xf32>
    %cst_119 = arith.constant 9.99999974E-6 : f32
    %236 = vector.broadcast %cst_119 : f32 to vector<32x1xf32>
    %237 = arith.addf %235, %236 : vector<32x1xf32>
    %238 = math.rsqrt %237 : vector<32x1xf32>
    %239 = vector.broadcast %238 : vector<32x1xf32> to vector<32x128xf32>
    %240 = arith.mulf %230, %239 : vector<32x128xf32>
    %241 = vector.broadcast %219 : vector<1x128xf32> to vector<32x128xf32>
    %242 = arith.mulf %240, %241 : vector<32x128xf32>
    %243 = vector.broadcast %220 : vector<1x128xf32> to vector<32x128xf32>
    %244 = arith.addf %242, %243 : vector<32x128xf32>
    %245 = arith.truncf %244 : vector<32x128xf32> to vector<32x128xbf16>
    %c1_120 = arith.constant 1 : index
    %c0_121 = arith.constant 0 : index
    %c0_122 = arith.constant 0 : index
    %246 = vector.load %arg11[%c1_120, %c0_121, %c0_122] : memref<2x128x128xbf16, #tpu.memory_space<vmem>>, vector<1x128x128xbf16>
    %247 = vector.shape_cast %246 : vector<1x128x128xbf16> to vector<128x128xbf16>
    %cst_123 = arith.constant dense<0.000000e+00> : vector<32x128xf32>
    %248 = tpu.matmul %245, %247, %cst_123 {dimension_numbers = #tpu.dot_dimension_numbers<[1], [0], [0], [1], [0, 0, 1, 1], [], []>} : vector<32x128xbf16>, vector<128x128xbf16>, vector<32x128xf32> -> vector<32x128xf32>
    %c1_124 = arith.constant 1 : index
    %c0_125 = arith.constant 0 : index
    %c0_126 = arith.constant 0 : index
    %249 = vector.load %arg12[%c1_124, %c0_125, %c0_126] : memref<2x1x128xf32, #tpu.memory_space<vmem>>, vector<1x1x128xf32>
    %250 = vector.shape_cast %249 : vector<1x1x128xf32> to vector<1x128xf32>
    %251 = vector.broadcast %250 : vector<1x128xf32> to vector<32x128xf32>
    %252 = arith.addf %248, %251 : vector<32x128xf32>
    %cst_127 = arith.constant 0.000000e+00 : f32
    %253 = vector.broadcast %cst_127 : f32 to vector<32x128xf32>
    %254 = arith.maximumf %252, %253 : vector<32x128xf32>
    %255 = arith.truncf %254 : vector<32x128xf32> to vector<32x128xbf16>
    %c1_128 = arith.constant 1 : index
    %c0_129 = arith.constant 0 : index
    %c0_130 = arith.constant 0 : index
    %256 = vector.load %arg13[%c1_128, %c0_129, %c0_130] : memref<2x128x128xbf16, #tpu.memory_space<vmem>>, vector<1x128x128xbf16>
    %257 = vector.shape_cast %256 : vector<1x128x128xbf16> to vector<128x128xbf16>
    %cst_131 = arith.constant dense<0.000000e+00> : vector<32x128xf32>
    %258 = tpu.matmul %255, %257, %cst_131 {dimension_numbers = #tpu.dot_dimension_numbers<[1], [0], [0], [1], [0, 0, 1, 1], [], []>} : vector<32x128xbf16>, vector<128x128xbf16>, vector<32x128xf32> -> vector<32x128xf32>
    %c1_132 = arith.constant 1 : index
    %c0_133 = arith.constant 0 : index
    %c0_134 = arith.constant 0 : index
    %259 = vector.load %arg14[%c1_132, %c0_133, %c0_134] : memref<2x1x128xf32, #tpu.memory_space<vmem>>, vector<1x1x128xf32>
    %260 = vector.shape_cast %259 : vector<1x1x128xf32> to vector<1x128xf32>
    %261 = vector.broadcast %260 : vector<1x128xf32> to vector<32x128xf32>
    %262 = arith.addf %258, %261 : vector<32x128xf32>
    %263 = arith.addf %218, %262 : vector<32x128xf32>
    %c0_135 = arith.constant 0 : index
    %c0_136 = arith.constant 0 : index
    %264 = vector.load %arg17[%c0_135, %c0_136] : memref<1x128xf32, #tpu.memory_space<vmem>>, vector<1x128xf32>
    %c0_137 = arith.constant 0 : index
    %c0_138 = arith.constant 0 : index
    %265 = vector.load %arg18[%c0_137, %c0_138] : memref<1x128xf32, #tpu.memory_space<vmem>>, vector<1x128xf32>
    %cst_139 = arith.constant dense<0.000000e+00> : vector<32xf32>
    %266 = vector.multi_reduction <add>, %263, %cst_139 [1] : vector<32x128xf32> to vector<32xf32>
    %267 = vector.shape_cast %266 : vector<32xf32> to vector<32x1xf32>
    %cst_140 = arith.constant 3.125000e-02 : f32
    %268 = vector.broadcast %cst_140 : f32 to vector<32x1xf32>
    %269 = arith.mulf %267, %268 : vector<32x1xf32>
    %270 = vector.broadcast %269 : vector<32x1xf32> to vector<32x128xf32>
    %271 = arith.subf %263, %270 : vector<32x128xf32>
    %cst_141 = arith.constant 0.000000e+00 : f32
    %272 = vector.shape_cast %2 : vector<1x128xi1> to vector<1x128xi1>
    %273 = vector.broadcast %272 : vector<1x128xi1> to vector<32x128xi1>
    %274 = vector.broadcast %cst_141 : f32 to vector<32x128xf32>
    %275 = arith.select %273, %271, %274 : vector<32x128xi1>, vector<32x128xf32>
    %276 = arith.mulf %275, %275 : vector<32x128xf32>
    %cst_142 = arith.constant dense<0.000000e+00> : vector<32xf32>
    %277 = vector.multi_reduction <add>, %276, %cst_142 [1] : vector<32x128xf32> to vector<32xf32>
    %278 = vector.shape_cast %277 : vector<32xf32> to vector<32x1xf32>
    %cst_143 = arith.constant 3.125000e-02 : f32
    %279 = vector.broadcast %cst_143 : f32 to vector<32x1xf32>
    %280 = arith.mulf %278, %279 : vector<32x1xf32>
    %cst_144 = arith.constant 9.99999974E-6 : f32
    %281 = vector.broadcast %cst_144 : f32 to vector<32x1xf32>
    %282 = arith.addf %280, %281 : vector<32x1xf32>
    %283 = math.rsqrt %282 : vector<32x1xf32>
    %284 = vector.broadcast %283 : vector<32x1xf32> to vector<32x128xf32>
    %285 = arith.mulf %275, %284 : vector<32x128xf32>
    %286 = vector.broadcast %264 : vector<1x128xf32> to vector<32x128xf32>
    %287 = arith.mulf %285, %286 : vector<32x128xf32>
    %288 = vector.broadcast %265 : vector<1x128xf32> to vector<32x128xf32>
    %289 = arith.addf %287, %288 : vector<32x128xf32>
    %290 = vector.shape_cast %289 : vector<32x128xf32> to vector<4x8x128xf32>
    %c0_145 = arith.constant 0 : index
    %c0_146 = arith.constant 0 : index
    %c0_147 = arith.constant 0 : index
    %291 = vector.load %arg19[%c0_145, %c0_146, %c0_147] : memref<4x8x128xf32, #tpu.memory_space<vmem>>, vector<4x8x128xf32>
    tpu.vector_store %arg19[%c0_145, %c0_146, %c0_147], %290 {strides = array<i32>} : memref<4x8x128xf32, #tpu.memory_space<vmem>>, vector<4x8x128xf32>,
    return
  }
  func.func @transform_0(%arg0: i32) -> (i32, i32, i32) {
    %c0_i32 = arith.constant 0 : i32
    %c0_i32_0 = arith.constant 0 : i32
    %c0_i32_1 = arith.constant 0 : i32
    return %arg0, %c0_i32, %c0_i32_0 : i32, i32, i32
  }
  func.func @transform_1(%arg0: i32) -> (i32, i32, i32) {
    %c0_i32 = arith.constant 0 : i32
    %c0_i32_0 = arith.constant 0 : i32
    %c0_i32_1 = arith.constant 0 : i32
    return %arg0, %c0_i32, %c0_i32_0 : i32, i32, i32
  }
  func.func @transform_2(%arg0: i32) -> (i32, i32, i32) {
    %c0_i32 = arith.constant 0 : i32
    %c0_i32_0 = arith.constant 0 : i32
    %c0_i32_1 = arith.constant 0 : i32
    %c0_i32_2 = arith.constant 0 : i32
    return %c0_i32, %c0_i32_0, %c0_i32_1 : i32, i32, i32
  }
  func.func @transform_3(%arg0: i32) -> (i32, i32, i32) {
    %c0_i32 = arith.constant 0 : i32
    %c0_i32_0 = arith.constant 0 : i32
    %c0_i32_1 = arith.constant 0 : i32
    %c0_i32_2 = arith.constant 0 : i32
    return %c0_i32, %c0_i32_0, %c0_i32_1 : i32, i32, i32
  }
  func.func @transform_4(%arg0: i32) -> (i32, i32, i32) {
    %c0_i32 = arith.constant 0 : i32
    %c0_i32_0 = arith.constant 0 : i32
    %c0_i32_1 = arith.constant 0 : i32
    %c0_i32_2 = arith.constant 0 : i32
    return %c0_i32, %c0_i32_0, %c0_i32_1 : i32, i32, i32
  }
  func.func @transform_5(%arg0: i32) -> (i32, i32, i32) {
    %c0_i32 = arith.constant 0 : i32
    %c0_i32_0 = arith.constant 0 : i32
    %c0_i32_1 = arith.constant 0 : i32
    %c0_i32_2 = arith.constant 0 : i32
    return %c0_i32, %c0_i32_0, %c0_i32_1 : i32, i32, i32
  }
  func.func @transform_6(%arg0: i32) -> (i32, i32, i32) {
    %c0_i32 = arith.constant 0 : i32
    %c0_i32_0 = arith.constant 0 : i32
    %c0_i32_1 = arith.constant 0 : i32
    %c0_i32_2 = arith.constant 0 : i32
    return %c0_i32, %c0_i32_0, %c0_i32_1 : i32, i32, i32
  }
  func.func @transform_7(%arg0: i32) -> (i32, i32, i32) {
    %c0_i32 = arith.constant 0 : i32
    %c0_i32_0 = arith.constant 0 : i32
    %c0_i32_1 = arith.constant 0 : i32
    %c0_i32_2 = arith.constant 0 : i32
    return %c0_i32, %c0_i32_0, %c0_i32_1 : i32, i32, i32
  }
  func.func @transform_8(%arg0: i32) -> (i32, i32, i32) {
    %c0_i32 = arith.constant 0 : i32
    %c0_i32_0 = arith.constant 0 : i32
    %c0_i32_1 = arith.constant 0 : i32
    %c0_i32_2 = arith.constant 0 : i32
    return %c0_i32, %c0_i32_0, %c0_i32_1 : i32, i32, i32
  }
  func.func @transform_9(%arg0: i32) -> (i32, i32, i32) {
    %c0_i32 = arith.constant 0 : i32
    %c0_i32_0 = arith.constant 0 : i32
    %c0_i32_1 = arith.constant 0 : i32
    %c0_i32_2 = arith.constant 0 : i32
    return %c0_i32, %c0_i32_0, %c0_i32_1 : i32, i32, i32
  }
  func.func @transform_10(%arg0: i32) -> (i32, i32, i32) {
    %c0_i32 = arith.constant 0 : i32
    %c0_i32_0 = arith.constant 0 : i32
    %c0_i32_1 = arith.constant 0 : i32
    %c0_i32_2 = arith.constant 0 : i32
    return %c0_i32, %c0_i32_0, %c0_i32_1 : i32, i32, i32
  }
  func.func @transform_11(%arg0: i32) -> (i32, i32, i32) {
    %c0_i32 = arith.constant 0 : i32
    %c0_i32_0 = arith.constant 0 : i32
    %c0_i32_1 = arith.constant 0 : i32
    %c0_i32_2 = arith.constant 0 : i32
    return %c0_i32, %c0_i32_0, %c0_i32_1 : i32, i32, i32
  }
  func.func @transform_12(%arg0: i32) -> (i32, i32, i32) {
    %c0_i32 = arith.constant 0 : i32
    %c0_i32_0 = arith.constant 0 : i32
    %c0_i32_1 = arith.constant 0 : i32
    %c0_i32_2 = arith.constant 0 : i32
    return %c0_i32, %c0_i32_0, %c0_i32_1 : i32, i32, i32
  }
  func.func @transform_13(%arg0: i32) -> (i32, i32, i32) {
    %c0_i32 = arith.constant 0 : i32
    %c0_i32_0 = arith.constant 0 : i32
    %c0_i32_1 = arith.constant 0 : i32
    %c0_i32_2 = arith.constant 0 : i32
    return %c0_i32, %c0_i32_0, %c0_i32_1 : i32, i32, i32
  }
  func.func @transform_14(%arg0: i32) -> (i32, i32, i32) {
    %c0_i32 = arith.constant 0 : i32
    %c0_i32_0 = arith.constant 0 : i32
    %c0_i32_1 = arith.constant 0 : i32
    %c0_i32_2 = arith.constant 0 : i32
    return %c0_i32, %c0_i32_0, %c0_i32_1 : i32, i32, i32
  }
  func.func @transform_15(%arg0: i32) -> (i32, i32, i32) {
    %c0_i32 = arith.constant 0 : i32
    %c0_i32_0 = arith.constant 0 : i32
    %c0_i32_1 = arith.constant 0 : i32
    %c0_i32_2 = arith.constant 0 : i32
    return %c0_i32, %c0_i32_0, %c0_i32_1 : i32, i32, i32
  }
  func.func @transform_16(%arg0: i32) -> (i32, i32) {
    %c0_i32 = arith.constant 0 : i32
    %c0_i32_0 = arith.constant 0 : i32
    %c0_i32_1 = arith.constant 0 : i32
    return %c0_i32, %c0_i32_0 : i32, i32
  }
  func.func @transform_17(%arg0: i32) -> (i32, i32) {
    %c0_i32 = arith.constant 0 : i32
    %c0_i32_0 = arith.constant 0 : i32
    %c0_i32_1 = arith.constant 0 : i32
    return %c0_i32, %c0_i32_0 : i32, i32
  }
  func.func @transform_18(%arg0: i32) -> (i32, i32, i32) {
    %c0_i32 = arith.constant 0 : i32
    %c0_i32_0 = arith.constant 0 : i32
    %c0_i32_1 = arith.constant 0 : i32
    return %arg0, %c0_i32, %c0_i32_0 : i32, i32, i32
  }
}

</mosaic_0001>

<llo_original>
// kernel: tpu_custom_call.1
$region0: #{tpu_custom_call.1}
  #allocation0 [shape = 'u32[]', space=smem, size = 0x4, offset = 0x4, fixed_abs, tag = 'smem constant byte address 0x4 - core index']
  #allocation1 [shape = 'u32[144,128]{1,0:T(1,128)}', space=vmem, size = 0x12000, scoped, tag = 'internal scratch']
  %s0 = inlined_call_operand.hbm [shape: f32[8,8,128], index: 0, kind: input, shape index: {}]
  %s1 = inlined_call_operand.hbm [shape: f32[8,8,8], index: 1, kind: input, shape index: {}]
  %s2 = inlined_call_operand.hbm [shape: bf16[2,128,128], index: 2, kind: input, shape index: {}]
  %s3 = inlined_call_operand.hbm [shape: f32[2,1,128], index: 3, kind: input, shape index: {}]
  %s4 = inlined_call_operand.hbm [shape: bf16[2,128,128], index: 4, kind: input, shape index: {}]
  %s5 = inlined_call_operand.hbm [shape: f32[2,1,128], index: 5, kind: input, shape index: {}]
  %s6 = inlined_call_operand.hbm [shape: bf16[2,128,128], index: 6, kind: input, shape index: {}]
  %s7 = inlined_call_operand.vmem [shape: f32[2,1,128], index: 7, kind: input, shape index: {}]
  %s8 = inlined_call_operand.hbm [shape: bf16[2,128,128], index: 8, kind: input, shape index: {}]
  %s9 = inlined_call_operand.vmem [shape: f32[2,1,128], index: 9, kind: input, shape index: {}]
  %s10 = inlined_call_operand.hbm [shape: bf16[2,128,128], index: 10, kind: input, shape index: {}]
  %s11 = inlined_call_operand.vmem [shape: f32[2,1,128], index: 11, kind: input, shape index: {}]
  %s12 = inlined_call_operand.hbm [shape: bf16[2,128,128], index: 12, kind: input, shape index: {}]
  %s13 = inlined_call_operand.vmem [shape: f32[2,1,128], index: 13, kind: input, shape index: {}]
  %s14 = inlined_call_operand.vmem [shape: f32[2,2,128], index: 14, kind: input, shape index: {}]
  %s15 = inlined_call_operand.vmem [shape: f32[2,2,128], index: 15, kind: input, shape index: {}]
  %s16 = inlined_call_operand.vmem [shape: f32[1,128], index: 16, kind: input, shape index: {}]
  %s17 = inlined_call_operand.vmem [shape: f32[1,128], index: 17, kind: input, shape index: {}]
  %s18 = inlined_call_operand.hbm [shape: f32[8,8,128], index: 18, kind: output, shape index: {}]
  %s19 = sld [smem:[#allocation0]]
  $region145: #{tpu_custom_call.1} parent=0
    _
  %s21 = ssub.s32 1, %s19
  %s22 = scalar_select 0, %s21, %s19
  $region1: #{tpu_custom_call.1} parent=0
    #allocation2 [shape = 'u8[32768]{0}', space=vmem, size = 0x8000, scoped, tag = 'input window, operand 0']
    #allocation3 [shape = 's32[2]{0}', space=sflag, size = 0x8, scoped, tag = 'scoped memory for tpu_custom_call.1']
    #allocation4 [shape = 's32[2]{0}', space=sflag, size = 0x8, scoped, tag = 'scoped memory for tpu_custom_call.1']
    #allocation5 [shape = 'u8[32768]{0}', space=vmem, size = 0x8000, scoped, tag = 'input window, operand 1']
    #allocation6 [shape = 's32[2]{0}', space=sflag, size = 0x8, scoped, tag = 'scoped memory for tpu_custom_call.1']
    #allocation7 [shape = 'u8[65536]{0}', space=vmem, size = 0x10000, scoped, tag = 'input window, operand 2, single buffered']
    #allocation8 [shape = 'u8[1024]{0}', space=vmem, size = 0x400, scoped, tag = 'input window, operand 3, single buffered']
    #allocation9 [shape = 's32[1]{0}', space=sflag, size = 0x4, scoped, tag = 'scoped memory for tpu_custom_call.1']
    #allocation10 [shape = 'u8[65536]{0}', space=vmem, size = 0x10000, scoped, tag = 'input window, operand 4, single buffered']
    #allocation11 [shape = 'u8[1024]{0}', space=vmem, size = 0x400, scoped, tag = 'input window, operand 5, single buffered']
    #allocation12 [shape = 's32[1]{0}', space=sflag, size = 0x4, scoped, tag = 'scoped memory for tpu_custom_call.1']
    #allocation13 [shape = 'u8[65536]{0}', space=vmem, size = 0x10000, scoped, tag = 'input window, operand 6, single buffered']
    #allocation14 [shape = 'u8[65536]{0}', space=vmem, size = 0x10000, scoped, tag = 'input window, operand 8, single buffered']
    #allocation15 [shape = 's32[1]{0}', space=sflag, size = 0x4, scoped, tag = 'scoped memory for tpu_custom_call.1']
    #allocation16 [shape = 'u8[65536]{0}', space=vmem, size = 0x10000, scoped, tag = 'input window, operand 10, single buffered']
    #allocation17 [shape = 'u8[65536]{0}', space=vmem, size = 0x10000, scoped, tag = 'input window, operand 12, single buffered']
    #allocation18 [shape = 's32[1]{0}', space=sflag, size = 0x4, scoped, tag = 'scoped memory for tpu_custom_call.1']
    #allocation19 [shape = 'u8[32768]{0}', space=vmem, size = 0x8000, scoped, tag = 'output window, operand 0']
    %23 = vsyncpa [#allocation3], 0
    %s24 = scalar_lea.sflag [#allocation3], 1
    %25 = vsyncpa %s24, 0
    %26 = vsyncpa [#allocation6], 0
    %s27 = scalar_lea.sflag [#allocation6], 1
    %28 = vsyncpa %s27, 0
    %29 = vsyncpa [#allocation9], 0
    %30 = vsyncpa [#allocation12], 0
    %31 = vsyncpa [#allocation15], 0
    %32 = vsyncpa [#allocation18], 0
    %33 = vsyncpa [#allocation4], 0
    %s34 = scalar_lea.sflag [#allocation4], 1
    %35 = vsyncpa %s34, 0
    loop: start=0, step=1, limit=4
    $region2: #{tpu_custom_call.1} parent=1 // loop_pre_header
      _
    $region3: #{tpu_custom_call.1} parent=1 // loop_header
      %s37 = sphi 0, %s41
      %p38 = scmp.ge.s32.totalorder %s37, 4
      %s47 = sphi 0, %s49
      %s50 = sphi 0, %s47
      %s51 = sphi 0, %s50
      %s67 = sphi 0, %s51
      %s73 = sphi 0, %s75
      %s76 = sphi 0, %s73
      %s77 = sphi 0, %s76
      %s93 = sphi 0, %s77
      %s97 = sphi 0, %s97
      %s99 = sphi 0, %s97
      %s100 = sphi 0, %s99
      %s114 = sphi 0, %s100
      %s118 = sphi 0, %s118
      %s120 = sphi 0, %s118
      %s121 = sphi 0, %s120
      %s135 = sphi 0, %s121
      %s139 = sphi 0, %s139
      %s141 = sphi 0, %s139
      %s142 = sphi 0, %s141
      %s156 = sphi 0, %s142
      %s160 = sphi 0, %s160
      %s162 = sphi 0, %s160
      %s163 = sphi 0, %s162
      %s177 = sphi 0, %s163
      %s181 = sphi 0, %s181
      %s183 = sphi 0, %s181
      %s184 = sphi 0, %s183
      %s198 = sphi 0, %s184
      %s202 = sphi 0, %s202
      %s204 = sphi 0, %s202
      %s205 = sphi 0, %s204
      %s219 = sphi 0, %s205
      %s223 = sphi 0, %s223
      %s225 = sphi 0, %s223
      %s226 = sphi 0, %s225
      %s240 = sphi 0, %s226
      %s244 = sphi 0, %s244
      %s246 = sphi 0, %s244
      %s247 = sphi 0, %s246
      %s261 = sphi 0, %s247
      %s265 = sphi 0, %s265
      %s267 = sphi 0, %s265
      %s268 = sphi 0, %s267
      %s282 = sphi 0, %s268
      %s286 = sphi 0, %s286
      %s288 = sphi 0, %s286
      %s289 = sphi 0, %s288
      %s303 = sphi 0, %s289
      %s307 = sphi 0, %s307
      %s309 = sphi 0, %s307
      %s310 = sphi 0, %s309
      %s324 = sphi 0, %s310
      %s328 = sphi 0, %s328
      %s330 = sphi 0, %s328
      %s331 = sphi 0, %s330
      %s345 = sphi 0, %s331
      %s349 = sphi 0, %s349
      %s351 = sphi 0, %s349
      %s352 = sphi 0, %s351
      %s366 = sphi 0, %s352
      %s370 = sphi 0, %s370
      %s372 = sphi 0, %s370
      %s373 = sphi 0, %s372
      %s387 = sphi 0, %s373
      %s391 = sphi 0, %s391
      %s393 = sphi 0, %s391
      %s394 = sphi 0, %s393
      %s408 = sphi 0, %s394
      %s412 = sphi 0, %s412
      %s414 = sphi 0, %s412
      %s415 = sphi 0, %s414
      %s429 = sphi 0, %s415
      %s435 = sphi 0, %s437
      %s438 = sphi 0, %s435
      %s439 = sphi 0, %s438
      %s455 = sphi 0, %s439
    $region4: #{tpu_custom_call.1} parent=1 // loop_header_branch
      %40 = sbr.rel (%p38) target = $region8
    $region5: #{tpu_custom_call.1} parent=1 // loop_body
      %s42 = ssub.s32 %s37, 1
      %s43 = ssub.s32 %s37, 2
      %s44 = sadd.s32 %s37, 1
      %s45 = ssub.s32 %s37, %s44
      %p46 = scmp.eq.s32.totalorder %s45, 0
      %s48 = sadd.s32 %s47, 1
      %s49 = scalar_select %p46, %s47, %s48
      %p52 = pneg %p46
      %p53 = scmp.eq.s32.totalorder %s37, 1
      %p54 = por %p52, %p53
      %p55 = scmp.ne.s32.totalorder %s47, %s50
      %p56 = scmp.eq.s32.totalorder %s37, 0
      %p57 = por %p55, %p56
      %p58 = scmp.ne.s32.totalorder %s47, %s50
      %p59 = scmp.eq.s32.totalorder %s42, 1
      %p60 = por %p58, %p59
      %p61 = scmp.ne.s32.totalorder %s50, %s51
      %p62 = scmp.eq.s32.totalorder %s42, 0
      %p63 = por %p61, %p62
      %p64 = scmp.ne.s32.totalorder %s50, %s51
      %p65 = scmp.eq.s32.totalorder %s43, 1
      %p66 = por %p64, %p65
      %p68 = scmp.ne.s32.totalorder %s51, %s67
      %p69 = scmp.eq.s32.totalorder %s43, 0
      %p70 = por %p68, %p69
      %s71 = ssub.s32 %s37, %s44
      %p72 = scmp.eq.s32.totalorder %s71, 0
      %s74 = sadd.s32 %s73, 1
      %s75 = scalar_select %p72, %s73, %s74
      %p78 = pneg %p72
      %p79 = scmp.eq.s32.totalorder %s37, 1
      %p80 = por %p78, %p79
      %p81 = scmp.ne.s32.totalorder %s73, %s76
      %p82 = scmp.eq.s32.totalorder %s37, 0
      %p83 = por %p81, %p82
      %p84 = scmp.ne.s32.totalorder %s73, %s76
      %p85 = scmp.eq.s32.totalorder %s42, 1
      %p86 = por %p84, %p85
      %p87 = scmp.ne.s32.totalorder %s76, %s77
      %p88 = scmp.eq.s32.totalorder %s42, 0
      %p89 = por %p87, %p88
      %p90 = scmp.ne.s32.totalorder %s76, %s77
      %p91 = scmp.eq.s32.totalorder %s43, 1
      %p92 = por %p90, %p91
      %p94 = scmp.ne.s32.totalorder %s77, %s93
      %p95 = scmp.eq.s32.totalorder %s43, 0
      %p96 = por %p94, %p95
      %s98 = sadd.s32 %s97, 1
      %p101 = scmp.eq.s32.totalorder %s37, 1
      %p102 = scmp.ne.s32.totalorder %s97, %s99
      %p103 = scmp.eq.s32.totalorder %s37, 0
      %p104 = por %p102, %p103
      %p105 = scmp.ne.s32.totalorder %s97, %s99
      %p106 = scmp.eq.s32.totalorder %s42, 1
      %p107 = por %p105, %p106
      %p108 = scmp.ne.s32.totalorder %s99, %s100
      %p109 = scmp.eq.s32.totalorder %s42, 0
      %p110 = por %p108, %p109
      %p111 = scmp.ne.s32.totalorder %s99, %s100
      %p112 = scmp.eq.s32.totalorder %s43, 1
      %p113 = por %p111, %p112
      %p115 = scmp.ne.s32.totalorder %s100, %s114
      %p116 = scmp.eq.s32.totalorder %s43, 0
      %p117 = por %p115, %p116
      %s119 = sadd.s32 %s118, 1
      %p122 = scmp.eq.s32.totalorder %s37, 1
      %p123 = scmp.ne.s32.totalorder %s118, %s120
      %p124 = scmp.eq.s32.totalorder %s37, 0
      %p125 = por %p123, %p124
      %p126 = scmp.ne.s32.totalorder %s118, %s120
      %p127 = scmp.eq.s32.totalorder %s42, 1
      %p128 = por %p126, %p127
      %p129 = scmp.ne.s32.totalorder %s120, %s121
      %p130 = scmp.eq.s32.totalorder %s42, 0
      %p131 = por %p129, %p130
      %p132 = scmp.ne.s32.totalorder %s120, %s121
      %p133 = scmp.eq.s32.totalorder %s43, 1
      %p134 = por %p132, %p133
      %p136 = scmp.ne.s32.totalorder %s121, %s135
      %p137 = scmp.eq.s32.totalorder %s43, 0
      %p138 = por %p136, %p137
      %s140 = sadd.s32 %s139, 1
      %p143 = scmp.eq.s32.totalorder %s37, 1
      %p144 = scmp.ne.s32.totalorder %s139, %s141
      %p145 = scmp.eq.s32.totalorder %s37, 0
      %p146 = por %p144, %p145
      %p147 = scmp.ne.s32.totalorder %s139, %s141
      %p148 = scmp.eq.s32.totalorder %s42, 1
      %p149 = por %p147, %p148
      %p150 = scmp.ne.s32.totalorder %s141, %s142
      %p151 = scmp.eq.s32.totalorder %s42, 0
      %p152 = por %p150, %p151
      %p153 = scmp.ne.s32.totalorder %s141, %s142
      %p154 = scmp.eq.s32.totalorder %s43, 1
      %p155 = por %p153, %p154
      %p157 = scmp.ne.s32.totalorder %s142, %s156
      %p158 = scmp.eq.s32.totalorder %s43, 0
      %p159 = por %p157, %p158
      %s161 = sadd.s32 %s160, 1
      %p164 = scmp.eq.s32.totalorder %s37, 1
      %p165 = scmp.ne.s32.totalorder %s160, %s162
      %p166 = scmp.eq.s32.totalorder %s37, 0
      %p167 = por %p165, %p166
      %p168 = scmp.ne.s32.totalorder %s160, %s162
      %p169 = scmp.eq.s32.totalorder %s42, 1
      %p170 = por %p168, %p169
      %p171 = scmp.ne.s32.totalorder %s162, %s163
      %p172 = scmp.eq.s32.totalorder %s42, 0
      %p173 = por %p171, %p172
      %p174 = scmp.ne.s32.totalorder %s162, %s163
      %p175 = scmp.eq.s32.totalorder %s43, 1
      %p176 = por %p174, %p175
      %p178 = scmp.ne.s32.totalorder %s163, %s177
      %p179 = scmp.eq.s32.totalorder %s43, 0
      %p180 = por %p178, %p179
      %s182 = sadd.s32 %s181, 1
      %p185 = scmp.eq.s32.totalorder %s37, 1
      %p186 = scmp.ne.s32.totalorder %s181, %s183
      %p187 = scmp.eq.s32.totalorder %s37, 0
      %p188 = por %p186, %p187
      %p189 = scmp.ne.s32.totalorder %s181, %s183
      %p190 = scmp.eq.s32.totalorder %s42, 1
      %p191 = por %p189, %p190
      %p192 = scmp.ne.s32.totalorder %s183, %s184
      %p193 = scmp.eq.s32.totalorder %s42, 0
      %p194 = por %p192, %p193
      %p195 = scmp.ne.s32.totalorder %s183, %s184
      %p196 = scmp.eq.s32.totalorder %s43, 1
      %p197 = por %p195, %p196
      %p199 = scmp.ne.s32.totalorder %s184, %s198
      %p200 = scmp.eq.s32.totalorder %s43, 0
      %p201 = por %p199, %p200
      %s203 = sadd.s32 %s202, 1
      %p206 = scmp.eq.s32.totalorder %s37, 1
      %p207 = scmp.ne.s32.totalorder %s202, %s204
      %p208 = scmp.eq.s32.totalorder %s37, 0
      %p209 = por %p207, %p208
      %p210 = scmp.ne.s32.totalorder %s202, %s204
      %p211 = scmp.eq.s32.totalorder %s42, 1
      %p212 = por %p210, %p211
      %p213 = scmp.ne.s32.totalorder %s204, %s205
      %p214 = scmp.eq.s32.totalorder %s42, 0
      %p215 = por %p213, %p214
      %p216 = scmp.ne.s32.totalorder %s204, %s205
      %p217 = scmp.eq.s32.totalorder %s43, 1
      %p218 = por %p216, %p217
      %p220 = scmp.ne.s32.totalorder %s205, %s219
      %p221 = scmp.eq.s32.totalorder %s43, 0
      %p222 = por %p220, %p221
      %s224 = sadd.s32 %s223, 1
      %p227 = scmp.eq.s32.totalorder %s37, 1
      %p228 = scmp.ne.s32.totalorder %s223, %s225
      %p229 = scmp.eq.s32.totalorder %s37, 0
      %p230 = por %p228, %p229
      %p231 = scmp.ne.s32.totalorder %s223, %s225
      %p232 = scmp.eq.s32.totalorder %s42, 1
      %p233 = por %p231, %p232
      %p234 = scmp.ne.s32.totalorder %s225, %s226
      %p235 = scmp.eq.s32.totalorder %s42, 0
      %p236 = por %p234, %p235
      %p237 = scmp.ne.s32.totalorder %s225, %s226
      %p238 = scmp.eq.s32.totalorder %s43, 1
      %p239 = por %p237, %p238
      %p241 = scmp.ne.s32.totalorder %s226, %s240
      %p242 = scmp.eq.s32.totalorder %s43, 0
      %p243 = por %p241, %p242
      %s245 = sadd.s32 %s244, 1
      %p248 = scmp.eq.s32.totalorder %s37, 1
      %p249 = scmp.ne.s32.totalorder %s244, %s246
      %p250 = scmp.eq.s32.totalorder %s37, 0
      %p251 = por %p249, %p250
      %p252 = scmp.ne.s32.totalorder %s244, %s246
      %p253 = scmp.eq.s32.totalorder %s42, 1
      %p254 = por %p252, %p253
      %p255 = scmp.ne.s32.totalorder %s246, %s247
      %p256 = scmp.eq.s32.totalorder %s42, 0
      %p257 = por %p255, %p256
      %p258 = scmp.ne.s32.totalorder %s246, %s247
      %p259 = scmp.eq.s32.totalorder %s43, 1
      %p260 = por %p258, %p259
      %p262 = scmp.ne.s32.totalorder %s247, %s261
      %p263 = scmp.eq.s32.totalorder %s43, 0
      %p264 = por %p262, %p263
      %s266 = sadd.s32 %s265, 1
      %p269 = scmp.eq.s32.totalorder %s37, 1
      %p270 = scmp.ne.s32.totalorder %s265, %s267
      %p271 = scmp.eq.s32.totalorder %s37, 0
      %p272 = por %p270, %p271
      %p273 = scmp.ne.s32.totalorder %s265, %s267
      %p274 = scmp.eq.s32.totalorder %s42, 1
      %p275 = por %p273, %p274
      %p276 = scmp.ne.s32.totalorder %s267, %s268
      %p277 = scmp.eq.s32.totalorder %s42, 0
      %p278 = por %p276, %p277
      %p279 = scmp.ne.s32.totalorder %s267, %s268
      %p280 = scmp.eq.s32.totalorder %s43, 1
      %p281 = por %p279, %p280
      %p283 = scmp.ne.s32.totalorder %s268, %s282
      %p284 = scmp.eq.s32.totalorder %s43, 0
      %p285 = por %p283, %p284
      %s287 = sadd.s32 %s286, 1
      %p290 = scmp.eq.s32.totalorder %s37, 1
      %p291 = scmp.ne.s32.totalorder %s286, %s288
      %p292 = scmp.eq.s32.totalorder %s37, 0
      %p293 = por %p291, %p292
      %p294 = scmp.ne.s32.totalorder %s286, %s288
      %p295 = scmp.eq.s32.totalorder %s42, 1
      %p296 = por %p294, %p295
      %p297 = scmp.ne.s32.totalorder %s288, %s289
      %p298 = scmp.eq.s32.totalorder %s42, 0
      %p299 = por %p297, %p298
      %p300 = scmp.ne.s32.totalorder %s288, %s289
      %p301 = scmp.eq.s32.totalorder %s43, 1
      %p302 = por %p300, %p301
      %p304 = scmp.ne.s32.totalorder %s289, %s303
      %p305 = scmp.eq.s32.totalorder %s43, 0
      %p306 = por %p304, %p305
      %s308 = sadd.s32 %s307, 1
      %p311 = scmp.eq.s32.totalorder %s37, 1
      %p312 = scmp.ne.s32.totalorder %s307, %s309
      %p313 = scmp.eq.s32.totalorder %s37, 0
      %p314 = por %p312, %p313
      %p315 = scmp.ne.s32.totalorder %s307, %s309
      %p316 = scmp.eq.s32.totalorder %s42, 1
      %p317 = por %p315, %p316
      %p318 = scmp.ne.s32.totalorder %s309, %s310
      %p319 = scmp.eq.s32.totalorder %s42, 0
      %p320 = por %p318, %p319
      %p321 = scmp.ne.s32.totalorder %s309, %s310
      %p322 = scmp.eq.s32.totalorder %s43, 1
      %p323 = por %p321, %p322
      %p325 = scmp.ne.s32.totalorder %s310, %s324
      %p326 = scmp.eq.s32.totalorder %s43, 0
      %p327 = por %p325, %p326
      %s329 = sadd.s32 %s328, 1
      %p332 = scmp.eq.s32.totalorder %s37, 1
      %p333 = scmp.ne.s32.totalorder %s328, %s330
      %p334 = scmp.eq.s32.totalorder %s37, 0
      %p335 = por %p333, %p334
      %p336 = scmp.ne.s32.totalorder %s328, %s330
      %p337 = scmp.eq.s32.totalorder %s42, 1
      %p338 = por %p336, %p337
      %p339 = scmp.ne.s32.totalorder %s330, %s331
      %p340 = scmp.eq.s32.totalorder %s42, 0
      %p341 = por %p339, %p340
      %p342 = scmp.ne.s32.totalorder %s330, %s331
      %p343 = scmp.eq.s32.totalorder %s43, 1
      %p344 = por %p342, %p343
      %p346 = scmp.ne.s32.totalorder %s331, %s345
      %p347 = scmp.eq.s32.totalorder %s43, 0
      %p348 = por %p346, %p347
      %s350 = sadd.s32 %s349, 1
      %p353 = scmp.eq.s32.totalorder %s37, 1
      %p354 = scmp.ne.s32.totalorder %s349, %s351
      %p355 = scmp.eq.s32.totalorder %s37, 0
      %p356 = por %p354, %p355
      %p357 = scmp.ne.s32.totalorder %s349, %s351
      %p358 = scmp.eq.s32.totalorder %s42, 1
      %p359 = por %p357, %p358
      %p360 = scmp.ne.s32.totalorder %s351, %s352
      %p361 = scmp.eq.s32.totalorder %s42, 0
      %p362 = por %p360, %p361
      %p363 = scmp.ne.s32.totalorder %s351, %s352
      %p364 = scmp.eq.s32.totalorder %s43, 1
      %p365 = por %p363, %p364
      %p367 = scmp.ne.s32.totalorder %s352, %s366
      %p368 = scmp.eq.s32.totalorder %s43, 0
      %p369 = por %p367, %p368
      %s371 = sadd.s32 %s370, 1
      %p374 = scmp.eq.s32.totalorder %s37, 1
      %p375 = scmp.ne.s32.totalorder %s370, %s372
      %p376 = scmp.eq.s32.totalorder %s37, 0
      %p377 = por %p375, %p376
      %p378 = scmp.ne.s32.totalorder %s370, %s372
      %p379 = scmp.eq.s32.totalorder %s42, 1
      %p380 = por %p378, %p379
      %p381 = scmp.ne.s32.totalorder %s372, %s373
      %p382 = scmp.eq.s32.totalorder %s42, 0
      %p383 = por %p381, %p382
      %p384 = scmp.ne.s32.totalorder %s372, %s373
      %p385 = scmp.eq.s32.totalorder %s43, 1
      %p386 = por %p384, %p385
      %p388 = scmp.ne.s32.totalorder %s373, %s387
      %p389 = scmp.eq.s32.totalorder %s43, 0
      %p390 = por %p388, %p389
      %s392 = sadd.s32 %s391, 1
      %p395 = scmp.eq.s32.totalorder %s37, 1
      %p396 = scmp.ne.s32.totalorder %s391, %s393
      %p397 = scmp.eq.s32.totalorder %s37, 0
      %p398 = por %p396, %p397
      %p399 = scmp.ne.s32.totalorder %s391, %s393
      %p400 = scmp.eq.s32.totalorder %s42, 1
      %p401 = por %p399, %p400
      %p402 = scmp.ne.s32.totalorder %s393, %s394
      %p403 = scmp.eq.s32.totalorder %s42, 0
      %p404 = por %p402, %p403
      %p405 = scmp.ne.s32.totalorder %s393, %s394
      %p406 = scmp.eq.s32.totalorder %s43, 1
      %p407 = por %p405, %p406
      %p409 = scmp.ne.s32.totalorder %s394, %s408
      %p410 = scmp.eq.s32.totalorder %s43, 0
      %p411 = por %p409, %p410
      %s413 = sadd.s32 %s412, 1
      %p416 = scmp.eq.s32.totalorder %s37, 1
      %p417 = scmp.ne.s32.totalorder %s412, %s414
      %p418 = scmp.eq.s32.totalorder %s37, 0
      %p419 = por %p417, %p418
      %p420 = scmp.ne.s32.totalorder %s412, %s414
      %p421 = scmp.eq.s32.totalorder %s42, 1
      %p422 = por %p420, %p421
      %p423 = scmp.ne.s32.totalorder %s414, %s415
      %p424 = scmp.eq.s32.totalorder %s42, 0
      %p425 = por %p423, %p424
      %p426 = scmp.ne.s32.totalorder %s414, %s415
      %p427 = scmp.eq.s32.totalorder %s43, 1
      %p428 = por %p426, %p427
      %p430 = scmp.ne.s32.totalorder %s415, %s429
      %p431 = scmp.eq.s32.totalorder %s43, 0
      %p432 = por %p430, %p431
      %s433 = ssub.s32 %s37, %s44
      %p434 = scmp.eq.s32.totalorder %s433, 0
      %s436 = sadd.s32 %s435, 1
      %s437 = scalar_select %p434, %s435, %s436
      %p440 = pneg %p434
      %p441 = scmp.eq.s32.totalorder %s37, 1
      %p442 = por %p440, %p441
      %p443 = scmp.ne.s32.totalorder %s435, %s438
      %p444 = scmp.eq.s32.totalorder %s37, 0
      %p445 = por %p443, %p444
      %p446 = scmp.ne.s32.totalorder %s435, %s438
      %p447 = scmp.eq.s32.totalorder %s42, 1
      %p448 = por %p446, %p447
      %p449 = scmp.ne.s32.totalorder %s438, %s439
      %p450 = scmp.eq.s32.totalorder %s42, 0
      %p451 = por %p449, %p450
      %p452 = scmp.ne.s32.totalorder %s438, %s439
      %p453 = scmp.eq.s32.totalorder %s43, 1
      %p454 = por %p452, %p453
      %p456 = scmp.ne.s32.totalorder %s439, %s455
      %p457 = scmp.eq.s32.totalorder %s43, 0
      %p458 = por %p456, %p457
      %p459 = scmp.le.s32.totalorder 1, %s37
      %p460 = scmp.lt.s32.totalorder %s37, 3
      %p461 = pnand %p459, %p460
      %p462 = pneg %p461
      // Predicated region
      $region9: #{tpu_custom_call.1} parent=5 // pred_check
        _
      $region10: #{tpu_custom_call.1} parent=5 // pred_check_branch
        %464 = sbr.rel (%p461) target = $region12
      $region11: #{tpu_custom_call.1} parent=5 // pred_region
        %s465 = ssub.s32 %s37, 1
        // Predicated region
        $region13: #{tpu_custom_call.1} parent=11 // pred_check
          %p466 = pneg %p110
        $region14: #{tpu_custom_call.1} parent=11 // pred_check_branch
          %468 = sbr.rel (%p466) target = $region16
        $region15: #{tpu_custom_call.1} parent=11 // pred_region
          %s470 = ssub.s32 2048, 2048
          %471 = vsyncadd [#allocation6], %s470
          %s472 = sshll.u32 [#allocation7], 4
          %s473 = int_to_ptr.vmem [resolvable:$true] %s472
          %478 = dma.hbm_to_vmem [thread:$0]  %s2, 2048, %s473, [#allocation6], 64, 64, 4
        $region16: #{tpu_custom_call.1} parent=11 // pred_fallthru
          _
        // Predicated region
        $region17: #{tpu_custom_call.1} parent=11 // pred_check
          %p479 = pneg %p131
        $region18: #{tpu_custom_call.1} parent=11 // pred_check_branch
          %481 = sbr.rel (%p479) target = $region20
        $region19: #{tpu_custom_call.1} parent=11 // pred_region
          %s483 = ssub.s32 32, 32
          %484 = vsyncadd [#allocation9], %s483
          %s485 = sshll.u32 [#allocation8], 4
          %s486 = int_to_ptr.vmem [resolvable:$true] %s485
          %491 = dma.hbm_to_vmem [thread:$0]  %s3, 32, %s486, [#allocation9], 16, 16, 1
        $region20: #{tpu_custom_call.1} parent=11 // pred_fallthru
          _
        // Predicated region
        $region21: #{tpu_custom_call.1} parent=11 // pred_check
          %p492 = pneg %p152
        $region22: #{tpu_custom_call.1} parent=11 // pred_check_branch
          %494 = sbr.rel (%p492) target = $region24
        $region23: #{tpu_custom_call.1} parent=11 // pred_region
          %s496 = ssub.s32 2048, 2048
          %497 = vsyncadd [#allocation9], %s496
          %s498 = sshll.u32 [#allocation10], 4
          %s499 = int_to_ptr.vmem [resolvable:$true] %s498
          %504 = dma.hbm_to_vmem [thread:$0]  %s4, 2048, %s499, [#allocation9], 64, 64, 4
        $region24: #{tpu_custom_call.1} parent=11 // pred_fallthru
          _
        // Predicated region
        $region25: #{tpu_custom_call.1} parent=11 // pred_check
          %p505 = pneg %p173
        $region26: #{tpu_custom_call.1} parent=11 // pred_check_branch
          %507 = sbr.rel (%p505) target = $region28
        $region27: #{tpu_custom_call.1} parent=11 // pred_region
          %s509 = ssub.s32 32, 32
          %510 = vsyncadd [#allocation12], %s509
          %s511 = sshll.u32 [#allocation11], 4
          %s512 = int_to_ptr.vmem [resolvable:$true] %s511
          %517 = dma.hbm_to_vmem [thread:$0]  %s5, 32, %s512, [#allocation12], 16, 16, 1
        $region28: #{tpu_custom_call.1} parent=11 // pred_fallthru
          _
        // Predicated region
        $region29: #{tpu_custom_call.1} parent=11 // pred_check
          %p518 = pneg %p194
        $region30: #{tpu_custom_call.1} parent=11 // pred_check_branch
          %520 = sbr.rel (%p518) target = $region32
        $region31: #{tpu_custom_call.1} parent=11 // pred_region
          %s522 = ssub.s32 2048, 2048
          %523 = vsyncadd [#allocation12], %s522
          %s524 = sshll.u32 [#allocation13], 4
          %s525 = int_to_ptr.vmem [resolvable:$true] %s524
          %530 = dma.hbm_to_vmem [thread:$0]  %s6, 2048, %s525, [#allocation12], 64, 64, 4
        $region32: #{tpu_custom_call.1} parent=11 // pred_fallthru
          _
        // Predicated region
        $region33: #{tpu_custom_call.1} parent=11 // pred_check
          %p531 = pneg %p215
        $region34: #{tpu_custom_call.1} parent=11 // pred_check_branch
          %533 = sbr.rel (%p531) target = $region36
        $region35: #{tpu_custom_call.1} parent=11 // pred_region
          _
        $region36: #{tpu_custom_call.1} parent=11 // pred_fallthru
          _
        // Predicated region
        $region37: #{tpu_custom_call.1} parent=11 // pred_check
          %p534 = pneg %p236
        $region38: #{tpu_custom_call.1} parent=11 // pred_check_branch
          %536 = sbr.rel (%p534) target = $region40
        $region39: #{tpu_custom_call.1} parent=11 // pred_region
          %s538 = ssub.s32 2048, 2048
          %539 = vsyncadd [#allocation15], %s538
          %s540 = sshll.u32 [#allocation14], 4
          %s541 = int_to_ptr.vmem [resolvable:$true] %s540
          %546 = dma.hbm_to_vmem [thread:$0]  %s8, 2048, %s541, [#allocation15], 64, 64, 4
        $region40: #{tpu_custom_call.1} parent=11 // pred_fallthru
          _
        // Predicated region
        $region41: #{tpu_custom_call.1} parent=11 // pred_check
          %p547 = pneg %p257
        $region42: #{tpu_custom_call.1} parent=11 // pred_check_branch
          %549 = sbr.rel (%p547) target = $region44
        $region43: #{tpu_custom_call.1} parent=11 // pred_region
          _
        $region44: #{tpu_custom_call.1} parent=11 // pred_fallthru
          _
        // Predicated region
        $region45: #{tpu_custom_call.1} parent=11 // pred_check
          %p550 = pneg %p278
        $region46: #{tpu_custom_call.1} parent=11 // pred_check_branch
          %552 = sbr.rel (%p550) target = $region48
        $region47: #{tpu_custom_call.1} parent=11 // pred_region
          %s554 = ssub.s32 2048, 2048
          %555 = vsyncadd [#allocation15], %s554
          %s556 = sshll.u32 [#allocation16], 4
          %s557 = int_to_ptr.vmem [resolvable:$true] %s556
          %562 = dma.hbm_to_vmem [thread:$0]  %s10, 2048, %s557, [#allocation15], 64, 64, 4
        $region48: #{tpu_custom_call.1} parent=11 // pred_fallthru
          _
        // Predicated region
        $region49: #{tpu_custom_call.1} parent=11 // pred_check
          %p563 = pneg %p299
        $region50: #{tpu_custom_call.1} parent=11 // pred_check_branch
          %565 = sbr.rel (%p563) target = $region52
        $region51: #{tpu_custom_call.1} parent=11 // pred_region
          _
        $region52: #{tpu_custom_call.1} parent=11 // pred_fallthru
          _
        // Predicated region
        $region53: #{tpu_custom_call.1} parent=11 // pred_check
          %p566 = pneg %p320
        $region54: #{tpu_custom_call.1} parent=11 // pred_check_branch
          %568 = sbr.rel (%p566) target = $region56
        $region55: #{tpu_custom_call.1} parent=11 // pred_region
          %s570 = ssub.s32 2048, 2048
          %571 = vsyncadd [#allocation18], %s570
          %s572 = sshll.u32 [#allocation17], 4
          %s573 = int_to_ptr.vmem [resolvable:$true] %s572
          %578 = dma.hbm_to_vmem [thread:$0]  %s12, 2048, %s573, [#allocation18], 64, 64, 4
        $region56: #{tpu_custom_call.1} parent=11 // pred_fallthru
          _
        // Predicated region
        $region57: #{tpu_custom_call.1} parent=11 // pred_check
          %p579 = pneg %p341
        $region58: #{tpu_custom_call.1} parent=11 // pred_check_branch
          %581 = sbr.rel (%p579) target = $region60
        $region59: #{tpu_custom_call.1} parent=11 // pred_region
          _
        $region60: #{tpu_custom_call.1} parent=11 // pred_fallthru
          _
        // Predicated region
        $region61: #{tpu_custom_call.1} parent=11 // pred_check
          %p582 = pneg %p362
        $region62: #{tpu_custom_call.1} parent=11 // pred_check_branch
          %584 = sbr.rel (%p582) target = $region64
        $region63: #{tpu_custom_call.1} parent=11 // pred_region
          _
        $region64: #{tpu_custom_call.1} parent=11 // pred_fallthru
          _
        // Predicated region
        $region65: #{tpu_custom_call.1} parent=11 // pred_check
          %p585 = pneg %p383
        $region66: #{tpu_custom_call.1} parent=11 // pred_check_branch
          %587 = sbr.rel (%p585) target = $region68
        $region67: #{tpu_custom_call.1} parent=11 // pred_region
          _
        $region68: #{tpu_custom_call.1} parent=11 // pred_fallthru
          _
        // Predicated region
        $region69: #{tpu_custom_call.1} parent=11 // pred_check
          %p588 = pneg %p404
        $region70: #{tpu_custom_call.1} parent=11 // pred_check_branch
          %590 = sbr.rel (%p588) target = $region72
        $region71: #{tpu_custom_call.1} parent=11 // pred_region
          _
        $region72: #{tpu_custom_call.1} parent=11 // pred_fallthru
          _
        // Predicated region
        $region73: #{tpu_custom_call.1} parent=11 // pred_check
          %p591 = pneg %p425
        $region74: #{tpu_custom_call.1} parent=11 // pred_check_branch
          %593 = sbr.rel (%p591) target = $region76
        $region75: #{tpu_custom_call.1} parent=11 // pred_region
          _
        $region76: #{tpu_custom_call.1} parent=11 // pred_fallthru
          _
      $region12: #{tpu_custom_call.1} parent=5 // pred_fallthru
        _
      %p594 = scmp.lt.s32.totalorder %s37, 2
      // Predicated region
      $region77: #{tpu_custom_call.1} parent=5 // pred_check
        %p595 = pneg %p594
      $region78: #{tpu_custom_call.1} parent=5 // pred_check_branch
        %597 = sbr.rel (%p595) target = $region80
      $region79: #{tpu_custom_call.1} parent=5 // pred_region
        // Predicated region
        $region81: #{tpu_custom_call.1} parent=79 // pred_check
          %p598 = pneg %p57
        $region82: #{tpu_custom_call.1} parent=79 // pred_check_branch
          %600 = sbr.rel (%p598) target = $region84
        $region83: #{tpu_custom_call.1} parent=79 // pred_region
          %s601 = sand.u32 %s47, 1
          %s602 = scalar_lea.sflag [#allocation3], %s601
          %s603 = sand.u32 %s47, 1
          %s604 = smul.addr %s603, 32
          %s605 = scalar_lea.vmem [#allocation2], %s604
          %s606 = smul.u32 4, %s37
          %s608 = ssub.s32 512, 512
          %609 = vsyncadd %s602, %s608
          %s610 = smul.addr %s606, 128
          %s611 = scalar_lea.hbm %s0, %s610
          %s612 = sshll.u32 %s605, 4
          %s613 = int_to_ptr.vmem [resolvable:$true] %s612
          %618 = dma.hbm_to_vmem [thread:$0]  %s611, 512, %s613, %s602, 128, 128, 8
        $region84: #{tpu_custom_call.1} parent=79 // pred_fallthru
          _
        // Predicated region
        $region85: #{tpu_custom_call.1} parent=79 // pred_check
          %p619 = pneg %p83
        $region86: #{tpu_custom_call.1} parent=79 // pred_check_branch
          %621 = sbr.rel (%p619) target = $region88
        $region87: #{tpu_custom_call.1} parent=79 // pred_region
          %s622 = sand.u32 %s37, 1
          %s623 = scalar_lea.sflag [#allocation6], %s622
          %s624 = sand.u32 %s73, 1
          %s625 = smul.addr %s624, 32
          %s626 = scalar_lea.vmem [#allocation5], %s625
          %s627 = smul.u32 4, %s37
          %s629 = ssub.s32 512, 512
          %630 = vsyncadd %s623, %s629
          %s631 = smul.addr %s627, 128
          %s632 = scalar_lea.hbm %s1, %s631
          %s633 = sshll.u32 %s626, 4
          %s634 = int_to_ptr.vmem [resolvable:$true] %s633
          %639 = dma.hbm_to_vmem [thread:$0]  %s632, 512, %s634, %s623, 128, 128, 8
        $region88: #{tpu_custom_call.1} parent=79 // pred_fallthru
          _
      $region80: #{tpu_custom_call.1} parent=5 // pred_fallthru
        _
      %p640 = scmp.le.s32.totalorder 1, %s37
      %p641 = scmp.lt.s32.totalorder %s37, 3
      %p642 = pnand %p640, %p641
      %p643 = pneg %p642
      // Predicated region
      $region89: #{tpu_custom_call.1} parent=5 // pred_check
        _
      $region90: #{tpu_custom_call.1} parent=5 // pred_check_branch
        %645 = sbr.rel (%p642) target = $region92
      $region91: #{tpu_custom_call.1} parent=5 // pred_region
        %s646 = ssub.s32 %s37, 1
        %s647 = sand.u32 %s50, 1
        %s648 = scalar_lea.sflag [#allocation3], %s647
        %s649 = sand.u32 %s50, 1
        %s650 = smul.addr %s649, 32
        %s651 = scalar_lea.vmem [#allocation2], %s650
        // Predicated region
        $region93: #{tpu_custom_call.1} parent=91 // pred_check
          %p652 = pneg %p63
        $region94: #{tpu_custom_call.1} parent=91 // pred_check_branch
          %654 = sbr.rel (%p652) target = $region96
        $region95: #{tpu_custom_call.1} parent=91 // pred_region
          %655 = dma.done %s648, 512
        $region96: #{tpu_custom_call.1} parent=91 // pred_fallthru
          _
        %s656 = sand.u32 %s42, 1
        %s657 = scalar_lea.sflag [#allocation6], %s656
        %s658 = sand.u32 %s76, 1
        %s659 = smul.addr %s658, 32
        %s660 = scalar_lea.vmem [#allocation5], %s659
        // Predicated region
        $region97: #{tpu_custom_call.1} parent=91 // pred_check
          %p661 = pneg %p89
        $region98: #{tpu_custom_call.1} parent=91 // pred_check_branch
          %663 = sbr.rel (%p661) target = $region100
        $region99: #{tpu_custom_call.1} parent=91 // pred_region
          %664 = dma.done %s657, 512
        $region100: #{tpu_custom_call.1} parent=91 // pred_fallthru
          _
        // Predicated region
        $region101: #{tpu_custom_call.1} parent=91 // pred_check
          %p665 = pneg %p110
        $region102: #{tpu_custom_call.1} parent=91 // pred_check_branch
          %667 = sbr.rel (%p665) target = $region104
        $region103: #{tpu_custom_call.1} parent=91 // pred_region
          %668 = dma.done [#allocation6], 2048
        $region104: #{tpu_custom_call.1} parent=91 // pred_fallthru
          _
        // Predicated region
        $region105: #{tpu_custom_call.1} parent=91 // pred_check
          %p669 = pneg %p131
        $region106: #{tpu_custom_call.1} parent=91 // pred_check_branch
          %671 = sbr.rel (%p669) target = $region108
        $region107: #{tpu_custom_call.1} parent=91 // pred_region
          %672 = dma.done [#allocation9], 32
        $region108: #{tpu_custom_call.1} parent=91 // pred_fallthru
          _
        // Predicated region
        $region109: #{tpu_custom_call.1} parent=91 // pred_check
          %p673 = pneg %p152
        $region110: #{tpu_custom_call.1} parent=91 // pred_check_branch
          %675 = sbr.rel (%p673) target = $region112
        $region111: #{tpu_custom_call.1} parent=91 // pred_region
          %676 = dma.done [#allocation9], 2048
        $region112: #{tpu_custom_call.1} parent=91 // pred_fallthru
          _
        // Predicated region
        $region113: #{tpu_custom_call.1} parent=91 // pred_check
          %p677 = pneg %p173
        $region114: #{tpu_custom_call.1} parent=91 // pred_check_branch
          %679 = sbr.rel (%p677) target = $region116
        $region115: #{tpu_custom_call.1} parent=91 // pred_region
          %680 = dma.done [#allocation12], 32
        $region116: #{tpu_custom_call.1} parent=91 // pred_fallthru
          _
        // Predicated region
        $region117: #{tpu_custom_call.1} parent=91 // pred_check
          %p681 = pneg %p194
        $region118: #{tpu_custom_call.1} parent=91 // pred_check_branch
          %683 = sbr.rel (%p681) target = $region120
        $region119: #{tpu_custom_call.1} parent=91 // pred_region
          %684 = dma.done [#allocation12], 2048
        $region120: #{tpu_custom_call.1} parent=91 // pred_fallthru
          _
        // Predicated region
        $region121: #{tpu_custom_call.1} parent=91 // pred_check
          %p685 = pneg %p236
        $region122: #{tpu_custom_call.1} parent=91 // pred_check_branch
          %687 = sbr.rel (%p685) target = $region124
        $region123: #{tpu_custom_call.1} parent=91 // pred_region
          %688 = dma.done [#allocation15], 2048
        $region124: #{tpu_custom_call.1} parent=91 // pred_fallthru
          _
        // Predicated region
        $region125: #{tpu_custom_call.1} parent=91 // pred_check
          %p689 = pneg %p278
        $region126: #{tpu_custom_call.1} parent=91 // pred_check_branch
          %691 = sbr.rel (%p689) target = $region128
        $region127: #{tpu_custom_call.1} parent=91 // pred_region
          %692 = dma.done [#allocation15], 2048
        $region128: #{tpu_custom_call.1} parent=91 // pred_fallthru
          _
        // Predicated region
        $region129: #{tpu_custom_call.1} parent=91 // pred_check
          %p693 = pneg %p320
        $region130: #{tpu_custom_call.1} parent=91 // pred_check_branch
          %695 = sbr.rel (%p693) target = $region132
        $region131: #{tpu_custom_call.1} parent=91 // pred_region
          %696 = dma.done [#allocation18], 2048
        $region132: #{tpu_custom_call.1} parent=91 // pred_fallthru
          _
        %s697 = sand.u32 %s50, 1
        %s698 = scalar_lea.sflag [#allocation3], %s697
        %s699 = sand.u32 %s50, 1
        %s700 = smul.addr %s699, 32
        %s701 = scalar_lea.vmem [#allocation2], %s700
        %p702 = pneg %p63
        %p703 = pneg %p60
        %s704 = sand.u32 %s42, 1
        %s705 = scalar_lea.sflag [#allocation6], %s704
        %s706 = sand.u32 %s76, 1
        %s707 = smul.addr %s706, 32
        %s708 = scalar_lea.vmem [#allocation5], %s707
        %p709 = pneg %p89
        %p710 = pneg %p86
        %p711 = pneg %p110
        %p712 = pneg %p107
        %p713 = pneg %p131
        %p714 = pneg %p128
        %p715 = pneg %p152
        %p716 = pneg %p149
        %p717 = pneg %p173
        %p718 = pneg %p170
        %p719 = pneg %p194
        %p720 = pneg %p191
        %p721 = pneg %p215
        %p722 = pneg %p212
        %p723 = pneg %p236
        %p724 = pneg %p233
        %p725 = pneg %p257
        %p726 = pneg %p254
        %p727 = pneg %p278
        %p728 = pneg %p275
        %p729 = pneg %p299
        %p730 = pneg %p296
        %p731 = pneg %p320
        %p732 = pneg %p317
        %p733 = pneg %p341
        %p734 = pneg %p338
        %p735 = pneg %p362
        %p736 = pneg %p359
        %p737 = pneg %p383
        %p738 = pneg %p380
        %p739 = pneg %p404
        %p740 = pneg %p401
        %p741 = pneg %p425
        %p742 = pneg %p422
        %p743 = pneg %p451
        %p744 = pneg %p448
        %s745 = sand.u32 %s438, 1
        %s746 = scalar_lea.sflag [#allocation4], %s745
        %s747 = sand.u32 %s438, 1
        %s748 = smul.addr %s747, 32
        %s749 = scalar_lea.vmem [#allocation19], %s748
        %s750 = smul.u32 4, %s42
        %s751 = smul.u32 4, %s42
        %s752 = smul.u32 4, %s42
        %v754 = vlaneseq
        %v755 = vand.u32 %v754, 127
        %vm756 = vcmp.lt.s32.totalorder %v755, 32
        %v757 = vld [vmem:[%s651] sm:$0xff]
        %v758 = vld [vmem:[%s651 + $0x8] sm:$0xff]
        %v759 = vld [vmem:[%s651 + $0x10] sm:$0xff]
        %v760 = vld [vmem:[%s651 + $0x18] sm:$0xff]
        %v761 = vld [vmem:[%s660] sm:$0xff]
        %v762 = vld [vmem:[%s660 + $0x8] sm:$0xff]
        %v763 = vld [vmem:[%s660 + $0x10] sm:$0xff]
        %v764 = vld [vmem:[%s660 + $0x18] sm:$0xff]
        %v765 = vld [vmem:[%s14] sm:$0x3]
        %v766 = vld [vmem:[%s15] sm:$0x3]
        %767 = vadd.xlane.f32.xlu0 %v757
        %v768 = vpop.xlane.xlu0 %767
        %769 = vadd.xlane.f32.xlu0 %v758
        %v770 = vpop.xlane.xlu0 %769
        %771 = vadd.xlane.f32.xlu0 %v759
        %v772 = vpop.xlane.xlu0 %771
        %773 = vadd.xlane.f32.xlu0 %v760
        %v774 = vpop.xlane.xlu0 %773
        %v775 = vmul.f32 %v768, 0.03125
        %v776 = vmul.f32 %v770, 0.03125
        %v777 = vmul.f32 %v772, 0.03125
        %v778 = vmul.f32 %v774, 0.03125
        %v779 = vsub.f32 %v757, %v775
        %v780 = vsub.f32 %v758, %v776
        %v781 = vsub.f32 %v759, %v777
        %v782 = vsub.f32 %v760, %v778
        %v783 = vsel %vm756, 1, 0
        %vm784 = vcmp.eq.s32.totalorder %v783, 1
        %v785 = vsel %vm784, %v779, 0.0
        %v786 = vsel %vm784, %v780, 0.0
        %v787 = vsel %vm784, %v781, 0.0
        %v788 = vsel %vm784, %v782, 0.0
        %v789 = vmul.f32 %v785, %v785
        %v790 = vmul.f32 %v786, %v786
        %v791 = vmul.f32 %v787, %v787
        %v792 = vmul.f32 %v788, %v788
        %793 = vadd.xlane.f32.xlu0 %v789
        %v794 = vpop.xlane.xlu0 %793
        %795 = vadd.xlane.f32.xlu0 %v790
        %v796 = vpop.xlane.xlu0 %795
        %797 = vadd.xlane.f32.xlu0 %v791
        %v798 = vpop.xlane.xlu0 %797
        %799 = vadd.xlane.f32.xlu0 %v792
        %v800 = vpop.xlane.xlu0 %799
        %v801 = vmul.f32 %v794, 0.03125
        %v802 = vmul.f32 %v796, 0.03125
        %v803 = vmul.f32 %v798, 0.03125
        %v804 = vmul.f32 %v800, 0.03125
        %v805 = vadd.f32 %v801, 1e-05
        %v806 = vadd.f32 %v802, 1e-05
        %v807 = vadd.f32 %v803, 1e-05
        %v808 = vadd.f32 %v804, 1e-05
        %v809 = vrsqrt.pop %v805
        %v810 = vrsqrt.pop %v806
        %v811 = vrsqrt.pop %v807
        %v812 = vrsqrt.pop %v808
        %v813 = vmul.f32 %v785, %v809
        %v814 = vmul.f32 %v786, %v810
        %v815 = vmul.f32 %v787, %v811
        %v816 = vmul.f32 %v788, %v812
        %v817 = vlaneseq
        %v818 = vshrl.u32 %v817, 7
        %v819 = vsub.s32 0, %v818
        %v820 = vrot.slane %v765, %v819
        %v821 = vmul.f32 %v813, %v820
        %v822 = vmul.f32 %v814, %v820
        %v823 = vmul.f32 %v815, %v820
        %v824 = vmul.f32 %v816, %v820
        %v825 = vlaneseq
        %v826 = vshrl.u32 %v825, 7
        %v827 = vsub.s32 0, %v826
        %v828 = vrot.slane %v766, %v827
        %v829 = vadd.f32 %v821, %v828
        %v830 = vadd.f32 %v822, %v828
        %v831 = vadd.f32 %v823, %v828
        %v832 = vadd.f32 %v824, %v828
        %v833 = vpack.c.bf16 %v830, %v829
        %v834 = vpack.c.bf16 %v832, %v831
        %v835 = vld [vmem:[#allocation7] sm:$0xf]
        %v836 = vld [vmem:[#allocation7 + $0x4] sm:$0xf]
        %v837 = vld [vmem:[#allocation7 + $0x8] sm:$0xf]
        %v838 = vld [vmem:[#allocation7 + $0xc] sm:$0xf]
        %v839 = vld [vmem:[#allocation7 + $0x10] sm:$0xf]
        %v840 = vld [vmem:[#allocation7 + $0x14] sm:$0xf]
        %v841 = vld [vmem:[#allocation7 + $0x18] sm:$0xf]
        %v842 = vld [vmem:[#allocation7 + $0x1c] sm:$0xf]
        %v843 = vld [vmem:[#allocation7 + $0x20] sm:$0xf]
        %v844 = vld [vmem:[#allocation7 + $0x24] sm:$0xf]
        %v845 = vld [vmem:[#allocation7 + $0x28] sm:$0xf]
        %v846 = vld [vmem:[#allocation7 + $0x2c] sm:$0xf]
        %v847 = vld [vmem:[#allocation7 + $0x30] sm:$0xf]
        %v848 = vld [vmem:[#allocation7 + $0x34] sm:$0xf]
        %v849 = vld [vmem:[#allocation7 + $0x38] sm:$0xf]
        %v850 = vld [vmem:[#allocation7 + $0x3c] sm:$0xf]
        %v851 = vld [vmem:[#allocation8] sm:$0x1]
        %v853 = vlaneseq
        %v854 = vshrl.u32 %v853, 7
        %v855 = vsub.s32 0, %v854
        %v856 = vrot.slane %v851, %v855
        %v874 = vunpack.c.l.b16 %v835
        %v875 = vunpack.c.l.b16 %v836
        %v876 = vunpack.c.l.b16 %v837
        %v877 = vunpack.c.l.b16 %v838
        %v878 = vunpack.c.l.b16 %v839
        %v879 = vunpack.c.l.b16 %v840
        %v880 = vunpack.c.l.b16 %v841
        %v881 = vunpack.c.l.b16 %v842
        %v882 = vunpack.c.l.b16 %v843
        %v883 = vunpack.c.l.b16 %v844
        %v884 = vunpack.c.l.b16 %v845
        %v885 = vunpack.c.l.b16 %v846
        %v886 = vunpack.c.l.b16 %v847
        %v887 = vunpack.c.l.b16 %v848
        %v888 = vunpack.c.l.b16 %v849
        %v889 = vunpack.c.l.b16 %v850
        %v890 = vpack.c.b16 %v875, %v874
        %v891 = vpack.c.b16 %v877, %v876
        %v892 = vpack.c.b16 %v879, %v878
        %v893 = vpack.c.b16 %v881, %v880
        %v894 = vpack.c.b16 %v883, %v882
        %v895 = vpack.c.b16 %v885, %v884
        %v896 = vpack.c.b16 %v887, %v886
        %v897 = vpack.c.b16 %v889, %v888
        %906 = vmatprep.subr.bf16.mxu0 0
        %907 = vmatpush1.bf16.msra.mxu0 %v897
        %908 = vmatprep.subr.bf16.mxu0 0
        %909 = vmatpush1.bf16.msra.mxu0 %v896
        %910 = vmatprep.subr.bf16.mxu0 0
        %911 = vmatpush1.bf16.msra.mxu0 %v895
        %912 = vmatprep.subr.bf16.mxu0 0
        %913 = vmatpush1.bf16.msra.mxu0 %v894
        %914 = vmatprep.subr.bf16.mxu0 0
        %915 = vmatpush1.bf16.msra.mxu0 %v893
        %916 = vmatprep.subr.bf16.mxu0 0
        %917 = vmatpush1.bf16.msra.mxu0 %v892
        %918 = vmatprep.subr.bf16.mxu0 0
        %919 = vmatpush1.bf16.msra.mxu0 %v891
        %920 = vmatprep.subr.bf16.mxu0 0
        %921 = vmatpush1.bf16.msra.mxu0 %v890
        %922 = vmatprep.subr.bf16.mxu0 0
        %923 = vmatpush2.bf16.msra.mxu0 0
        %924 = vmatprep.subr.bf16.mxu0 0
        %925 = vmatpush2.bf16.msra.mxu0 0
        %926 = vmatprep.subr.bf16.mxu0 0
        %927 = vmatpush2.bf16.msra.mxu0 0
        %928 = vmatprep.subr.bf16.mxu0 0
        %929 = vmatpush2.bf16.msra.mxu0 0
        %930 = vmatprep.subr.bf16.mxu0 0
        %931 = vmatpush2.bf16.msra.mxu0 0
        %932 = vmatprep.subr.bf16.mxu0 0
        %933 = vmatpush2.bf16.msra.mxu0 0
        %934 = vmatprep.subr.bf16.mxu0 0
        %935 = vmatpush2.bf16.msra.mxu0 0
        %936 = vmatprep.subr.bf16.mxu0 0
        %937 = vmatpush2.bf16.msra.mxu0 0
        %938 = vmatprep.mubr.bf16.mxu0 0
        %939 = vmatmul.mubr.bf16.gmra.mxu0 %v833
        %v940 = vpop.f32.mrf.mxu0
        %v941 = vadd.f32 %v856, %v940
        %v942 = vpop.f32.mrf.mxu0
        %v943 = vpop.f32.mrf.mxu0
        %v944 = vadd.f32 %v856, %v943
        %v945 = vpop.f32.mrf.mxu0
        %946 = vmatprep.mubr.bf16.mxu0 0
        %947 = vmatmul.mubr.bf16.gmra.mxu0 %v834
        %v948 = vpop.f32.mrf.mxu0
        %v949 = vadd.f32 %v856, %v948
        %v950 = vpop.f32.mrf.mxu0
        %v951 = vpop.f32.mrf.mxu0
        %v952 = vadd.f32 %v856, %v951
        %v953 = vpop.f32.mrf.mxu0
        %954 = vdwg.mxu0
        %v955 = vld [vmem:[#allocation10] sm:$0xf]
        %v956 = vld [vmem:[#allocation10 + $0x4] sm:$0xf]
        %v957 = vld [vmem:[#allocation10 + $0x8] sm:$0xf]
        %v958 = vld [vmem:[#allocation10 + $0xc] sm:$0xf]
        %v959 = vld [vmem:[#allocation10 + $0x10] sm:$0xf]
        %v960 = vld [vmem:[#allocation10 + $0x14] sm:$0xf]
        %v961 = vld [vmem:[#allocation10 + $0x18] sm:$0xf]
        %v962 = vld [vmem:[#allocation10 + $0x1c] sm:$0xf]
        %v963 = vld [vmem:[#allocation10 + $0x20] sm:$0xf]
        %v964 = vld [vmem:[#allocation10 + $0x24] sm:$0xf]
        %v965 = vld [vmem:[#allocation10 + $0x28] sm:$0xf]
        %v966 = vld [vmem:[#allocation10 + $0x2c] sm:$0xf]
        %v967 = vld [vmem:[#allocation10 + $0x30] sm:$0xf]
        %v968 = vld [vmem:[#allocation10 + $0x34] sm:$0xf]
        %v969 = vld [vmem:[#allocation10 + $0x38] sm:$0xf]
        %v970 = vld [vmem:[#allocation10 + $0x3c] sm:$0xf]
        %v971 = vld [vmem:[#allocation11] sm:$0x1]
        %v973 = vlaneseq
        %v974 = vshrl.u32 %v973, 7
        %v975 = vsub.s32 0, %v974
        %v976 = vrot.slane %v971, %v975
        %v994 = vunpack.c.l.b16 %v955
        %v995 = vunpack.c.l.b16 %v956
        %v996 = vunpack.c.l.b16 %v957
        %v997 = vunpack.c.l.b16 %v958
        %v998 = vunpack.c.l.b16 %v959
        %v999 = vunpack.c.l.b16 %v960
        %v1000 = vunpack.c.l.b16 %v961
        %v1001 = vunpack.c.l.b16 %v962
        %v1002 = vunpack.c.l.b16 %v963
        %v1003 = vunpack.c.l.b16 %v964
        %v1004 = vunpack.c.l.b16 %v965
        %v1005 = vunpack.c.l.b16 %v966
        %v1006 = vunpack.c.l.b16 %v967
        %v1007 = vunpack.c.l.b16 %v968
        %v1008 = vunpack.c.l.b16 %v969
        %v1009 = vunpack.c.l.b16 %v970
        %v1010 = vpack.c.b16 %v995, %v994
        %v1011 = vpack.c.b16 %v997, %v996
        %v1012 = vpack.c.b16 %v999, %v998
        %v1013 = vpack.c.b16 %v1001, %v1000
        %v1014 = vpack.c.b16 %v1003, %v1002
        %v1015 = vpack.c.b16 %v1005, %v1004
        %v1016 = vpack.c.b16 %v1007, %v1006
        %v1017 = vpack.c.b16 %v1009, %v1008
        %1026 = vmatprep.subr.bf16.mxu0 0
        %1027 = vmatpush1.bf16.msra.mxu0 %v1017
        %1028 = vmatprep.subr.bf16.mxu0 0
        %1029 = vmatpush1.bf16.msra.mxu0 %v1016
        %1030 = vmatprep.subr.bf16.mxu0 0
        %1031 = vmatpush1.bf16.msra.mxu0 %v1015
        %1032 = vmatprep.subr.bf16.mxu0 0
        %1033 = vmatpush1.bf16.msra.mxu0 %v1014
        %1034 = vmatprep.subr.bf16.mxu0 0
        %1035 = vmatpush1.bf16.msra.mxu0 %v1013
        %1036 = vmatprep.subr.bf16.mxu0 0
        %1037 = vmatpush1.bf16.msra.mxu0 %v1012
        %1038 = vmatprep.subr.bf16.mxu0 0
        %1039 = vmatpush1.bf16.msra.mxu0 %v1011
        %1040 = vmatprep.subr.bf16.mxu0 0
        %1041 = vmatpush1.bf16.msra.mxu0 %v1010
        %1042 = vmatprep.subr.bf16.mxu0 0
        %1043 = vmatpush2.bf16.msra.mxu0 0
        %1044 = vmatprep.subr.bf16.mxu0 0
        %1045 = vmatpush2.bf16.msra.mxu0 0
        %1046 = vmatprep.subr.bf16.mxu0 0
        %1047 = vmatpush2.bf16.msra.mxu0 0
        %1048 = vmatprep.subr.bf16.mxu0 0
        %1049 = vmatpush2.bf16.msra.mxu0 0
        %1050 = vmatprep.subr.bf16.mxu0 0
        %1051 = vmatpush2.bf16.msra.mxu0 0
        %1052 = vmatprep.subr.bf16.mxu0 0
        %1053 = vmatpush2.bf16.msra.mxu0 0
        %1054 = vmatprep.subr.bf16.mxu0 0
        %1055 = vmatpush2.bf16.msra.mxu0 0
        %1056 = vmatprep.subr.bf16.mxu0 0
        %1057 = vmatpush2.bf16.msra.mxu0 0
        %1058 = vmatprep.mubr.bf16.mxu0 0
        %1059 = vmatmul.mubr.bf16.gmra.mxu0 %v833
        %v1060 = vpop.f32.mrf.mxu0
        %v1061 = vadd.f32 %v976, %v1060
        %v1062 = vpop.f32.mrf.mxu0
        %v1063 = vpop.f32.mrf.mxu0
        %v1064 = vadd.f32 %v976, %v1063
        %v1065 = vpop.f32.mrf.mxu0
        %1066 = vmatprep.mubr.bf16.mxu0 0
        %1067 = vmatmul.mubr.bf16.gmra.mxu0 %v834
        %v1068 = vpop.f32.mrf.mxu0
        %v1069 = vadd.f32 %v976, %v1068
        %v1070 = vpop.f32.mrf.mxu0
        %v1071 = vpop.f32.mrf.mxu0
        %v1072 = vadd.f32 %v976, %v1071
        %v1073 = vpop.f32.mrf.mxu0
        %1074 = vdwg.mxu0
        %v1075 = vld [vmem:[#allocation13] sm:$0xf]
        %v1076 = vld [vmem:[#allocation13 + $0x4] sm:$0xf]
        %v1077 = vld [vmem:[#allocation13 + $0x8] sm:$0xf]
        %v1078 = vld [vmem:[#allocation13 + $0xc] sm:$0xf]
        %v1079 = vld [vmem:[#allocation13 + $0x10] sm:$0xf]
        %v1080 = vld [vmem:[#allocation13 + $0x14] sm:$0xf]
        %v1081 = vld [vmem:[#allocation13 + $0x18] sm:$0xf]
        %v1082 = vld [vmem:[#allocation13 + $0x1c] sm:$0xf]
        %v1083 = vld [vmem:[#allocation13 + $0x20] sm:$0xf]
        %v1084 = vld [vmem:[#allocation13 + $0x24] sm:$0xf]
        %v1085 = vld [vmem:[#allocation13 + $0x28] sm:$0xf]
        %v1086 = vld [vmem:[#allocation13 + $0x2c] sm:$0xf]
        %v1087 = vld [vmem:[#allocation13 + $0x30] sm:$0xf]
        %v1088 = vld [vmem:[#allocation13 + $0x34] sm:$0xf]
        %v1089 = vld [vmem:[#allocation13 + $0x38] sm:$0xf]
        %v1090 = vld [vmem:[#allocation13 + $0x3c] sm:$0xf]
        %v1091 = vld [vmem:[%s7] sm:$0x1]
        %v1093 = vlaneseq
        %v1094 = vshrl.u32 %v1093, 7
        %v1095 = vsub.s32 0, %v1094
        %v1096 = vrot.slane %v1091, %v1095
        %v1114 = vunpack.c.l.b16 %v1075
        %v1115 = vunpack.c.l.b16 %v1076
        %v1116 = vunpack.c.l.b16 %v1077
        %v1117 = vunpack.c.l.b16 %v1078
        %v1118 = vunpack.c.l.b16 %v1079
        %v1119 = vunpack.c.l.b16 %v1080
        %v1120 = vunpack.c.l.b16 %v1081
        %v1121 = vunpack.c.l.b16 %v1082
        %v1122 = vunpack.c.l.b16 %v1083
        %v1123 = vunpack.c.l.b16 %v1084
        %v1124 = vunpack.c.l.b16 %v1085
        %v1125 = vunpack.c.l.b16 %v1086
        %v1126 = vunpack.c.l.b16 %v1087
        %v1127 = vunpack.c.l.b16 %v1088
        %v1128 = vunpack.c.l.b16 %v1089
        %v1129 = vunpack.c.l.b16 %v1090
        %v1130 = vpack.c.b16 %v1115, %v1114
        %v1131 = vpack.c.b16 %v1117, %v1116
        %v1132 = vpack.c.b16 %v1119, %v1118
        %v1133 = vpack.c.b16 %v1121, %v1120
        %v1134 = vpack.c.b16 %v1123, %v1122
        %v1135 = vpack.c.b16 %v1125, %v1124
        %v1136 = vpack.c.b16 %v1127, %v1126
        %v1137 = vpack.c.b16 %v1129, %v1128
        %1146 = vmatprep.subr.bf16.mxu0 0
        %1147 = vmatpush1.bf16.msra.mxu0 %v1137
        %1148 = vmatprep.subr.bf16.mxu0 0
        %1149 = vmatpush1.bf16.msra.mxu0 %v1136
        %1150 = vmatprep.subr.bf16.mxu0 0
        %1151 = vmatpush1.bf16.msra.mxu0 %v1135
        %1152 = vmatprep.subr.bf16.mxu0 0
        %1153 = vmatpush1.bf16.msra.mxu0 %v1134
        %1154 = vmatprep.subr.bf16.mxu0 0
        %1155 = vmatpush1.bf16.msra.mxu0 %v1133
        %1156 = vmatprep.subr.bf16.mxu0 0
        %1157 = vmatpush1.bf16.msra.mxu0 %v1132
        %1158 = vmatprep.subr.bf16.mxu0 0
        %1159 = vmatpush1.bf16.msra.mxu0 %v1131
        %1160 = vmatprep.subr.bf16.mxu0 0
        %1161 = vmatpush1.bf16.msra.mxu0 %v1130
        %1162 = vmatprep.subr.bf16.mxu0 0
        %1163 = vmatpush2.bf16.msra.mxu0 0
        %1164 = vmatprep.subr.bf16.mxu0 0
        %1165 = vmatpush2.bf16.msra.mxu0 0
        %1166 = vmatprep.subr.bf16.mxu0 0
        %1167 = vmatpush2.bf16.msra.mxu0 0
        %1168 = vmatprep.subr.bf16.mxu0 0
        %1169 = vmatpush2.bf16.msra.mxu0 0
        %1170 = vmatprep.subr.bf16.mxu0 0
        %1171 = vmatpush2.bf16.msra.mxu0 0
        %1172 = vmatprep.subr.bf16.mxu0 0
        %1173 = vmatpush2.bf16.msra.mxu0 0
        %1174 = vmatprep.subr.bf16.mxu0 0
        %1175 = vmatpush2.bf16.msra.mxu0 0
        %1176 = vmatprep.subr.bf16.mxu0 0
        %1177 = vmatpush2.bf16.msra.mxu0 0
        %1178 = vmatprep.mubr.bf16.mxu0 0
        %1179 = vmatmul.mubr.bf16.gmra.mxu0 %v833
        %v1180 = vpop.f32.mrf.mxu0
        %v1181 = vadd.f32 %v1096, %v1180
        %v1182 = vpop.f32.mrf.mxu0
        %v1183 = vpop.f32.mrf.mxu0
        %v1184 = vadd.f32 %v1096, %v1183
        %v1185 = vpop.f32.mrf.mxu0
        %1186 = vmatprep.mubr.bf16.mxu0 0
        %1187 = vmatmul.mubr.bf16.gmra.mxu0 %v834
        %v1188 = vpop.f32.mrf.mxu0
        %v1189 = vadd.f32 %v1096, %v1188
        %v1190 = vpop.f32.mrf.mxu0
        %v1191 = vpop.f32.mrf.mxu0
        %v1192 = vadd.f32 %v1096, %v1191
        %v1193 = vpop.f32.mrf.mxu0
        %1194 = vdwg.mxu0
        %v1195 = vpack.c.bf16 %v941, %v941
        %v1196 = vpack.c.bf16 %v944, %v944
        %v1197 = vpack.c.bf16 %v949, %v949
        %v1198 = vpack.c.bf16 %v952, %v952
        %v1199 = vpack.c.bf16 %v1061, %v1061
        %v1200 = vpack.c.bf16 %v1064, %v1064
        %v1201 = vpack.c.bf16 %v1069, %v1069
        %v1202 = vpack.c.bf16 %v1072, %v1072
        %v1203 = vpack.c.bf16 %v1181, %v1181
        %v1204 = vpack.c.bf16 %v1184, %v1184
        %v1205 = vpack.c.bf16 %v1189, %v1189
        %v1206 = vpack.c.bf16 %v1192, %v1192
        %1207 = vmatprep.subr.bf16.mxu0 0
        %1208 = vmatpush1.bf16.xpose.msra.mxu0 0
        %1209 = vmatprep.subr.bf16.mxu0 0
        %1210 = vmatpush1.bf16.xpose.msra.mxu0 0
        %1211 = vmatprep.subr.bf16.mxu0 0
        %1212 = vmatpush1.bf16.xpose.msra.mxu0 0
        %1213 = vmatprep.subr.bf16.mxu0 0
        %1214 = vmatpush1.bf16.xpose.msra.mxu0 0
        %1215 = vmatprep.subr.bf16.mxu0 0
        %1216 = vmatpush1.bf16.xpose.msra.mxu0 0
        %1217 = vmatprep.subr.bf16.mxu0 0
        %1218 = vmatpush1.bf16.xpose.msra.mxu0 0
        %1219 = vmatprep.subr.bf16.mxu0 0
        %1220 = vmatpush1.bf16.xpose.msra.mxu0 0
        %1221 = vmatprep.subr.bf16.mxu0 0
        %1222 = vmatpush1.bf16.xpose.msra.mxu0 %v1199
        %1223 = vmatprep.subr.bf16.mxu0 0
        %1224 = vmatpush2.bf16.xpose.msra.mxu0 0
        %1225 = vmatprep.subr.bf16.mxu0 0
        %1226 = vmatpush2.bf16.xpose.msra.mxu0 0
        %1227 = vmatprep.subr.bf16.mxu0 0
        %1228 = vmatpush2.bf16.xpose.msra.mxu0 0
        %1229 = vmatprep.subr.bf16.mxu0 0
        %1230 = vmatpush2.bf16.xpose.msra.mxu0 0
        %1231 = vmatprep.subr.bf16.mxu0 0
        %1232 = vmatpush2.bf16.xpose.msra.mxu0 0
        %1233 = vmatprep.subr.bf16.mxu0 0
        %1234 = vmatpush2.bf16.xpose.msra.mxu0 0
        %1235 = vmatprep.subr.bf16.mxu0 0
        %1236 = vmatpush2.bf16.xpose.msra.mxu0 0
        %1237 = vmatprep.subr.bf16.mxu0 0
        %1238 = vmatpush2.bf16.xpose.msra.mxu0 0
        %1239 = vmatprep.mubr.bf16.mxu0 0
        %1240 = vmatmul.mubr.bf16.gmra.mxu0 %v1195
        %v1241 = vpop.f32.mrf.mxu0
        %v1242 = vadd.f32 0.0, %v1241
        %v1243 = vpop.f32.mrf.mxu0
        %v1244 = vpop.f32.mrf.mxu0
        %v1245 = vpop.f32.mrf.mxu0
        %1246 = vdwg.mxu0
        %1247 = vmatprep.subr.bf16.mxu0 0
        %1248 = vmatpush1.bf16.xpose.msra.mxu0 0
        %1249 = vmatprep.subr.bf16.mxu0 0
        %1250 = vmatpush1.bf16.xpose.msra.mxu0 0
        %1251 = vmatprep.subr.bf16.mxu0 0
        %1252 = vmatpush1.bf16.xpose.msra.mxu0 0
        %1253 = vmatprep.subr.bf16.mxu0 0
        %1254 = vmatpush1.bf16.xpose.msra.mxu0 0
        %1255 = vmatprep.subr.bf16.mxu0 0
        %1256 = vmatpush1.bf16.xpose.msra.mxu0 0
        %1257 = vmatprep.subr.bf16.mxu0 0
        %1258 = vmatpush1.bf16.xpose.msra.mxu0 0
        %1259 = vmatprep.subr.bf16.mxu0 0
        %1260 = vmatpush1.bf16.xpose.msra.mxu0 0
        %1261 = vmatprep.subr.bf16.mxu0 0
        %1262 = vmatpush1.bf16.xpose.msra.mxu0 %v1200
        %1263 = vmatprep.subr.bf16.mxu0 0
        %1264 = vmatpush2.bf16.xpose.msra.mxu0 0
        %1265 = vmatprep.subr.bf16.mxu0 0
        %1266 = vmatpush2.bf16.xpose.msra.mxu0 0
        %1267 = vmatprep.subr.bf16.mxu0 0
        %1268 = vmatpush2.bf16.xpose.msra.mxu0 0
        %1269 = vmatprep.subr.bf16.mxu0 0
        %1270 = vmatpush2.bf16.xpose.msra.mxu0 0
        %1271 = vmatprep.subr.bf16.mxu0 0
        %1272 = vmatpush2.bf16.xpose.msra.mxu0 0
        %1273 = vmatprep.subr.bf16.mxu0 0
        %1274 = vmatpush2.bf16.xpose.msra.mxu0 0
        %1275 = vmatprep.subr.bf16.mxu0 0
        %1276 = vmatpush2.bf16.xpose.msra.mxu0 0
        %1277 = vmatprep.subr.bf16.mxu0 0
        %1278 = vmatpush2.bf16.xpose.msra.mxu0 0
        %1279 = vmatprep.mubr.bf16.mxu0 0
        %1280 = vmatmul.mubr.bf16.gmra.mxu0 %v1196
        %v1281 = vpop.f32.mrf.mxu0
        %v1282 = vadd.f32 0.0, %v1281
        %v1283 = vpop.f32.mrf.mxu0
        %v1284 = vpop.f32.mrf.mxu0
        %v1285 = vpop.f32.mrf.mxu0
        %1286 = vdwg.mxu0
        %1287 = vmatprep.subr.bf16.mxu0 0
        %1288 = vmatpush1.bf16.xpose.msra.mxu0 0
        %1289 = vmatprep.subr.bf16.mxu0 0
        %1290 = vmatpush1.bf16.xpose.msra.mxu0 0
        %1291 = vmatprep.subr.bf16.mxu0 0
        %1292 = vmatpush1.bf16.xpose.msra.mxu0 0
        %1293 = vmatprep.subr.bf16.mxu0 0
        %1294 = vmatpush1.bf16.xpose.msra.mxu0 0
        %1295 = vmatprep.subr.bf16.mxu0 0
        %1296 = vmatpush1.bf16.xpose.msra.mxu0 0
        %1297 = vmatprep.subr.bf16.mxu0 0
        %1298 = vmatpush1.bf16.xpose.msra.mxu0 0
        %1299 = vmatprep.subr.bf16.mxu0 0
        %1300 = vmatpush1.bf16.xpose.msra.mxu0 0
        %1301 = vmatprep.subr.bf16.mxu0 0
        %1302 = vmatpush1.bf16.xpose.msra.mxu0 %v1201
        %1303 = vmatprep.subr.bf16.mxu0 0
        %1304 = vmatpush2.bf16.xpose.msra.mxu0 0
        %1305 = vmatprep.subr.bf16.mxu0 0
        %1306 = vmatpush2.bf16.xpose.msra.mxu0 0
        %1307 = vmatprep.subr.bf16.mxu0 0
        %1308 = vmatpush2.bf16.xpose.msra.mxu0 0
        %1309 = vmatprep.subr.bf16.mxu0 0
        %1310 = vmatpush2.bf16.xpose.msra.mxu0 0
        %1311 = vmatprep.subr.bf16.mxu0 0
        %1312 = vmatpush2.bf16.xpose.msra.mxu0 0
        %1313 = vmatprep.subr.bf16.mxu0 0
        %1314 = vmatpush2.bf16.xpose.msra.mxu0 0
        %1315 = vmatprep.subr.bf16.mxu0 0
        %1316 = vmatpush2.bf16.xpose.msra.mxu0 0
        %1317 = vmatprep.subr.bf16.mxu0 0
        %1318 = vmatpush2.bf16.xpose.msra.mxu0 0
        %1319 = vmatprep.mubr.bf16.mxu0 0
        %1320 = vmatmul.mubr.bf16.gmra.mxu0 %v1197
        %v1321 = vpop.f32.mrf.mxu0
        %v1322 = vadd.f32 0.0, %v1321
        %v1323 = vpop.f32.mrf.mxu0
        %v1324 = vpop.f32.mrf.mxu0
        %v1325 = vpop.f32.mrf.mxu0
        %1326 = vdwg.mxu0
        %1327 = vmatprep.subr.bf16.mxu0 0
        %1328 = vmatpush1.bf16.xpose.msra.mxu0 0
        %1329 = vmatprep.subr.bf16.mxu0 0
        %1330 = vmatpush1.bf16.xpose.msra.mxu0 0
        %1331 = vmatprep.subr.bf16.mxu0 0
        %1332 = vmatpush1.bf16.xpose.msra.mxu0 0
        %1333 = vmatprep.subr.bf16.mxu0 0
        %1334 = vmatpush1.bf16.xpose.msra.mxu0 0
        %1335 = vmatprep.subr.bf16.mxu0 0
        %1336 = vmatpush1.bf16.xpose.msra.mxu0 0
        %1337 = vmatprep.subr.bf16.mxu0 0
        %1338 = vmatpush1.bf16.xpose.msra.mxu0 0
        %1339 = vmatprep.subr.bf16.mxu0 0
        %1340 = vmatpush1.bf16.xpose.msra.mxu0 0
        %1341 = vmatprep.subr.bf16.mxu0 0
        %1342 = vmatpush1.bf16.xpose.msra.mxu0 %v1202
        %1343 = vmatprep.subr.bf16.mxu0 0
        %1344 = vmatpush2.bf16.xpose.msra.mxu0 0
        %1345 = vmatprep.subr.bf16.mxu0 0
        %1346 = vmatpush2.bf16.xpose.msra.mxu0 0
        %1347 = vmatprep.subr.bf16.mxu0 0
        %1348 = vmatpush2.bf16.xpose.msra.mxu0 0
        %1349 = vmatprep.subr.bf16.mxu0 0
        %1350 = vmatpush2.bf16.xpose.msra.mxu0 0
        %1351 = vmatprep.subr.bf16.mxu0 0
        %1352 = vmatpush2.bf16.xpose.msra.mxu0 0
        %1353 = vmatprep.subr.bf16.mxu0 0
        %1354 = vmatpush2.bf16.xpose.msra.mxu0 0
        %1355 = vmatprep.subr.bf16.mxu0 0
        %1356 = vmatpush2.bf16.xpose.msra.mxu0 0
        %1357 = vmatprep.subr.bf16.mxu0 0
        %1358 = vmatpush2.bf16.xpose.msra.mxu0 0
        %1359 = vmatprep.mubr.bf16.mxu0 0
        %1360 = vmatmul.mubr.bf16.gmra.mxu0 %v1198
        %v1361 = vpop.f32.mrf.mxu0
        %v1362 = vadd.f32 0.0, %v1361
        %v1363 = vpop.f32.mrf.mxu0
        %v1364 = vpop.f32.mrf.mxu0
        %v1365 = vpop.f32.mrf.mxu0
        %1366 = vdwg.mxu0
        %v1367 = vmul.f32 %v1242, 0.17677669
        %v1368 = vmul.f32 %v1282, 0.17677669
        %v1369 = vmul.f32 %v1322, 0.17677669
        %v1370 = vmul.f32 %v1362, 0.17677669
        %v1371 = vadd.f32 %v1367, %v761
        %v1372 = vadd.f32 %v1368, %v762
        %v1373 = vadd.f32 %v1369, %v763
        %v1374 = vadd.f32 %v1370, %v764
        %vm1375 = vcmask 64512
        %v1376 = vsel %vm1375, %v1371, -inf
        %1377 = vmax.xlane.f32.xlu0 %v1376
        %v1378 = vpop.xlane.xlu0 %1377
        %v1379 = vsel %vm1375, %v1372, -inf
        %1380 = vmax.xlane.f32.xlu0 %v1379
        %v1381 = vpop.xlane.xlu0 %1380
        %v1382 = vsel %vm1375, %v1373, -inf
        %1383 = vmax.xlane.f32.xlu0 %v1382
        %v1384 = vpop.xlane.xlu0 %1383
        %v1385 = vsel %vm1375, %v1374, -inf
        %1386 = vmax.xlane.f32.xlu0 %v1385
        %v1387 = vpop.xlane.xlu0 %1386
        %v1388 = vsub.f32 %v1371, %v1378
        %v1389 = vsub.f32 %v1372, %v1381
        %v1390 = vsub.f32 %v1373, %v1384
        %v1391 = vsub.f32 %v1374, %v1387
        %v1392 = vmul.f32 %v1388, 1.442695
        %v1393 = vpow.pop %v1392
        %v1394 = vmul.f32 %v1389, 1.442695
        %v1395 = vpow.pop %v1394
        %v1396 = vmul.f32 %v1390, 1.442695
        %v1397 = vpow.pop %v1396
        %v1398 = vmul.f32 %v1391, 1.442695
        %v1399 = vpow.pop %v1398
        %v1400 = vsel %vm1375, %v1393, 0.0
        %1401 = vadd.xlane.f32.xlu0 %v1400
        %v1402 = vpop.xlane.xlu0 %1401
        %v1403 = vsel %vm1375, %v1395, 0.0
        %1404 = vadd.xlane.f32.xlu0 %v1403
        %v1405 = vpop.xlane.xlu0 %1404
        %v1406 = vsel %vm1375, %v1397, 0.0
        %1407 = vadd.xlane.f32.xlu0 %v1406
        %v1408 = vpop.xlane.xlu0 %1407
        %v1409 = vsel %vm1375, %v1399, 0.0
        %1410 = vadd.xlane.f32.xlu0 %v1409
        %v1411 = vpop.xlane.xlu0 %1410
        %v1412 = vrcp.pop %v1402
        %v1413 = vrcp.pop %v1405
        %v1414 = vrcp.pop %v1408
        %v1415 = vrcp.pop %v1411
        %v1416 = vmul.f32 %v1393, %v1412
        %v1417 = vmul.f32 %v1395, %v1413
        %v1418 = vmul.f32 %v1397, %v1414
        %v1419 = vmul.f32 %v1399, %v1415
        %v1420 = vpack.c.bf16 %v1416, %v1416
        %v1421 = vpack.c.bf16 %v1417, %v1417
        %v1422 = vpack.c.bf16 %v1418, %v1418
        %v1423 = vpack.c.bf16 %v1419, %v1419
        %v1425 = vsel %vm1375, %v1420, 0
        %vm1427 = vcmask 1043456
        %v1429 = vsel %vm1427, %v1203, 0
        %1431 = vmatprep.subr.bf16.mxu0 0
        %1432 = vmatpush1.bf16.msra.mxu0 0
        %1433 = vmatprep.subr.bf16.mxu0 0
        %1434 = vmatpush1.bf16.msra.mxu0 0
        %1435 = vmatprep.subr.bf16.mxu0 0
        %1436 = vmatpush1.bf16.msra.mxu0 0
        %1437 = vmatprep.subr.bf16.mxu0 0
        %1438 = vmatpush1.bf16.msra.mxu0 0
        %1439 = vmatprep.subr.bf16.mxu0 0
        %1440 = vmatpush1.bf16.msra.mxu0 0
        %1441 = vmatprep.subr.bf16.mxu0 0
        %1442 = vmatpush1.bf16.msra.mxu0 0
        %1443 = vmatprep.subr.bf16.mxu0 0
        %1444 = vmatpush1.bf16.msra.mxu0 0
        %1445 = vmatprep.subr.bf16.mxu0 0
        %1446 = vmatpush1.bf16.msra.mxu0 %v1429
        %1447 = vmatprep.subr.bf16.mxu0 0
        %1448 = vmatpush2.bf16.msra.mxu0 0
        %1449 = vmatprep.subr.bf16.mxu0 0
        %1450 = vmatpush2.bf16.msra.mxu0 0
        %1451 = vmatprep.subr.bf16.mxu0 0
        %1452 = vmatpush2.bf16.msra.mxu0 0
        %1453 = vmatprep.subr.bf16.mxu0 0
        %1454 = vmatpush2.bf16.msra.mxu0 0
        %1455 = vmatprep.subr.bf16.mxu0 0
        %1456 = vmatpush2.bf16.msra.mxu0 0
        %1457 = vmatprep.subr.bf16.mxu0 0
        %1458 = vmatpush2.bf16.msra.mxu0 0
        %1459 = vmatprep.subr.bf16.mxu0 0
        %1460 = vmatpush2.bf16.msra.mxu0 0
        %1461 = vmatprep.subr.bf16.mxu0 0
        %1462 = vmatpush2.bf16.msra.mxu0 0
        %1463 = vmatprep.mubr.bf16.mxu0 0
        %1464 = vmatmul.mubr.bf16.gmra.mxu0 %v1425
        %v1465 = vpop.f32.mrf.mxu0
        %v1466 = vadd.f32 0.0, %v1465
        %v1467 = vpop.f32.mrf.mxu0
        %v1468 = vpop.f32.mrf.mxu0
        %v1469 = vpop.f32.mrf.mxu0
        %1470 = vdwg.mxu0
        %v1472 = vsel %vm1375, %v1421, 0
        %v1475 = vsel %vm1427, %v1204, 0
        %1477 = vmatprep.subr.bf16.mxu0 0
        %1478 = vmatpush1.bf16.msra.mxu0 0
        %1479 = vmatprep.subr.bf16.mxu0 0
        %1480 = vmatpush1.bf16.msra.mxu0 0
        %1481 = vmatprep.subr.bf16.mxu0 0
        %1482 = vmatpush1.bf16.msra.mxu0 0
        %1483 = vmatprep.subr.bf16.mxu0 0
        %1484 = vmatpush1.bf16.msra.mxu0 0
        %1485 = vmatprep.subr.bf16.mxu0 0
        %1486 = vmatpush1.bf16.msra.mxu0 0
        %1487 = vmatprep.subr.bf16.mxu0 0
        %1488 = vmatpush1.bf16.msra.mxu0 0
        %1489 = vmatprep.subr.bf16.mxu0 0
        %1490 = vmatpush1.bf16.msra.mxu0 0
        %1491 = vmatprep.subr.bf16.mxu0 0
        %1492 = vmatpush1.bf16.msra.mxu0 %v1475
        %1493 = vmatprep.subr.bf16.mxu0 0
        %1494 = vmatpush2.bf16.msra.mxu0 0
        %1495 = vmatprep.subr.bf16.mxu0 0
        %1496 = vmatpush2.bf16.msra.mxu0 0
        %1497 = vmatprep.subr.bf16.mxu0 0
        %1498 = vmatpush2.bf16.msra.mxu0 0
        %1499 = vmatprep.subr.bf16.mxu0 0
        %1500 = vmatpush2.bf16.msra.mxu0 0
        %1501 = vmatprep.subr.bf16.mxu0 0
        %1502 = vmatpush2.bf16.msra.mxu0 0
        %1503 = vmatprep.subr.bf16.mxu0 0
        %1504 = vmatpush2.bf16.msra.mxu0 0
        %1505 = vmatprep.subr.bf16.mxu0 0
        %1506 = vmatpush2.bf16.msra.mxu0 0
        %1507 = vmatprep.subr.bf16.mxu0 0
        %1508 = vmatpush2.bf16.msra.mxu0 0
        %1509 = vmatprep.mubr.bf16.mxu0 0
        %1510 = vmatmul.mubr.bf16.gmra.mxu0 %v1472
        %v1511 = vpop.f32.mrf.mxu0
        %v1512 = vadd.f32 0.0, %v1511
        %v1513 = vpop.f32.mrf.mxu0
        %v1514 = vpop.f32.mrf.mxu0
        %v1515 = vpop.f32.mrf.mxu0
        %1516 = vdwg.mxu0
        %v1518 = vsel %vm1375, %v1422, 0
        %v1521 = vsel %vm1427, %v1205, 0
        %1523 = vmatprep.subr.bf16.mxu0 0
        %1524 = vmatpush1.bf16.msra.mxu0 0
        %1525 = vmatprep.subr.bf16.mxu0 0
        %1526 = vmatpush1.bf16.msra.mxu0 0
        %1527 = vmatprep.subr.bf16.mxu0 0
        %1528 = vmatpush1.bf16.msra.mxu0 0
        %1529 = vmatprep.subr.bf16.mxu0 0
        %1530 = vmatpush1.bf16.msra.mxu0 0
        %1531 = vmatprep.subr.bf16.mxu0 0
        %1532 = vmatpush1.bf16.msra.mxu0 0
        %1533 = vmatprep.subr.bf16.mxu0 0
        %1534 = vmatpush1.bf16.msra.mxu0 0
        %1535 = vmatprep.subr.bf16.mxu0 0
        %1536 = vmatpush1.bf16.msra.mxu0 0
        %1537 = vmatprep.subr.bf16.mxu0 0
        %1538 = vmatpush1.bf16.msra.mxu0 %v1521
        %1539 = vmatprep.subr.bf16.mxu0 0
        %1540 = vmatpush2.bf16.msra.mxu0 0
        %1541 = vmatprep.subr.bf16.mxu0 0
        %1542 = vmatpush2.bf16.msra.mxu0 0
        %1543 = vmatprep.subr.bf16.mxu0 0
        %1544 = vmatpush2.bf16.msra.mxu0 0
        %1545 = vmatprep.subr.bf16.mxu0 0
        %1546 = vmatpush2.bf16.msra.mxu0 0
        %1547 = vmatprep.subr.bf16.mxu0 0
        %1548 = vmatpush2.bf16.msra.mxu0 0
        %1549 = vmatprep.subr.bf16.mxu0 0
        %1550 = vmatpush2.bf16.msra.mxu0 0
        %1551 = vmatprep.subr.bf16.mxu0 0
        %1552 = vmatpush2.bf16.msra.mxu0 0
        %1553 = vmatprep.subr.bf16.mxu0 0
        %1554 = vmatpush2.bf16.msra.mxu0 0
        %1555 = vmatprep.mubr.bf16.mxu0 0
        %1556 = vmatmul.mubr.bf16.gmra.mxu0 %v1518
        %v1557 = vpop.f32.mrf.mxu0
        %v1558 = vadd.f32 0.0, %v1557
        %v1559 = vpop.f32.mrf.mxu0
        %v1560 = vpop.f32.mrf.mxu0
        %v1561 = vpop.f32.mrf.mxu0
        %1562 = vdwg.mxu0
        %v1564 = vsel %vm1375, %v1423, 0
        %v1567 = vsel %vm1427, %v1206, 0
        %1569 = vmatprep.subr.bf16.mxu0 0
        %1570 = vmatpush1.bf16.msra.mxu0 0
        %1571 = vmatprep.subr.bf16.mxu0 0
        %1572 = vmatpush1.bf16.msra.mxu0 0
        %1573 = vmatprep.subr.bf16.mxu0 0
        %1574 = vmatpush1.bf16.msra.mxu0 0
        %1575 = vmatprep.subr.bf16.mxu0 0
        %1576 = vmatpush1.bf16.msra.mxu0 0
        %1577 = vmatprep.subr.bf16.mxu0 0
        %1578 = vmatpush1.bf16.msra.mxu0 0
        %1579 = vmatprep.subr.bf16.mxu0 0
        %1580 = vmatpush1.bf16.msra.mxu0 0
        %1581 = vmatprep.subr.bf16.mxu0 0
        %1582 = vmatpush1.bf16.msra.mxu0 0
        %1583 = vmatprep.subr.bf16.mxu0 0
        %1584 = vmatpush1.bf16.msra.mxu0 %v1567
        %1585 = vmatprep.subr.bf16.mxu0 0
        %1586 = vmatpush2.bf16.msra.mxu0 0
        %1587 = vmatprep.subr.bf16.mxu0 0
        %1588 = vmatpush2.bf16.msra.mxu0 0
        %1589 = vmatprep.subr.bf16.mxu0 0
        %1590 = vmatpush2.bf16.msra.mxu0 0
        %1591 = vmatprep.subr.bf16.mxu0 0
        %1592 = vmatpush2.bf16.msra.mxu0 0
        %1593 = vmatprep.subr.bf16.mxu0 0
        %1594 = vmatpush2.bf16.msra.mxu0 0
        %1595 = vmatprep.subr.bf16.mxu0 0
        %1596 = vmatpush2.bf16.msra.mxu0 0
        %1597 = vmatprep.subr.bf16.mxu0 0
        %1598 = vmatpush2.bf16.msra.mxu0 0
        %1599 = vmatprep.subr.bf16.mxu0 0
        %1600 = vmatpush2.bf16.msra.mxu0 0
        %1601 = vmatprep.mubr.bf16.mxu0 0
        %1602 = vmatmul.mubr.bf16.gmra.mxu0 %v1564
        %v1603 = vpop.f32.mrf.mxu0
        %v1604 = vadd.f32 0.0, %v1603
        %v1605 = vpop.f32.mrf.mxu0
        %v1606 = vpop.f32.mrf.mxu0
        %v1607 = vpop.f32.mrf.mxu0
        %1608 = vdwg.mxu0
        %v1609 = vpack.c.bf16 %v1512, %v1466
        %v1610 = vpack.c.bf16 %v1604, %v1558
        %v1611 = vld [vmem:[#allocation14] sm:$0xf]
        %v1612 = vld [vmem:[#allocation14 + $0x4] sm:$0xf]
        %v1613 = vld [vmem:[#allocation14 + $0x8] sm:$0xf]
        %v1614 = vld [vmem:[#allocation14 + $0xc] sm:$0xf]
        %v1615 = vld [vmem:[#allocation14 + $0x10] sm:$0xf]
        %v1616 = vld [vmem:[#allocation14 + $0x14] sm:$0xf]
        %v1617 = vld [vmem:[#allocation14 + $0x18] sm:$0xf]
        %v1618 = vld [vmem:[#allocation14 + $0x1c] sm:$0xf]
        %v1619 = vld [vmem:[#allocation14 + $0x20] sm:$0xf]
        %v1620 = vld [vmem:[#allocation14 + $0x24] sm:$0xf]
        %v1621 = vld [vmem:[#allocation14 + $0x28] sm:$0xf]
        %v1622 = vld [vmem:[#allocation14 + $0x2c] sm:$0xf]
        %v1623 = vld [vmem:[#allocation14 + $0x30] sm:$0xf]
        %v1624 = vld [vmem:[#allocation14 + $0x34] sm:$0xf]
        %v1625 = vld [vmem:[#allocation14 + $0x38] sm:$0xf]
        %v1626 = vld [vmem:[#allocation14 + $0x3c] sm:$0xf]
        %v1627 = vld [vmem:[%s9] sm:$0x1]
        %v1629 = vlaneseq
        %v1630 = vshrl.u32 %v1629, 7
        %v1631 = vsub.s32 0, %v1630
        %v1632 = vrot.slane %v1627, %v1631
        %v1650 = vunpack.c.l.b16 %v1611
        %v1651 = vunpack.c.l.b16 %v1612
        %v1652 = vunpack.c.l.b16 %v1613
        %v1653 = vunpack.c.l.b16 %v1614
        %v1654 = vunpack.c.l.b16 %v1615
        %v1655 = vunpack.c.l.b16 %v1616
        %v1656 = vunpack.c.l.b16 %v1617
        %v1657 = vunpack.c.l.b16 %v1618
        %v1658 = vunpack.c.l.b16 %v1619
        %v1659 = vunpack.c.l.b16 %v1620
        %v1660 = vunpack.c.l.b16 %v1621
        %v1661 = vunpack.c.l.b16 %v1622
        %v1662 = vunpack.c.l.b16 %v1623
        %v1663 = vunpack.c.l.b16 %v1624
        %v1664 = vunpack.c.l.b16 %v1625
        %v1665 = vunpack.c.l.b16 %v1626
        %v1666 = vpack.c.b16 %v1651, %v1650
        %v1667 = vpack.c.b16 %v1653, %v1652
        %v1668 = vpack.c.b16 %v1655, %v1654
        %v1669 = vpack.c.b16 %v1657, %v1656
        %v1670 = vpack.c.b16 %v1659, %v1658
        %v1671 = vpack.c.b16 %v1661, %v1660
        %v1672 = vpack.c.b16 %v1663, %v1662
        %v1673 = vpack.c.b16 %v1665, %v1664
        %1682 = vmatprep.subr.bf16.mxu0 0
        %1683 = vmatpush1.bf16.msra.mxu0 %v1673
        %1684 = vmatprep.subr.bf16.mxu0 0
        %1685 = vmatpush1.bf16.msra.mxu0 %v1672
        %1686 = vmatprep.subr.bf16.mxu0 0
        %1687 = vmatpush1.bf16.msra.mxu0 %v1671
        %1688 = vmatprep.subr.bf16.mxu0 0
        %1689 = vmatpush1.bf16.msra.mxu0 %v1670
        %1690 = vmatprep.subr.bf16.mxu0 0
        %1691 = vmatpush1.bf16.msra.mxu0 %v1669
        %1692 = vmatprep.subr.bf16.mxu0 0
        %1693 = vmatpush1.bf16.msra.mxu0 %v1668
        %1694 = vmatprep.subr.bf16.mxu0 0
        %1695 = vmatpush1.bf16.msra.mxu0 %v1667
        %1696 = vmatprep.subr.bf16.mxu0 0
        %1697 = vmatpush1.bf16.msra.mxu0 %v1666
        %1698 = vmatprep.subr.bf16.mxu0 0
        %1699 = vmatpush2.bf16.msra.mxu0 0
        %1700 = vmatprep.subr.bf16.mxu0 0
        %1701 = vmatpush2.bf16.msra.mxu0 0
        %1702 = vmatprep.subr.bf16.mxu0 0
        %1703 = vmatpush2.bf16.msra.mxu0 0
        %1704 = vmatprep.subr.bf16.mxu0 0
        %1705 = vmatpush2.bf16.msra.mxu0 0
        %1706 = vmatprep.subr.bf16.mxu0 0
        %1707 = vmatpush2.bf16.msra.mxu0 0
        %1708 = vmatprep.subr.bf16.mxu0 0
        %1709 = vmatpush2.bf16.msra.mxu0 0
        %1710 = vmatprep.subr.bf16.mxu0 0
        %1711 = vmatpush2.bf16.msra.mxu0 0
        %1712 = vmatprep.subr.bf16.mxu0 0
        %1713 = vmatpush2.bf16.msra.mxu0 0
        %1714 = vmatprep.mubr.bf16.mxu0 0
        %1715 = vmatmul.mubr.bf16.gmra.mxu0 %v1609
        %v1716 = vpop.f32.mrf.mxu0
        %v1717 = vadd.f32 %v1632, %v1716
        %v1718 = vpop.f32.mrf.mxu0
        %v1719 = vpop.f32.mrf.mxu0
        %v1720 = vadd.f32 %v1632, %v1719
        %v1721 = vpop.f32.mrf.mxu0
        %1722 = vmatprep.mubr.bf16.mxu0 0
        %1723 = vmatmul.mubr.bf16.gmra.mxu0 %v1610
        %v1724 = vpop.f32.mrf.mxu0
        %v1725 = vadd.f32 %v1632, %v1724
        %v1726 = vpop.f32.mrf.mxu0
        %v1727 = vpop.f32.mrf.mxu0
        %v1728 = vadd.f32 %v1632, %v1727
        %v1729 = vpop.f32.mrf.mxu0
        %1730 = vdwg.mxu0
        %v1731 = vadd.f32 %v757, %v1717
        %v1732 = vadd.f32 %v758, %v1720
        %v1733 = vadd.f32 %v759, %v1725
        %v1734 = vadd.f32 %v760, %v1728
        %1735 = vadd.xlane.f32.xlu0 %v1731
        %v1736 = vpop.xlane.xlu0 %1735
        %1737 = vadd.xlane.f32.xlu0 %v1732
        %v1738 = vpop.xlane.xlu0 %1737
        %1739 = vadd.xlane.f32.xlu0 %v1733
        %v1740 = vpop.xlane.xlu0 %1739
        %1741 = vadd.xlane.f32.xlu0 %v1734
        %v1742 = vpop.xlane.xlu0 %1741
        %v1743 = vmul.f32 %v1736, 0.03125
        %v1744 = vmul.f32 %v1738, 0.03125
        %v1745 = vmul.f32 %v1740, 0.03125
        %v1746 = vmul.f32 %v1742, 0.03125
        %v1747 = vsub.f32 %v1731, %v1743
        %v1748 = vsub.f32 %v1732, %v1744
        %v1749 = vsub.f32 %v1733, %v1745
        %v1750 = vsub.f32 %v1734, %v1746
        %v1751 = vsel %vm784, %v1747, 0.0
        %v1752 = vsel %vm784, %v1748, 0.0
        %v1753 = vsel %vm784, %v1749, 0.0
        %v1754 = vsel %vm784, %v1750, 0.0
        %v1755 = vmul.f32 %v1751, %v1751
        %v1756 = vmul.f32 %v1752, %v1752
        %v1757 = vmul.f32 %v1753, %v1753
        %v1758 = vmul.f32 %v1754, %v1754
        %1759 = vadd.xlane.f32.xlu0 %v1755
        %v1760 = vpop.xlane.xlu0 %1759
        %1761 = vadd.xlane.f32.xlu0 %v1756
        %v1762 = vpop.xlane.xlu0 %1761
        %1763 = vadd.xlane.f32.xlu0 %v1757
        %v1764 = vpop.xlane.xlu0 %1763
        %1765 = vadd.xlane.f32.xlu0 %v1758
        %v1766 = vpop.xlane.xlu0 %1765
        %v1767 = vmul.f32 %v1760, 0.03125
        %v1768 = vmul.f32 %v1762, 0.03125
        %v1769 = vmul.f32 %v1764, 0.03125
        %v1770 = vmul.f32 %v1766, 0.03125
        %v1771 = vadd.f32 %v1767, 1e-05
        %v1772 = vadd.f32 %v1768, 1e-05
        %v1773 = vadd.f32 %v1769, 1e-05
        %v1774 = vadd.f32 %v1770, 1e-05
        %v1775 = vrsqrt.pop %v1771
        %v1776 = vrsqrt.pop %v1772
        %v1777 = vrsqrt.pop %v1773
        %v1778 = vrsqrt.pop %v1774
        %v1779 = vmul.f32 %v1751, %v1775
        %v1780 = vmul.f32 %v1752, %v1776
        %v1781 = vmul.f32 %v1753, %v1777
        %v1782 = vmul.f32 %v1754, %v1778
        %v1783 = vlaneseq
        %v1784 = vshrl.u32 %v1783, 7
        %v1785 = vsub.s32 1, %v1784
        %v1786 = vrot.slane %v765, %v1785
        %v1787 = vmul.f32 %v1779, %v1786
        %v1788 = vmul.f32 %v1780, %v1786
        %v1789 = vmul.f32 %v1781, %v1786
        %v1790 = vmul.f32 %v1782, %v1786
        %v1791 = vlaneseq
        %v1792 = vshrl.u32 %v1791, 7
        %v1793 = vsub.s32 1, %v1792
        %v1794 = vrot.slane %v766, %v1793
        %v1795 = vadd.f32 %v1787, %v1794
        %v1796 = vadd.f32 %v1788, %v1794
        %v1797 = vadd.f32 %v1789, %v1794
        %v1798 = vadd.f32 %v1790, %v1794
        %v1799 = vpack.c.bf16 %v1796, %v1795
        %v1800 = vpack.c.bf16 %v1798, %v1797
        %v1801 = vld [vmem:[#allocation16] sm:$0xf]
        %v1802 = vld [vmem:[#allocation16 + $0x4] sm:$0xf]
        %v1803 = vld [vmem:[#allocation16 + $0x8] sm:$0xf]
        %v1804 = vld [vmem:[#allocation16 + $0xc] sm:$0xf]
        %v1805 = vld [vmem:[#allocation16 + $0x10] sm:$0xf]
        %v1806 = vld [vmem:[#allocation16 + $0x14] sm:$0xf]
        %v1807 = vld [vmem:[#allocation16 + $0x18] sm:$0xf]
        %v1808 = vld [vmem:[#allocation16 + $0x1c] sm:$0xf]
        %v1809 = vld [vmem:[#allocation16 + $0x20] sm:$0xf]
        %v1810 = vld [vmem:[#allocation16 + $0x24] sm:$0xf]
        %v1811 = vld [vmem:[#allocation16 + $0x28] sm:$0xf]
        %v1812 = vld [vmem:[#allocation16 + $0x2c] sm:$0xf]
        %v1813 = vld [vmem:[#allocation16 + $0x30] sm:$0xf]
        %v1814 = vld [vmem:[#allocation16 + $0x34] sm:$0xf]
        %v1815 = vld [vmem:[#allocation16 + $0x38] sm:$0xf]
        %v1816 = vld [vmem:[#allocation16 + $0x3c] sm:$0xf]
        %v1817 = vld [vmem:[%s11] sm:$0x1]
        %v1819 = vlaneseq
        %v1820 = vshrl.u32 %v1819, 7
        %v1821 = vsub.s32 0, %v1820
        %v1822 = vrot.slane %v1817, %v1821
        %v1840 = vunpack.c.l.b16 %v1801
        %v1841 = vunpack.c.l.b16 %v1802
        %v1842 = vunpack.c.l.b16 %v1803
        %v1843 = vunpack.c.l.b16 %v1804
        %v1844 = vunpack.c.l.b16 %v1805
        %v1845 = vunpack.c.l.b16 %v1806
        %v1846 = vunpack.c.l.b16 %v1807
        %v1847 = vunpack.c.l.b16 %v1808
        %v1848 = vunpack.c.l.b16 %v1809
        %v1849 = vunpack.c.l.b16 %v1810
        %v1850 = vunpack.c.l.b16 %v1811
        %v1851 = vunpack.c.l.b16 %v1812
        %v1852 = vunpack.c.l.b16 %v1813
        %v1853 = vunpack.c.l.b16 %v1814
        %v1854 = vunpack.c.l.b16 %v1815
        %v1855 = vunpack.c.l.b16 %v1816
        %v1856 = vpack.c.b16 %v1841, %v1840
        %v1857 = vpack.c.b16 %v1843, %v1842
        %v1858 = vpack.c.b16 %v1845, %v1844
        %v1859 = vpack.c.b16 %v1847, %v1846
        %v1860 = vpack.c.b16 %v1849, %v1848
        %v1861 = vpack.c.b16 %v1851, %v1850
        %v1862 = vpack.c.b16 %v1853, %v1852
        %v1863 = vpack.c.b16 %v1855, %v1854
        %1872 = vmatprep.subr.bf16.mxu0 0
        %1873 = vmatpush1.bf16.msra.mxu0 %v1863
        %1874 = vmatprep.subr.bf16.mxu0 0
        %1875 = vmatpush1.bf16.msra.mxu0 %v1862
        %1876 = vmatprep.subr.bf16.mxu0 0
        %1877 = vmatpush1.bf16.msra.mxu0 %v1861
        %1878 = vmatprep.subr.bf16.mxu0 0
        %1879 = vmatpush1.bf16.msra.mxu0 %v1860
        %1880 = vmatprep.subr.bf16.mxu0 0
        %1881 = vmatpush1.bf16.msra.mxu0 %v1859
        %1882 = vmatprep.subr.bf16.mxu0 0
        %1883 = vmatpush1.bf16.msra.mxu0 %v1858
        %1884 = vmatprep.subr.bf16.mxu0 0
        %1885 = vmatpush1.bf16.msra.mxu0 %v1857
        %1886 = vmatprep.subr.bf16.mxu0 0
        %1887 = vmatpush1.bf16.msra.mxu0 %v1856
        %1888 = vmatprep.subr.bf16.mxu0 0
        %1889 = vmatpush2.bf16.msra.mxu0 0
        %1890 = vmatprep.subr.bf16.mxu0 0
        %1891 = vmatpush2.bf16.msra.mxu0 0
        %1892 = vmatprep.subr.bf16.mxu0 0
        %1893 = vmatpush2.bf16.msra.mxu0 0
        %1894 = vmatprep.subr.bf16.mxu0 0
        %1895 = vmatpush2.bf16.msra.mxu0 0
        %1896 = vmatprep.subr.bf16.mxu0 0
        %1897 = vmatpush2.bf16.msra.mxu0 0
        %1898 = vmatprep.subr.bf16.mxu0 0
        %1899 = vmatpush2.bf16.msra.mxu0 0
        %1900 = vmatprep.subr.bf16.mxu0 0
        %1901 = vmatpush2.bf16.msra.mxu0 0
        %1902 = vmatprep.subr.bf16.mxu0 0
        %1903 = vmatpush2.bf16.msra.mxu0 0
        %1904 = vmatprep.mubr.bf16.mxu0 0
        %1905 = vmatmul.mubr.bf16.gmra.mxu0 %v1799
        %v1906 = vpop.f32.mrf.mxu0
        %v1907 = vadd.f32 %v1822, %v1906
        %v1908 = vpop.f32.mrf.mxu0
        %v1909 = vpop.f32.mrf.mxu0
        %v1910 = vadd.f32 %v1822, %v1909
        %v1911 = vpop.f32.mrf.mxu0
        %1912 = vmatprep.mubr.bf16.mxu0 0
        %1913 = vmatmul.mubr.bf16.gmra.mxu0 %v1800
        %v1914 = vpop.f32.mrf.mxu0
        %v1915 = vadd.f32 %v1822, %v1914
        %v1916 = vpop.f32.mrf.mxu0
        %v1917 = vpop.f32.mrf.mxu0
        %v1918 = vadd.f32 %v1822, %v1917
        %v1919 = vpop.f32.mrf.mxu0
        %1920 = vdwg.mxu0
        %v1921 = vmax.f32 %v1907, 0.0
        %v1922 = vmax.f32 %v1910, 0.0
        %v1923 = vmax.f32 %v1915, 0.0
        %v1924 = vmax.f32 %v1918, 0.0
        %v1925 = vpack.c.bf16 %v1922, %v1921
        %v1926 = vpack.c.bf16 %v1924, %v1923
        %v1927 = vld [vmem:[#allocation17] sm:$0xf]
        %v1928 = vld [vmem:[#allocation17 + $0x4] sm:$0xf]
        %v1929 = vld [vmem:[#allocation17 + $0x8] sm:$0xf]
        %v1930 = vld [vmem:[#allocation17 + $0xc] sm:$0xf]
        %v1931 = vld [vmem:[#allocation17 + $0x10] sm:$0xf]
        %v1932 = vld [vmem:[#allocation17 + $0x14] sm:$0xf]
        %v1933 = vld [vmem:[#allocation17 + $0x18] sm:$0xf]
        %v1934 = vld [vmem:[#allocation17 + $0x1c] sm:$0xf]
        %v1935 = vld [vmem:[#allocation17 + $0x20] sm:$0xf]
        %v1936 = vld [vmem:[#allocation17 + $0x24] sm:$0xf]
        %v1937 = vld [vmem:[#allocation17 + $0x28] sm:$0xf]
        %v1938 = vld [vmem:[#allocation17 + $0x2c] sm:$0xf]
        %v1939 = vld [vmem:[#allocation17 + $0x30] sm:$0xf]
        %v1940 = vld [vmem:[#allocation17 + $0x34] sm:$0xf]
        %v1941 = vld [vmem:[#allocation17 + $0x38] sm:$0xf]
        %v1942 = vld [vmem:[#allocation17 + $0x3c] sm:$0xf]
        %v1943 = vld [vmem:[%s13] sm:$0x1]
        %v1945 = vlaneseq
        %v1946 = vshrl.u32 %v1945, 7
        %v1947 = vsub.s32 0, %v1946
        %v1948 = vrot.slane %v1943, %v1947
        %v1966 = vunpack.c.l.b16 %v1927
        %v1967 = vunpack.c.l.b16 %v1928
        %v1968 = vunpack.c.l.b16 %v1929
        %v1969 = vunpack.c.l.b16 %v1930
        %v1970 = vunpack.c.l.b16 %v1931
        %v1971 = vunpack.c.l.b16 %v1932
        %v1972 = vunpack.c.l.b16 %v1933
        %v1973 = vunpack.c.l.b16 %v1934
        %v1974 = vunpack.c.l.b16 %v1935
        %v1975 = vunpack.c.l.b16 %v1936
        %v1976 = vunpack.c.l.b16 %v1937
        %v1977 = vunpack.c.l.b16 %v1938
        %v1978 = vunpack.c.l.b16 %v1939
        %v1979 = vunpack.c.l.b16 %v1940
        %v1980 = vunpack.c.l.b16 %v1941
        %v1981 = vunpack.c.l.b16 %v1942
        %v1982 = vpack.c.b16 %v1967, %v1966
        %v1983 = vpack.c.b16 %v1969, %v1968
        %v1984 = vpack.c.b16 %v1971, %v1970
        %v1985 = vpack.c.b16 %v1973, %v1972
        %v1986 = vpack.c.b16 %v1975, %v1974
        %v1987 = vpack.c.b16 %v1977, %v1976
        %v1988 = vpack.c.b16 %v1979, %v1978
        %v1989 = vpack.c.b16 %v1981, %v1980
        %1998 = vmatprep.subr.bf16.mxu0 0
        %1999 = vmatpush1.bf16.msra.mxu0 %v1989
        %2000 = vmatprep.subr.bf16.mxu0 0
        %2001 = vmatpush1.bf16.msra.mxu0 %v1988
        %2002 = vmatprep.subr.bf16.mxu0 0
        %2003 = vmatpush1.bf16.msra.mxu0 %v1987
        %2004 = vmatprep.subr.bf16.mxu0 0
        %2005 = vmatpush1.bf16.msra.mxu0 %v1986
        %2006 = vmatprep.subr.bf16.mxu0 0
        %2007 = vmatpush1.bf16.msra.mxu0 %v1985
        %2008 = vmatprep.subr.bf16.mxu0 0
        %2009 = vmatpush1.bf16.msra.mxu0 %v1984
        %2010 = vmatprep.subr.bf16.mxu0 0
        %2011 = vmatpush1.bf16.msra.mxu0 %v1983
        %2012 = vmatprep.subr.bf16.mxu0 0
        %2013 = vmatpush1.bf16.msra.mxu0 %v1982
        %2014 = vmatprep.subr.bf16.mxu0 0
        %2015 = vmatpush2.bf16.msra.mxu0 0
        %2016 = vmatprep.subr.bf16.mxu0 0
        %2017 = vmatpush2.bf16.msra.mxu0 0
        %2018 = vmatprep.subr.bf16.mxu0 0
        %2019 = vmatpush2.bf16.msra.mxu0 0
        %2020 = vmatprep.subr.bf16.mxu0 0
        %2021 = vmatpush2.bf16.msra.mxu0 0
        %2022 = vmatprep.subr.bf16.mxu0 0
        %2023 = vmatpush2.bf16.msra.mxu0 0
        %2024 = vmatprep.subr.bf16.mxu0 0
        %2025 = vmatpush2.bf16.msra.mxu0 0
        %2026 = vmatprep.subr.bf16.mxu0 0
        %2027 = vmatpush2.bf16.msra.mxu0 0
        %2028 = vmatprep.subr.bf16.mxu0 0
        %2029 = vmatpush2.bf16.msra.mxu0 0
        %2030 = vmatprep.mubr.bf16.mxu0 0
        %2031 = vmatmul.mubr.bf16.gmra.mxu0 %v1925
        %v2032 = vpop.f32.mrf.mxu0
        %v2033 = vadd.f32 %v1948, %v2032
        %v2034 = vpop.f32.mrf.mxu0
        %v2035 = vpop.f32.mrf.mxu0
        %v2036 = vadd.f32 %v1948, %v2035
        %v2037 = vpop.f32.mrf.mxu0
        %2038 = vmatprep.mubr.bf16.mxu0 0
        %2039 = vmatmul.mubr.bf16.gmra.mxu0 %v1926
        %v2040 = vpop.f32.mrf.mxu0
        %v2041 = vadd.f32 %v1948, %v2040
        %v2042 = vpop.f32.mrf.mxu0
        %v2043 = vpop.f32.mrf.mxu0
        %v2044 = vadd.f32 %v1948, %v2043
        %v2045 = vpop.f32.mrf.mxu0
        %2046 = vdwg.mxu0
        %v2047 = vadd.f32 %v1731, %v2033
        %v2048 = vadd.f32 %v1732, %v2036
        %v2049 = vadd.f32 %v1733, %v2041
        %v2050 = vadd.f32 %v1734, %v2044
        %s2051 = scalar_lea.vmem %s14, 2
        %v2052 = vld [vmem:[%s2051] sm:$0x3]
        %s2053 = scalar_lea.vmem %s15, 2
        %v2054 = vld [vmem:[%s2053] sm:$0x3]
        %2055 = vadd.xlane.f32.xlu0 %v2047
        %v2056 = vpop.xlane.xlu0 %2055
        %2057 = vadd.xlane.f32.xlu0 %v2048
        %v2058 = vpop.xlane.xlu0 %2057
        %2059 = vadd.xlane.f32.xlu0 %v2049
        %v2060 = vpop.xlane.xlu0 %2059
        %2061 = vadd.xlane.f32.xlu0 %v2050
        %v2062 = vpop.xlane.xlu0 %2061
        %v2063 = vmul.f32 %v2056, 0.03125
        %v2064 = vmul.f32 %v2058, 0.03125
        %v2065 = vmul.f32 %v2060, 0.03125
        %v2066 = vmul.f32 %v2062, 0.03125
        %v2067 = vsub.f32 %v2047, %v2063
        %v2068 = vsub.f32 %v2048, %v2064
        %v2069 = vsub.f32 %v2049, %v2065
        %v2070 = vsub.f32 %v2050, %v2066
        %v2071 = vsel %vm784, %v2067, 0.0
        %v2072 = vsel %vm784, %v2068, 0.0
        %v2073 = vsel %vm784, %v2069, 0.0
        %v2074 = vsel %vm784, %v2070, 0.0
        %v2075 = vmul.f32 %v2071, %v2071
        %v2076 = vmul.f32 %v2072, %v2072
        %v2077 = vmul.f32 %v2073, %v2073
        %v2078 = vmul.f32 %v2074, %v2074
        %2079 = vadd.xlane.f32.xlu0 %v2075
        %v2080 = vpop.xlane.xlu0 %2079
        %2081 = vadd.xlane.f32.xlu0 %v2076
        %v2082 = vpop.xlane.xlu0 %2081
        %2083 = vadd.xlane.f32.xlu0 %v2077
        %v2084 = vpop.xlane.xlu0 %2083
        %2085 = vadd.xlane.f32.xlu0 %v2078
        %v2086 = vpop.xlane.xlu0 %2085
        %v2087 = vmul.f32 %v2080, 0.03125
        %v2088 = vmul.f32 %v2082, 0.03125
        %v2089 = vmul.f32 %v2084, 0.03125
        %v2090 = vmul.f32 %v2086, 0.03125
        %v2091 = vadd.f32 %v2087, 1e-05
        %v2092 = vadd.f32 %v2088, 1e-05
        %v2093 = vadd.f32 %v2089, 1e-05
        %v2094 = vadd.f32 %v2090, 1e-05
        %v2095 = vrsqrt.pop %v2091
        %v2096 = vrsqrt.pop %v2092
        %v2097 = vrsqrt.pop %v2093
        %v2098 = vrsqrt.pop %v2094
        %v2099 = vmul.f32 %v2071, %v2095
        %v2100 = vmul.f32 %v2072, %v2096
        %v2101 = vmul.f32 %v2073, %v2097
        %v2102 = vmul.f32 %v2074, %v2098
        %v2103 = vlaneseq
        %v2104 = vshrl.u32 %v2103, 7
        %v2105 = vsub.s32 0, %v2104
        %v2106 = vrot.slane %v2052, %v2105
        %v2107 = vmul.f32 %v2099, %v2106
        %v2108 = vmul.f32 %v2100, %v2106
        %v2109 = vmul.f32 %v2101, %v2106
        %v2110 = vmul.f32 %v2102, %v2106
        %v2111 = vlaneseq
        %v2112 = vshrl.u32 %v2111, 7
        %v2113 = vsub.s32 0, %v2112
        %v2114 = vrot.slane %v2054, %v2113
        %v2115 = vadd.f32 %v2107, %v2114
        %v2116 = vadd.f32 %v2108, %v2114
        %v2117 = vadd.f32 %v2109, %v2114
        %v2118 = vadd.f32 %v2110, %v2114
        %v2119 = vpack.c.bf16 %v2116, %v2115
        %v2120 = vpack.c.bf16 %v2118, %v2117
        %s2121 = scalar_lea.vmem [#allocation7], 64
        %v2122 = vld [vmem:[%s2121] sm:$0xf]
        %v2123 = vld [vmem:[%s2121 + $0x4] sm:$0xf]
        %v2124 = vld [vmem:[%s2121 + $0x8] sm:$0xf]
        %v2125 = vld [vmem:[%s2121 + $0xc] sm:$0xf]
        %v2126 = vld [vmem:[%s2121 + $0x10] sm:$0xf]
        %v2127 = vld [vmem:[%s2121 + $0x14] sm:$0xf]
        %v2128 = vld [vmem:[%s2121 + $0x18] sm:$0xf]
        %v2129 = vld [vmem:[%s2121 + $0x1c] sm:$0xf]
        %v2130 = vld [vmem:[%s2121 + $0x20] sm:$0xf]
        %v2131 = vld [vmem:[%s2121 + $0x24] sm:$0xf]
        %v2132 = vld [vmem:[%s2121 + $0x28] sm:$0xf]
        %v2133 = vld [vmem:[%s2121 + $0x2c] sm:$0xf]
        %v2134 = vld [vmem:[%s2121 + $0x30] sm:$0xf]
        %v2135 = vld [vmem:[%s2121 + $0x34] sm:$0xf]
        %v2136 = vld [vmem:[%s2121 + $0x38] sm:$0xf]
        %v2137 = vld [vmem:[%s2121 + $0x3c] sm:$0xf]
        %s2138 = scalar_lea.vmem [#allocation8], 1
        %v2139 = vld [vmem:[%s2138] sm:$0x1]
        %v2141 = vlaneseq
        %v2142 = vshrl.u32 %v2141, 7
        %v2143 = vsub.s32 0, %v2142
        %v2144 = vrot.slane %v2139, %v2143
        %v2162 = vunpack.c.l.b16 %v2122
        %v2163 = vunpack.c.l.b16 %v2123
        %v2164 = vunpack.c.l.b16 %v2124
        %v2165 = vunpack.c.l.b16 %v2125
        %v2166 = vunpack.c.l.b16 %v2126
        %v2167 = vunpack.c.l.b16 %v2127
        %v2168 = vunpack.c.l.b16 %v2128
        %v2169 = vunpack.c.l.b16 %v2129
        %v2170 = vunpack.c.l.b16 %v2130
        %v2171 = vunpack.c.l.b16 %v2131
        %v2172 = vunpack.c.l.b16 %v2132
        %v2173 = vunpack.c.l.b16 %v2133
        %v2174 = vunpack.c.l.b16 %v2134
        %v2175 = vunpack.c.l.b16 %v2135
        %v2176 = vunpack.c.l.b16 %v2136
        %v2177 = vunpack.c.l.b16 %v2137
        %v2178 = vpack.c.b16 %v2163, %v2162
        %v2179 = vpack.c.b16 %v2165, %v2164
        %v2180 = vpack.c.b16 %v2167, %v2166
        %v2181 = vpack.c.b16 %v2169, %v2168
        %v2182 = vpack.c.b16 %v2171, %v2170
        %v2183 = vpack.c.b16 %v2173, %v2172
        %v2184 = vpack.c.b16 %v2175, %v2174
        %v2185 = vpack.c.b16 %v2177, %v2176
        %2194 = vmatprep.subr.bf16.mxu0 0
        %2195 = vmatpush1.bf16.msra.mxu0 %v2185
        %2196 = vmatprep.subr.bf16.mxu0 0
        %2197 = vmatpush1.bf16.msra.mxu0 %v2184
        %2198 = vmatprep.subr.bf16.mxu0 0
        %2199 = vmatpush1.bf16.msra.mxu0 %v2183
        %2200 = vmatprep.subr.bf16.mxu0 0
        %2201 = vmatpush1.bf16.msra.mxu0 %v2182
        %2202 = vmatprep.subr.bf16.mxu0 0
        %2203 = vmatpush1.bf16.msra.mxu0 %v2181
        %2204 = vmatprep.subr.bf16.mxu0 0
        %2205 = vmatpush1.bf16.msra.mxu0 %v2180
        %2206 = vmatprep.subr.bf16.mxu0 0
        %2207 = vmatpush1.bf16.msra.mxu0 %v2179
        %2208 = vmatprep.subr.bf16.mxu0 0
        %2209 = vmatpush1.bf16.msra.mxu0 %v2178
        %2210 = vmatprep.subr.bf16.mxu0 0
        %2211 = vmatpush2.bf16.msra.mxu0 0
        %2212 = vmatprep.subr.bf16.mxu0 0
        %2213 = vmatpush2.bf16.msra.mxu0 0
        %2214 = vmatprep.subr.bf16.mxu0 0
        %2215 = vmatpush2.bf16.msra.mxu0 0
        %2216 = vmatprep.subr.bf16.mxu0 0
        %2217 = vmatpush2.bf16.msra.mxu0 0
        %2218 = vmatprep.subr.bf16.mxu0 0
        %2219 = vmatpush2.bf16.msra.mxu0 0
        %2220 = vmatprep.subr.bf16.mxu0 0
        %2221 = vmatpush2.bf16.msra.mxu0 0
        %2222 = vmatprep.subr.bf16.mxu0 0
        %2223 = vmatpush2.bf16.msra.mxu0 0
        %2224 = vmatprep.subr.bf16.mxu0 0
        %2225 = vmatpush2.bf16.msra.mxu0 0
        %2226 = vmatprep.mubr.bf16.mxu0 0
        %2227 = vmatmul.mubr.bf16.gmra.mxu0 %v2119
        %v2228 = vpop.f32.mrf.mxu0
        %v2229 = vadd.f32 %v2144, %v2228
        %v2230 = vpop.f32.mrf.mxu0
        %v2231 = vpop.f32.mrf.mxu0
        %v2232 = vadd.f32 %v2144, %v2231
        %v2233 = vpop.f32.mrf.mxu0
        %2234 = vmatprep.mubr.bf16.mxu0 0
        %2235 = vmatmul.mubr.bf16.gmra.mxu0 %v2120
        %v2236 = vpop.f32.mrf.mxu0
        %v2237 = vadd.f32 %v2144, %v2236
        %v2238 = vpop.f32.mrf.mxu0
        %v2239 = vpop.f32.mrf.mxu0
        %v2240 = vadd.f32 %v2144, %v2239
        %v2241 = vpop.f32.mrf.mxu0
        %2242 = vdwg.mxu0
        %s2243 = scalar_lea.vmem [#allocation10], 64
        %v2244 = vld [vmem:[%s2243] sm:$0xf]
        %v2245 = vld [vmem:[%s2243 + $0x4] sm:$0xf]
        %v2246 = vld [vmem:[%s2243 + $0x8] sm:$0xf]
        %v2247 = vld [vmem:[%s2243 + $0xc] sm:$0xf]
        %v2248 = vld [vmem:[%s2243 + $0x10] sm:$0xf]
        %v2249 = vld [vmem:[%s2243 + $0x14] sm:$0xf]
        %v2250 = vld [vmem:[%s2243 + $0x18] sm:$0xf]
        %v2251 = vld [vmem:[%s2243 + $0x1c] sm:$0xf]
        %v2252 = vld [vmem:[%s2243 + $0x20] sm:$0xf]
        %v2253 = vld [vmem:[%s2243 + $0x24] sm:$0xf]
        %v2254 = vld [vmem:[%s2243 + $0x28] sm:$0xf]
        %v2255 = vld [vmem:[%s2243 + $0x2c] sm:$0xf]
        %v2256 = vld [vmem:[%s2243 + $0x30] sm:$0xf]
        %v2257 = vld [vmem:[%s2243 + $0x34] sm:$0xf]
        %v2258 = vld [vmem:[%s2243 + $0x38] sm:$0xf]
        %v2259 = vld [vmem:[%s2243 + $0x3c] sm:$0xf]
        %s2260 = scalar_lea.vmem [#allocation11], 1
        %v2261 = vld [vmem:[%s2260] sm:$0x1]
        %v2263 = vlaneseq
        %v2264 = vshrl.u32 %v2263, 7
        %v2265 = vsub.s32 0, %v2264
        %v2266 = vrot.slane %v2261, %v2265
        %v2284 = vunpack.c.l.b16 %v2244
        %v2285 = vunpack.c.l.b16 %v2245
        %v2286 = vunpack.c.l.b16 %v2246
        %v2287 = vunpack.c.l.b16 %v2247
        %v2288 = vunpack.c.l.b16 %v2248
        %v2289 = vunpack.c.l.b16 %v2249
        %v2290 = vunpack.c.l.b16 %v2250
        %v2291 = vunpack.c.l.b16 %v2251
        %v2292 = vunpack.c.l.b16 %v2252
        %v2293 = vunpack.c.l.b16 %v2253
        %v2294 = vunpack.c.l.b16 %v2254
        %v2295 = vunpack.c.l.b16 %v2255
        %v2296 = vunpack.c.l.b16 %v2256
        %v2297 = vunpack.c.l.b16 %v2257
        %v2298 = vunpack.c.l.b16 %v2258
        %v2299 = vunpack.c.l.b16 %v2259
        %v2300 = vpack.c.b16 %v2285, %v2284
        %v2301 = vpack.c.b16 %v2287, %v2286
        %v2302 = vpack.c.b16 %v2289, %v2288
        %v2303 = vpack.c.b16 %v2291, %v2290
        %v2304 = vpack.c.b16 %v2293, %v2292
        %v2305 = vpack.c.b16 %v2295, %v2294
        %v2306 = vpack.c.b16 %v2297, %v2296
        %v2307 = vpack.c.b16 %v2299, %v2298
        %2316 = vmatprep.subr.bf16.mxu0 0
        %2317 = vmatpush1.bf16.msra.mxu0 %v2307
        %2318 = vmatprep.subr.bf16.mxu0 0
        %2319 = vmatpush1.bf16.msra.mxu0 %v2306
        %2320 = vmatprep.subr.bf16.mxu0 0
        %2321 = vmatpush1.bf16.msra.mxu0 %v2305
        %2322 = vmatprep.subr.bf16.mxu0 0
        %2323 = vmatpush1.bf16.msra.mxu0 %v2304
        %2324 = vmatprep.subr.bf16.mxu0 0
        %2325 = vmatpush1.bf16.msra.mxu0 %v2303
        %2326 = vmatprep.subr.bf16.mxu0 0
        %2327 = vmatpush1.bf16.msra.mxu0 %v2302
        %2328 = vmatprep.subr.bf16.mxu0 0
        %2329 = vmatpush1.bf16.msra.mxu0 %v2301
        %2330 = vmatprep.subr.bf16.mxu0 0
        %2331 = vmatpush1.bf16.msra.mxu0 %v2300
        %2332 = vmatprep.subr.bf16.mxu0 0
        %2333 = vmatpush2.bf16.msra.mxu0 0
        %2334 = vmatprep.subr.bf16.mxu0 0
        %2335 = vmatpush2.bf16.msra.mxu0 0
        %2336 = vmatprep.subr.bf16.mxu0 0
        %2337 = vmatpush2.bf16.msra.mxu0 0
        %2338 = vmatprep.subr.bf16.mxu0 0
        %2339 = vmatpush2.bf16.msra.mxu0 0
        %2340 = vmatprep.subr.bf16.mxu0 0
        %2341 = vmatpush2.bf16.msra.mxu0 0
        %2342 = vmatprep.subr.bf16.mxu0 0
        %2343 = vmatpush2.bf16.msra.mxu0 0
        %2344 = vmatprep.subr.bf16.mxu0 0
        %2345 = vmatpush2.bf16.msra.mxu0 0
        %2346 = vmatprep.subr.bf16.mxu0 0
        %2347 = vmatpush2.bf16.msra.mxu0 0
        %2348 = vmatprep.mubr.bf16.mxu0 0
        %2349 = vmatmul.mubr.bf16.gmra.mxu0 %v2119
        %v2350 = vpop.f32.mrf.mxu0
        %v2351 = vadd.f32 %v2266, %v2350
        %v2352 = vpop.f32.mrf.mxu0
        %v2353 = vpop.f32.mrf.mxu0
        %v2354 = vadd.f32 %v2266, %v2353
        %v2355 = vpop.f32.mrf.mxu0
        %2356 = vmatprep.mubr.bf16.mxu0 0
        %2357 = vmatmul.mubr.bf16.gmra.mxu0 %v2120
        %v2358 = vpop.f32.mrf.mxu0
        %v2359 = vadd.f32 %v2266, %v2358
        %v2360 = vpop.f32.mrf.mxu0
        %v2361 = vpop.f32.mrf.mxu0
        %v2362 = vadd.f32 %v2266, %v2361
        %v2363 = vpop.f32.mrf.mxu0
        %2364 = vdwg.mxu0
        %s2365 = scalar_lea.vmem [#allocation13], 64
        %v2366 = vld [vmem:[%s2365] sm:$0xf]
        %v2367 = vld [vmem:[%s2365 + $0x4] sm:$0xf]
        %v2368 = vld [vmem:[%s2365 + $0x8] sm:$0xf]
        %v2369 = vld [vmem:[%s2365 + $0xc] sm:$0xf]
        %v2370 = vld [vmem:[%s2365 + $0x10] sm:$0xf]
        %v2371 = vld [vmem:[%s2365 + $0x14] sm:$0xf]
        %v2372 = vld [vmem:[%s2365 + $0x18] sm:$0xf]
        %v2373 = vld [vmem:[%s2365 + $0x1c] sm:$0xf]
        %v2374 = vld [vmem:[%s2365 + $0x20] sm:$0xf]
        %v2375 = vld [vmem:[%s2365 + $0x24] sm:$0xf]
        %v2376 = vld [vmem:[%s2365 + $0x28] sm:$0xf]
        %v2377 = vld [vmem:[%s2365 + $0x2c] sm:$0xf]
        %v2378 = vld [vmem:[%s2365 + $0x30] sm:$0xf]
        %v2379 = vld [vmem:[%s2365 + $0x34] sm:$0xf]
        %v2380 = vld [vmem:[%s2365 + $0x38] sm:$0xf]
        %v2381 = vld [vmem:[%s2365 + $0x3c] sm:$0xf]
        %s2382 = scalar_lea.vmem %s7, 1
        %v2383 = vld [vmem:[%s2382] sm:$0x1]
        %v2385 = vlaneseq
        %v2386 = vshrl.u32 %v2385, 7
        %v2387 = vsub.s32 0, %v2386
        %v2388 = vrot.slane %v2383, %v2387
        %v2406 = vunpack.c.l.b16 %v2366
        %v2407 = vunpack.c.l.b16 %v2367
        %v2408 = vunpack.c.l.b16 %v2368
        %v2409 = vunpack.c.l.b16 %v2369
        %v2410 = vunpack.c.l.b16 %v2370
        %v2411 = vunpack.c.l.b16 %v2371
        %v2412 = vunpack.c.l.b16 %v2372
        %v2413 = vunpack.c.l.b16 %v2373
        %v2414 = vunpack.c.l.b16 %v2374
        %v2415 = vunpack.c.l.b16 %v2375
        %v2416 = vunpack.c.l.b16 %v2376
        %v2417 = vunpack.c.l.b16 %v2377
        %v2418 = vunpack.c.l.b16 %v2378
        %v2419 = vunpack.c.l.b16 %v2379
        %v2420 = vunpack.c.l.b16 %v2380
        %v2421 = vunpack.c.l.b16 %v2381
        %v2422 = vpack.c.b16 %v2407, %v2406
        %v2423 = vpack.c.b16 %v2409, %v2408
        %v2424 = vpack.c.b16 %v2411, %v2410
        %v2425 = vpack.c.b16 %v2413, %v2412
        %v2426 = vpack.c.b16 %v2415, %v2414
        %v2427 = vpack.c.b16 %v2417, %v2416
        %v2428 = vpack.c.b16 %v2419, %v2418
        %v2429 = vpack.c.b16 %v2421, %v2420
        %2438 = vmatprep.subr.bf16.mxu0 0
        %2439 = vmatpush1.bf16.msra.mxu0 %v2429
        %2440 = vmatprep.subr.bf16.mxu0 0
        %2441 = vmatpush1.bf16.msra.mxu0 %v2428
        %2442 = vmatprep.subr.bf16.mxu0 0
        %2443 = vmatpush1.bf16.msra.mxu0 %v2427
        %2444 = vmatprep.subr.bf16.mxu0 0
        %2445 = vmatpush1.bf16.msra.mxu0 %v2426
        %2446 = vmatprep.subr.bf16.mxu0 0
        %2447 = vmatpush1.bf16.msra.mxu0 %v2425
        %2448 = vmatprep.subr.bf16.mxu0 0
        %2449 = vmatpush1.bf16.msra.mxu0 %v2424
        %2450 = vmatprep.subr.bf16.mxu0 0
        %2451 = vmatpush1.bf16.msra.mxu0 %v2423
        %2452 = vmatprep.subr.bf16.mxu0 0
        %2453 = vmatpush1.bf16.msra.mxu0 %v2422
        %2454 = vmatprep.subr.bf16.mxu0 0
        %2455 = vmatpush2.bf16.msra.mxu0 0
        %2456 = vmatprep.subr.bf16.mxu0 0
        %2457 = vmatpush2.bf16.msra.mxu0 0
        %2458 = vmatprep.subr.bf16.mxu0 0
        %2459 = vmatpush2.bf16.msra.mxu0 0
        %2460 = vmatprep.subr.bf16.mxu0 0
        %2461 = vmatpush2.bf16.msra.mxu0 0
        %2462 = vmatprep.subr.bf16.mxu0 0
        %2463 = vmatpush2.bf16.msra.mxu0 0
        %2464 = vmatprep.subr.bf16.mxu0 0
        %2465 = vmatpush2.bf16.msra.mxu0 0
        %2466 = vmatprep.subr.bf16.mxu0 0
        %2467 = vmatpush2.bf16.msra.mxu0 0
        %2468 = vmatprep.subr.bf16.mxu0 0
        %2469 = vmatpush2.bf16.msra.mxu0 0
        %2470 = vmatprep.mubr.bf16.mxu0 0
        %2471 = vmatmul.mubr.bf16.gmra.mxu0 %v2119
        %v2472 = vpop.f32.mrf.mxu0
        %v2473 = vadd.f32 %v2388, %v2472
        %v2474 = vpop.f32.mrf.mxu0
        %v2475 = vpop.f32.mrf.mxu0
        %v2476 = vadd.f32 %v2388, %v2475
        %v2477 = vpop.f32.mrf.mxu0
        %2478 = vmatprep.mubr.bf16.mxu0 0
        %2479 = vmatmul.mubr.bf16.gmra.mxu0 %v2120
        %v2480 = vpop.f32.mrf.mxu0
        %v2481 = vadd.f32 %v2388, %v2480
        %v2482 = vpop.f32.mrf.mxu0
        %v2483 = vpop.f32.mrf.mxu0
        %v2484 = vadd.f32 %v2388, %v2483
        %v2485 = vpop.f32.mrf.mxu0
        %2486 = vdwg.mxu0
        %v2487 = vpack.c.bf16 %v2229, %v2229
        %v2488 = vpack.c.bf16 %v2232, %v2232
        %v2489 = vpack.c.bf16 %v2237, %v2237
        %v2490 = vpack.c.bf16 %v2240, %v2240
        %v2491 = vpack.c.bf16 %v2351, %v2351
        %v2492 = vpack.c.bf16 %v2354, %v2354
        %v2493 = vpack.c.bf16 %v2359, %v2359
        %v2494 = vpack.c.bf16 %v2362, %v2362
        %v2495 = vpack.c.bf16 %v2473, %v2473
        %v2496 = vpack.c.bf16 %v2476, %v2476
        %v2497 = vpack.c.bf16 %v2481, %v2481
        %v2498 = vpack.c.bf16 %v2484, %v2484
        %2499 = vmatprep.subr.bf16.mxu0 0
        %2500 = vmatpush1.bf16.xpose.msra.mxu0 0
        %2501 = vmatprep.subr.bf16.mxu0 0
        %2502 = vmatpush1.bf16.xpose.msra.mxu0 0
        %2503 = vmatprep.subr.bf16.mxu0 0
        %2504 = vmatpush1.bf16.xpose.msra.mxu0 0
        %2505 = vmatprep.subr.bf16.mxu0 0
        %2506 = vmatpush1.bf16.xpose.msra.mxu0 0
        %2507 = vmatprep.subr.bf16.mxu0 0
        %2508 = vmatpush1.bf16.xpose.msra.mxu0 0
        %2509 = vmatprep.subr.bf16.mxu0 0
        %2510 = vmatpush1.bf16.xpose.msra.mxu0 0
        %2511 = vmatprep.subr.bf16.mxu0 0
        %2512 = vmatpush1.bf16.xpose.msra.mxu0 0
        %2513 = vmatprep.subr.bf16.mxu0 0
        %2514 = vmatpush1.bf16.xpose.msra.mxu0 %v2491
        %2515 = vmatprep.subr.bf16.mxu0 0
        %2516 = vmatpush2.bf16.xpose.msra.mxu0 0
        %2517 = vmatprep.subr.bf16.mxu0 0
        %2518 = vmatpush2.bf16.xpose.msra.mxu0 0
        %2519 = vmatprep.subr.bf16.mxu0 0
        %2520 = vmatpush2.bf16.xpose.msra.mxu0 0
        %2521 = vmatprep.subr.bf16.mxu0 0
        %2522 = vmatpush2.bf16.xpose.msra.mxu0 0
        %2523 = vmatprep.subr.bf16.mxu0 0
        %2524 = vmatpush2.bf16.xpose.msra.mxu0 0
        %2525 = vmatprep.subr.bf16.mxu0 0
        %2526 = vmatpush2.bf16.xpose.msra.mxu0 0
        %2527 = vmatprep.subr.bf16.mxu0 0
        %2528 = vmatpush2.bf16.xpose.msra.mxu0 0
        %2529 = vmatprep.subr.bf16.mxu0 0
        %2530 = vmatpush2.bf16.xpose.msra.mxu0 0
        %2531 = vmatprep.mubr.bf16.mxu0 0
        %2532 = vmatmul.mubr.bf16.gmra.mxu0 %v2487
        %v2533 = vpop.f32.mrf.mxu0
        %v2534 = vadd.f32 0.0, %v2533
        %v2535 = vpop.f32.mrf.mxu0
        %v2536 = vpop.f32.mrf.mxu0
        %v2537 = vpop.f32.mrf.mxu0
        %2538 = vdwg.mxu0
        %2539 = vmatprep.subr.bf16.mxu0 0
        %2540 = vmatpush1.bf16.xpose.msra.mxu0 0
        %2541 = vmatprep.subr.bf16.mxu0 0
        %2542 = vmatpush1.bf16.xpose.msra.mxu0 0
        %2543 = vmatprep.subr.bf16.mxu0 0
        %2544 = vmatpush1.bf16.xpose.msra.mxu0 0
        %2545 = vmatprep.subr.bf16.mxu0 0
        %2546 = vmatpush1.bf16.xpose.msra.mxu0 0
        %2547 = vmatprep.subr.bf16.mxu0 0
        %2548 = vmatpush1.bf16.xpose.msra.mxu0 0
        %2549 = vmatprep.subr.bf16.mxu0 0
        %2550 = vmatpush1.bf16.xpose.msra.mxu0 0
        %2551 = vmatprep.subr.bf16.mxu0 0
        %2552 = vmatpush1.bf16.xpose.msra.mxu0 0
        %2553 = vmatprep.subr.bf16.mxu0 0
        %2554 = vmatpush1.bf16.xpose.msra.mxu0 %v2492
        %2555 = vmatprep.subr.bf16.mxu0 0
        %2556 = vmatpush2.bf16.xpose.msra.mxu0 0
        %2557 = vmatprep.subr.bf16.mxu0 0
        %2558 = vmatpush2.bf16.xpose.msra.mxu0 0
        %2559 = vmatprep.subr.bf16.mxu0 0
        %2560 = vmatpush2.bf16.xpose.msra.mxu0 0
        %2561 = vmatprep.subr.bf16.mxu0 0
        %2562 = vmatpush2.bf16.xpose.msra.mxu0 0
        %2563 = vmatprep.subr.bf16.mxu0 0
        %2564 = vmatpush2.bf16.xpose.msra.mxu0 0
        %2565 = vmatprep.subr.bf16.mxu0 0
        %2566 = vmatpush2.bf16.xpose.msra.mxu0 0
        %2567 = vmatprep.subr.bf16.mxu0 0
        %2568 = vmatpush2.bf16.xpose.msra.mxu0 0
        %2569 = vmatprep.subr.bf16.mxu0 0
        %2570 = vmatpush2.bf16.xpose.msra.mxu0 0
        %2571 = vmatprep.mubr.bf16.mxu0 0
        %2572 = vmatmul.mubr.bf16.gmra.mxu0 %v2488
        %v2573 = vpop.f32.mrf.mxu0
        %v2574 = vadd.f32 0.0, %v2573
        %v2575 = vpop.f32.mrf.mxu0
        %v2576 = vpop.f32.mrf.mxu0
        %v2577 = vpop.f32.mrf.mxu0
        %2578 = vdwg.mxu0
        %2579 = vmatprep.subr.bf16.mxu0 0
        %2580 = vmatpush1.bf16.xpose.msra.mxu0 0
        %2581 = vmatprep.subr.bf16.mxu0 0
        %2582 = vmatpush1.bf16.xpose.msra.mxu0 0
        %2583 = vmatprep.subr.bf16.mxu0 0
        %2584 = vmatpush1.bf16.xpose.msra.mxu0 0
        %2585 = vmatprep.subr.bf16.mxu0 0
        %2586 = vmatpush1.bf16.xpose.msra.mxu0 0
        %2587 = vmatprep.subr.bf16.mxu0 0
        %2588 = vmatpush1.bf16.xpose.msra.mxu0 0
        %2589 = vmatprep.subr.bf16.mxu0 0
        %2590 = vmatpush1.bf16.xpose.msra.mxu0 0
        %2591 = vmatprep.subr.bf16.mxu0 0
        %2592 = vmatpush1.bf16.xpose.msra.mxu0 0
        %2593 = vmatprep.subr.bf16.mxu0 0
        %2594 = vmatpush1.bf16.xpose.msra.mxu0 %v2493
        %2595 = vmatprep.subr.bf16.mxu0 0
        %2596 = vmatpush2.bf16.xpose.msra.mxu0 0
        %2597 = vmatprep.subr.bf16.mxu0 0
        %2598 = vmatpush2.bf16.xpose.msra.mxu0 0
        %2599 = vmatprep.subr.bf16.mxu0 0
        %2600 = vmatpush2.bf16.xpose.msra.mxu0 0
        %2601 = vmatprep.subr.bf16.mxu0 0
        %2602 = vmatpush2.bf16.xpose.msra.mxu0 0
        %2603 = vmatprep.subr.bf16.mxu0 0
        %2604 = vmatpush2.bf16.xpose.msra.mxu0 0
        %2605 = vmatprep.subr.bf16.mxu0 0
        %2606 = vmatpush2.bf16.xpose.msra.mxu0 0
        %2607 = vmatprep.subr.bf16.mxu0 0
        %2608 = vmatpush2.bf16.xpose.msra.mxu0 0
        %2609 = vmatprep.subr.bf16.mxu0 0
        %2610 = vmatpush2.bf16.xpose.msra.mxu0 0
        %2611 = vmatprep.mubr.bf16.mxu0 0
        %2612 = vmatmul.mubr.bf16.gmra.mxu0 %v2489
        %v2613 = vpop.f32.mrf.mxu0
        %v2614 = vadd.f32 0.0, %v2613
        %v2615 = vpop.f32.mrf.mxu0
        %v2616 = vpop.f32.mrf.mxu0
        %v2617 = vpop.f32.mrf.mxu0
        %2618 = vdwg.mxu0
        %2619 = vmatprep.subr.bf16.mxu0 0
        %2620 = vmatpush1.bf16.xpose.msra.mxu0 0
        %2621 = vmatprep.subr.bf16.mxu0 0
        %2622 = vmatpush1.bf16.xpose.msra.mxu0 0
        %2623 = vmatprep.subr.bf16.mxu0 0
        %2624 = vmatpush1.bf16.xpose.msra.mxu0 0
        %2625 = vmatprep.subr.bf16.mxu0 0
        %2626 = vmatpush1.bf16.xpose.msra.mxu0 0
        %2627 = vmatprep.subr.bf16.mxu0 0
        %2628 = vmatpush1.bf16.xpose.msra.mxu0 0
        %2629 = vmatprep.subr.bf16.mxu0 0
        %2630 = vmatpush1.bf16.xpose.msra.mxu0 0
        %2631 = vmatprep.subr.bf16.mxu0 0
        %2632 = vmatpush1.bf16.xpose.msra.mxu0 0
        %2633 = vmatprep.subr.bf16.mxu0 0
        %2634 = vmatpush1.bf16.xpose.msra.mxu0 %v2494
        %2635 = vmatprep.subr.bf16.mxu0 0
        %2636 = vmatpush2.bf16.xpose.msra.mxu0 0
        %2637 = vmatprep.subr.bf16.mxu0 0
        %2638 = vmatpush2.bf16.xpose.msra.mxu0 0
        %2639 = vmatprep.subr.bf16.mxu0 0
        %2640 = vmatpush2.bf16.xpose.msra.mxu0 0
        %2641 = vmatprep.subr.bf16.mxu0 0
        %2642 = vmatpush2.bf16.xpose.msra.mxu0 0
        %2643 = vmatprep.subr.bf16.mxu0 0
        %2644 = vmatpush2.bf16.xpose.msra.mxu0 0
        %2645 = vmatprep.subr.bf16.mxu0 0
        %2646 = vmatpush2.bf16.xpose.msra.mxu0 0
        %2647 = vmatprep.subr.bf16.mxu0 0
        %2648 = vmatpush2.bf16.xpose.msra.mxu0 0
        %2649 = vmatprep.subr.bf16.mxu0 0
        %2650 = vmatpush2.bf16.xpose.msra.mxu0 0
        %2651 = vmatprep.mubr.bf16.mxu0 0
        %2652 = vmatmul.mubr.bf16.gmra.mxu0 %v2490
        %v2653 = vpop.f32.mrf.mxu0
        %v2654 = vadd.f32 0.0, %v2653
        %v2655 = vpop.f32.mrf.mxu0
        %v2656 = vpop.f32.mrf.mxu0
        %v2657 = vpop.f32.mrf.mxu0
        %2658 = vdwg.mxu0
        %v2659 = vmul.f32 %v2534, 0.17677669
        %v2660 = vmul.f32 %v2574, 0.17677669
        %v2661 = vmul.f32 %v2614, 0.17677669
        %v2662 = vmul.f32 %v2654, 0.17677669
        %v2663 = vadd.f32 %v2659, %v761
        %v2664 = vadd.f32 %v2660, %v762
        %v2665 = vadd.f32 %v2661, %v763
        %v2666 = vadd.f32 %v2662, %v764
        %v2667 = vsel %vm1375, %v2663, -inf
        %2668 = vmax.xlane.f32.xlu0 %v2667
        %v2669 = vpop.xlane.xlu0 %2668
        %v2670 = vsel %vm1375, %v2664, -inf
        %2671 = vmax.xlane.f32.xlu0 %v2670
        %v2672 = vpop.xlane.xlu0 %2671
        %v2673 = vsel %vm1375, %v2665, -inf
        %2674 = vmax.xlane.f32.xlu0 %v2673
        %v2675 = vpop.xlane.xlu0 %2674
        %v2676 = vsel %vm1375, %v2666, -inf
        %2677 = vmax.xlane.f32.xlu0 %v2676
        %v2678 = vpop.xlane.xlu0 %2677
        %v2679 = vsub.f32 %v2663, %v2669
        %v2680 = vsub.f32 %v2664, %v2672
        %v2681 = vsub.f32 %v2665, %v2675
        %v2682 = vsub.f32 %v2666, %v2678
        %v2683 = vmul.f32 %v2679, 1.442695
        %v2684 = vpow.pop %v2683
        %v2685 = vmul.f32 %v2680, 1.442695
        %v2686 = vpow.pop %v2685
        %v2687 = vmul.f32 %v2681, 1.442695
        %v2688 = vpow.pop %v2687
        %v2689 = vmul.f32 %v2682, 1.442695
        %v2690 = vpow.pop %v2689
        %v2691 = vsel %vm1375, %v2684, 0.0
        %2692 = vadd.xlane.f32.xlu0 %v2691
        %v2693 = vpop.xlane.xlu0 %2692
        %v2694 = vsel %vm1375, %v2686, 0.0
        %2695 = vadd.xlane.f32.xlu0 %v2694
        %v2696 = vpop.xlane.xlu0 %2695
        %v2697 = vsel %vm1375, %v2688, 0.0
        %2698 = vadd.xlane.f32.xlu0 %v2697
        %v2699 = vpop.xlane.xlu0 %2698
        %v2700 = vsel %vm1375, %v2690, 0.0
        %2701 = vadd.xlane.f32.xlu0 %v2700
        %v2702 = vpop.xlane.xlu0 %2701
        %v2703 = vrcp.pop %v2693
        %v2704 = vrcp.pop %v2696
        %v2705 = vrcp.pop %v2699
        %v2706 = vrcp.pop %v2702
        %v2707 = vmul.f32 %v2684, %v2703
        %v2708 = vmul.f32 %v2686, %v2704
        %v2709 = vmul.f32 %v2688, %v2705
        %v2710 = vmul.f32 %v2690, %v2706
        %v2711 = vpack.c.bf16 %v2707, %v2707
        %v2712 = vpack.c.bf16 %v2708, %v2708
        %v2713 = vpack.c.bf16 %v2709, %v2709
        %v2714 = vpack.c.bf16 %v2710, %v2710
        %v2716 = vsel %vm1375, %v2711, 0
        %v2719 = vsel %vm1427, %v2495, 0
        %2721 = vmatprep.subr.bf16.mxu0 0
        %2722 = vmatpush1.bf16.msra.mxu0 0
        %2723 = vmatprep.subr.bf16.mxu0 0
        %2724 = vmatpush1.bf16.msra.mxu0 0
        %2725 = vmatprep.subr.bf16.mxu0 0
        %2726 = vmatpush1.bf16.msra.mxu0 0
        %2727 = vmatprep.subr.bf16.mxu0 0
        %2728 = vmatpush1.bf16.msra.mxu0 0
        %2729 = vmatprep.subr.bf16.mxu0 0
        %2730 = vmatpush1.bf16.msra.mxu0 0
        %2731 = vmatprep.subr.bf16.mxu0 0
        %2732 = vmatpush1.bf16.msra.mxu0 0
        %2733 = vmatprep.subr.bf16.mxu0 0
        %2734 = vmatpush1.bf16.msra.mxu0 0
        %2735 = vmatprep.subr.bf16.mxu0 0
        %2736 = vmatpush1.bf16.msra.mxu0 %v2719
        %2737 = vmatprep.subr.bf16.mxu0 0
        %2738 = vmatpush2.bf16.msra.mxu0 0
        %2739 = vmatprep.subr.bf16.mxu0 0
        %2740 = vmatpush2.bf16.msra.mxu0 0
        %2741 = vmatprep.subr.bf16.mxu0 0
        %2742 = vmatpush2.bf16.msra.mxu0 0
        %2743 = vmatprep.subr.bf16.mxu0 0
        %2744 = vmatpush2.bf16.msra.mxu0 0
        %2745 = vmatprep.subr.bf16.mxu0 0
        %2746 = vmatpush2.bf16.msra.mxu0 0
        %2747 = vmatprep.subr.bf16.mxu0 0
        %2748 = vmatpush2.bf16.msra.mxu0 0
        %2749 = vmatprep.subr.bf16.mxu0 0
        %2750 = vmatpush2.bf16.msra.mxu0 0
        %2751 = vmatprep.subr.bf16.mxu0 0
        %2752 = vmatpush2.bf16.msra.mxu0 0
        %2753 = vmatprep.mubr.bf16.mxu0 0
        %2754 = vmatmul.mubr.bf16.gmra.mxu0 %v2716
        %v2755 = vpop.f32.mrf.mxu0
        %v2756 = vadd.f32 0.0, %v2755
        %v2757 = vpop.f32.mrf.mxu0
        %v2758 = vpop.f32.mrf.mxu0
        %v2759 = vpop.f32.mrf.mxu0
        %2760 = vdwg.mxu0
        %v2762 = vsel %vm1375, %v2712, 0
        %v2765 = vsel %vm1427, %v2496, 0
        %2767 = vmatprep.subr.bf16.mxu0 0
        %2768 = vmatpush1.bf16.msra.mxu0 0
        %2769 = vmatprep.subr.bf16.mxu0 0
        %2770 = vmatpush1.bf16.msra.mxu0 0
        %2771 = vmatprep.subr.bf16.mxu0 0
        %2772 = vmatpush1.bf16.msra.mxu0 0
        %2773 = vmatprep.subr.bf16.mxu0 0
        %2774 = vmatpush1.bf16.msra.mxu0 0
        %2775 = vmatprep.subr.bf16.mxu0 0
        %2776 = vmatpush1.bf16.msra.mxu0 0
        %2777 = vmatprep.subr.bf16.mxu0 0
        %2778 = vmatpush1.bf16.msra.mxu0 0
        %2779 = vmatprep.subr.bf16.mxu0 0
        %2780 = vmatpush1.bf16.msra.mxu0 0
        %2781 = vmatprep.subr.bf16.mxu0 0
        %2782 = vmatpush1.bf16.msra.mxu0 %v2765
        %2783 = vmatprep.subr.bf16.mxu0 0
        %2784 = vmatpush2.bf16.msra.mxu0 0
        %2785 = vmatprep.subr.bf16.mxu0 0
        %2786 = vmatpush2.bf16.msra.mxu0 0
        %2787 = vmatprep.subr.bf16.mxu0 0
        %2788 = vmatpush2.bf16.msra.mxu0 0
        %2789 = vmatprep.subr.bf16.mxu0 0
        %2790 = vmatpush2.bf16.msra.mxu0 0
        %2791 = vmatprep.subr.bf16.mxu0 0
        %2792 = vmatpush2.bf16.msra.mxu0 0
        %2793 = vmatprep.subr.bf16.mxu0 0
        %2794 = vmatpush2.bf16.msra.mxu0 0
        %2795 = vmatprep.subr.bf16.mxu0 0
        %2796 = vmatpush2.bf16.msra.mxu0 0
        %2797 = vmatprep.subr.bf16.mxu0 0
        %2798 = vmatpush2.bf16.msra.mxu0 0
        %2799 = vmatprep.mubr.bf16.mxu0 0
        %2800 = vmatmul.mubr.bf16.gmra.mxu0 %v2762
        %v2801 = vpop.f32.mrf.mxu0
        %v2802 = vadd.f32 0.0, %v2801
        %v2803 = vpop.f32.mrf.mxu0
        %v2804 = vpop.f32.mrf.mxu0
        %v2805 = vpop.f32.mrf.mxu0
        %2806 = vdwg.mxu0
        %v2808 = vsel %vm1375, %v2713, 0
        %v2811 = vsel %vm1427, %v2497, 0
        %2813 = vmatprep.subr.bf16.mxu0 0
        %2814 = vmatpush1.bf16.msra.mxu0 0
        %2815 = vmatprep.subr.bf16.mxu0 0
        %2816 = vmatpush1.bf16.msra.mxu0 0
        %2817 = vmatprep.subr.bf16.mxu0 0
        %2818 = vmatpush1.bf16.msra.mxu0 0
        %2819 = vmatprep.subr.bf16.mxu0 0
        %2820 = vmatpush1.bf16.msra.mxu0 0
        %2821 = vmatprep.subr.bf16.mxu0 0
        %2822 = vmatpush1.bf16.msra.mxu0 0
        %2823 = vmatprep.subr.bf16.mxu0 0
        %2824 = vmatpush1.bf16.msra.mxu0 0
        %2825 = vmatprep.subr.bf16.mxu0 0
        %2826 = vmatpush1.bf16.msra.mxu0 0
        %2827 = vmatprep.subr.bf16.mxu0 0
        %2828 = vmatpush1.bf16.msra.mxu0 %v2811
        %2829 = vmatprep.subr.bf16.mxu0 0
        %2830 = vmatpush2.bf16.msra.mxu0 0
        %2831 = vmatprep.subr.bf16.mxu0 0
        %2832 = vmatpush2.bf16.msra.mxu0 0
        %2833 = vmatprep.subr.bf16.mxu0 0
        %2834 = vmatpush2.bf16.msra.mxu0 0
        %2835 = vmatprep.subr.bf16.mxu0 0
        %2836 = vmatpush2.bf16.msra.mxu0 0
        %2837 = vmatprep.subr.bf16.mxu0 0
        %2838 = vmatpush2.bf16.msra.mxu0 0
        %2839 = vmatprep.subr.bf16.mxu0 0
        %2840 = vmatpush2.bf16.msra.mxu0 0
        %2841 = vmatprep.subr.bf16.mxu0 0
        %2842 = vmatpush2.bf16.msra.mxu0 0
        %2843 = vmatprep.subr.bf16.mxu0 0
        %2844 = vmatpush2.bf16.msra.mxu0 0
        %2845 = vmatprep.mubr.bf16.mxu0 0
        %2846 = vmatmul.mubr.bf16.gmra.mxu0 %v2808
        %v2847 = vpop.f32.mrf.mxu0
        %v2848 = vadd.f32 0.0, %v2847
        %v2849 = vpop.f32.mrf.mxu0
        %v2850 = vpop.f32.mrf.mxu0
        %v2851 = vpop.f32.mrf.mxu0
        %2852 = vdwg.mxu0
        %v2854 = vsel %vm1375, %v2714, 0
        %v2857 = vsel %vm1427, %v2498, 0
        %2859 = vmatprep.subr.bf16.mxu0 0
        %2860 = vmatpush1.bf16.msra.mxu0 0
        %2861 = vmatprep.subr.bf16.mxu0 0
        %2862 = vmatpush1.bf16.msra.mxu0 0
        %2863 = vmatprep.subr.bf16.mxu0 0
        %2864 = vmatpush1.bf16.msra.mxu0 0
        %2865 = vmatprep.subr.bf16.mxu0 0
        %2866 = vmatpush1.bf16.msra.mxu0 0
        %2867 = vmatprep.subr.bf16.mxu0 0
        %2868 = vmatpush1.bf16.msra.mxu0 0
        %2869 = vmatprep.subr.bf16.mxu0 0
        %2870 = vmatpush1.bf16.msra.mxu0 0
        %2871 = vmatprep.subr.bf16.mxu0 0
        %2872 = vmatpush1.bf16.msra.mxu0 0
        %2873 = vmatprep.subr.bf16.mxu0 0
        %2874 = vmatpush1.bf16.msra.mxu0 %v2857
        %2875 = vmatprep.subr.bf16.mxu0 0
        %2876 = vmatpush2.bf16.msra.mxu0 0
        %2877 = vmatprep.subr.bf16.mxu0 0
        %2878 = vmatpush2.bf16.msra.mxu0 0
        %2879 = vmatprep.subr.bf16.mxu0 0
        %2880 = vmatpush2.bf16.msra.mxu0 0
        %2881 = vmatprep.subr.bf16.mxu0 0
        %2882 = vmatpush2.bf16.msra.mxu0 0
        %2883 = vmatprep.subr.bf16.mxu0 0
        %2884 = vmatpush2.bf16.msra.mxu0 0
        %2885 = vmatprep.subr.bf16.mxu0 0
        %2886 = vmatpush2.bf16.msra.mxu0 0
        %2887 = vmatprep.subr.bf16.mxu0 0
        %2888 = vmatpush2.bf16.msra.mxu0 0
        %2889 = vmatprep.subr.bf16.mxu0 0
        %2890 = vmatpush2.bf16.msra.mxu0 0
        %2891 = vmatprep.mubr.bf16.mxu0 0
        %2892 = vmatmul.mubr.bf16.gmra.mxu0 %v2854
        %v2893 = vpop.f32.mrf.mxu0
        %v2894 = vadd.f32 0.0, %v2893
        %v2895 = vpop.f32.mrf.mxu0
        %v2896 = vpop.f32.mrf.mxu0
        %v2897 = vpop.f32.mrf.mxu0
        %2898 = vdwg.mxu0
        %v2899 = vpack.c.bf16 %v2802, %v2756
        %v2900 = vpack.c.bf16 %v2894, %v2848
        %s2901 = scalar_lea.vmem [#allocation14], 64
        %v2902 = vld [vmem:[%s2901] sm:$0xf]
        %v2903 = vld [vmem:[%s2901 + $0x4] sm:$0xf]
        %v2904 = vld [vmem:[%s2901 + $0x8] sm:$0xf]
        %v2905 = vld [vmem:[%s2901 + $0xc] sm:$0xf]
        %v2906 = vld [vmem:[%s2901 + $0x10] sm:$0xf]
        %v2907 = vld [vmem:[%s2901 + $0x14] sm:$0xf]
        %v2908 = vld [vmem:[%s2901 + $0x18] sm:$0xf]
        %v2909 = vld [vmem:[%s2901 + $0x1c] sm:$0xf]
        %v2910 = vld [vmem:[%s2901 + $0x20] sm:$0xf]
        %v2911 = vld [vmem:[%s2901 + $0x24] sm:$0xf]
        %v2912 = vld [vmem:[%s2901 + $0x28] sm:$0xf]
        %v2913 = vld [vmem:[%s2901 + $0x2c] sm:$0xf]
        %v2914 = vld [vmem:[%s2901 + $0x30] sm:$0xf]
        %v2915 = vld [vmem:[%s2901 + $0x34] sm:$0xf]
        %v2916 = vld [vmem:[%s2901 + $0x38] sm:$0xf]
        %v2917 = vld [vmem:[%s2901 + $0x3c] sm:$0xf]
        %s2918 = scalar_lea.vmem %s9, 1
        %v2919 = vld [vmem:[%s2918] sm:$0x1]
        %v2921 = vlaneseq
        %v2922 = vshrl.u32 %v2921, 7
        %v2923 = vsub.s32 0, %v2922
        %v2924 = vrot.slane %v2919, %v2923
        %v2942 = vunpack.c.l.b16 %v2902
        %v2943 = vunpack.c.l.b16 %v2903
        %v2944 = vunpack.c.l.b16 %v2904
        %v2945 = vunpack.c.l.b16 %v2905
        %v2946 = vunpack.c.l.b16 %v2906
        %v2947 = vunpack.c.l.b16 %v2907
        %v2948 = vunpack.c.l.b16 %v2908
        %v2949 = vunpack.c.l.b16 %v2909
        %v2950 = vunpack.c.l.b16 %v2910
        %v2951 = vunpack.c.l.b16 %v2911
        %v2952 = vunpack.c.l.b16 %v2912
        %v2953 = vunpack.c.l.b16 %v2913
        %v2954 = vunpack.c.l.b16 %v2914
        %v2955 = vunpack.c.l.b16 %v2915
        %v2956 = vunpack.c.l.b16 %v2916
        %v2957 = vunpack.c.l.b16 %v2917
        %v2958 = vpack.c.b16 %v2943, %v2942
        %v2959 = vpack.c.b16 %v2945, %v2944
        %v2960 = vpack.c.b16 %v2947, %v2946
        %v2961 = vpack.c.b16 %v2949, %v2948
        %v2962 = vpack.c.b16 %v2951, %v2950
        %v2963 = vpack.c.b16 %v2953, %v2952
        %v2964 = vpack.c.b16 %v2955, %v2954
        %v2965 = vpack.c.b16 %v2957, %v2956
        %2974 = vmatprep.subr.bf16.mxu0 0
        %2975 = vmatpush1.bf16.msra.mxu0 %v2965
        %2976 = vmatprep.subr.bf16.mxu0 0
        %2977 = vmatpush1.bf16.msra.mxu0 %v2964
        %2978 = vmatprep.subr.bf16.mxu0 0
        %2979 = vmatpush1.bf16.msra.mxu0 %v2963
        %2980 = vmatprep.subr.bf16.mxu0 0
        %2981 = vmatpush1.bf16.msra.mxu0 %v2962
        %2982 = vmatprep.subr.bf16.mxu0 0
        %2983 = vmatpush1.bf16.msra.mxu0 %v2961
        %2984 = vmatprep.subr.bf16.mxu0 0
        %2985 = vmatpush1.bf16.msra.mxu0 %v2960
        %2986 = vmatprep.subr.bf16.mxu0 0
        %2987 = vmatpush1.bf16.msra.mxu0 %v2959
        %2988 = vmatprep.subr.bf16.mxu0 0
        %2989 = vmatpush1.bf16.msra.mxu0 %v2958
        %2990 = vmatprep.subr.bf16.mxu0 0
        %2991 = vmatpush2.bf16.msra.mxu0 0
        %2992 = vmatprep.subr.bf16.mxu0 0
        %2993 = vmatpush2.bf16.msra.mxu0 0
        %2994 = vmatprep.subr.bf16.mxu0 0
        %2995 = vmatpush2.bf16.msra.mxu0 0
        %2996 = vmatprep.subr.bf16.mxu0 0
        %2997 = vmatpush2.bf16.msra.mxu0 0
        %2998 = vmatprep.subr.bf16.mxu0 0
        %2999 = vmatpush2.bf16.msra.mxu0 0
        %3000 = vmatprep.subr.bf16.mxu0 0
        %3001 = vmatpush2.bf16.msra.mxu0 0
        %3002 = vmatprep.subr.bf16.mxu0 0
        %3003 = vmatpush2.bf16.msra.mxu0 0
        %3004 = vmatprep.subr.bf16.mxu0 0
        %3005 = vmatpush2.bf16.msra.mxu0 0
        %3006 = vmatprep.mubr.bf16.mxu0 0
        %3007 = vmatmul.mubr.bf16.gmra.mxu0 %v2899
        %v3008 = vpop.f32.mrf.mxu0
        %v3009 = vadd.f32 %v2924, %v3008
        %v3010 = vpop.f32.mrf.mxu0
        %v3011 = vpop.f32.mrf.mxu0
        %v3012 = vadd.f32 %v2924, %v3011
        %v3013 = vpop.f32.mrf.mxu0
        %3014 = vmatprep.mubr.bf16.mxu0 0
        %3015 = vmatmul.mubr.bf16.gmra.mxu0 %v2900
        %v3016 = vpop.f32.mrf.mxu0
        %v3017 = vadd.f32 %v2924, %v3016
        %v3018 = vpop.f32.mrf.mxu0
        %v3019 = vpop.f32.mrf.mxu0
        %v3020 = vadd.f32 %v2924, %v3019
        %v3021 = vpop.f32.mrf.mxu0
        %3022 = vdwg.mxu0
        %v3023 = vadd.f32 %v2047, %v3009
        %v3024 = vadd.f32 %v2048, %v3012
        %v3025 = vadd.f32 %v2049, %v3017
        %v3026 = vadd.f32 %v2050, %v3020
        %3027 = vadd.xlane.f32.xlu0 %v3023
        %v3028 = vpop.xlane.xlu0 %3027
        %3029 = vadd.xlane.f32.xlu0 %v3024
        %v3030 = vpop.xlane.xlu0 %3029
        %3031 = vadd.xlane.f32.xlu0 %v3025
        %v3032 = vpop.xlane.xlu0 %3031
        %3033 = vadd.xlane.f32.xlu0 %v3026
        %v3034 = vpop.xlane.xlu0 %3033
        %v3035 = vmul.f32 %v3028, 0.03125
        %v3036 = vmul.f32 %v3030, 0.03125
        %v3037 = vmul.f32 %v3032, 0.03125
        %v3038 = vmul.f32 %v3034, 0.03125
        %v3039 = vsub.f32 %v3023, %v3035
        %v3040 = vsub.f32 %v3024, %v3036
        %v3041 = vsub.f32 %v3025, %v3037
        %v3042 = vsub.f32 %v3026, %v3038
        %v3043 = vsel %vm784, %v3039, 0.0
        %v3044 = vsel %vm784, %v3040, 0.0
        %v3045 = vsel %vm784, %v3041, 0.0
        %v3046 = vsel %vm784, %v3042, 0.0
        %v3047 = vmul.f32 %v3043, %v3043
        %v3048 = vmul.f32 %v3044, %v3044
        %v3049 = vmul.f32 %v3045, %v3045
        %v3050 = vmul.f32 %v3046, %v3046
        %3051 = vadd.xlane.f32.xlu0 %v3047
        %v3052 = vpop.xlane.xlu0 %3051
        %3053 = vadd.xlane.f32.xlu0 %v3048
        %v3054 = vpop.xlane.xlu0 %3053
        %3055 = vadd.xlane.f32.xlu0 %v3049
        %v3056 = vpop.xlane.xlu0 %3055
        %3057 = vadd.xlane.f32.xlu0 %v3050
        %v3058 = vpop.xlane.xlu0 %3057
        %v3059 = vmul.f32 %v3052, 0.03125
        %v3060 = vmul.f32 %v3054, 0.03125
        %v3061 = vmul.f32 %v3056, 0.03125
        %v3062 = vmul.f32 %v3058, 0.03125
        %v3063 = vadd.f32 %v3059, 1e-05
        %v3064 = vadd.f32 %v3060, 1e-05
        %v3065 = vadd.f32 %v3061, 1e-05
        %v3066 = vadd.f32 %v3062, 1e-05
        %v3067 = vrsqrt.pop %v3063
        %v3068 = vrsqrt.pop %v3064
        %v3069 = vrsqrt.pop %v3065
        %v3070 = vrsqrt.pop %v3066
        %v3071 = vmul.f32 %v3043, %v3067
        %v3072 = vmul.f32 %v3044, %v3068
        %v3073 = vmul.f32 %v3045, %v3069
        %v3074 = vmul.f32 %v3046, %v3070
        %v3075 = vlaneseq
        %v3076 = vshrl.u32 %v3075, 7
        %v3077 = vsub.s32 1, %v3076
        %v3078 = vrot.slane %v2052, %v3077
        %v3079 = vmul.f32 %v3071, %v3078
        %v3080 = vmul.f32 %v3072, %v3078
        %v3081 = vmul.f32 %v3073, %v3078
        %v3082 = vmul.f32 %v3074, %v3078
        %v3083 = vlaneseq
        %v3084 = vshrl.u32 %v3083, 7
        %v3085 = vsub.s32 1, %v3084
        %v3086 = vrot.slane %v2054, %v3085
        %v3087 = vadd.f32 %v3079, %v3086
        %v3088 = vadd.f32 %v3080, %v3086
        %v3089 = vadd.f32 %v3081, %v3086
        %v3090 = vadd.f32 %v3082, %v3086
        %v3091 = vpack.c.bf16 %v3088, %v3087
        %v3092 = vpack.c.bf16 %v3090, %v3089
        %s3093 = scalar_lea.vmem [#allocation16], 64
        %v3094 = vld [vmem:[%s3093] sm:$0xf]
        %v3095 = vld [vmem:[%s3093 + $0x4] sm:$0xf]
        %v3096 = vld [vmem:[%s3093 + $0x8] sm:$0xf]
        %v3097 = vld [vmem:[%s3093 + $0xc] sm:$0xf]
        %v3098 = vld [vmem:[%s3093 + $0x10] sm:$0xf]
        %v3099 = vld [vmem:[%s3093 + $0x14] sm:$0xf]
        %v3100 = vld [vmem:[%s3093 + $0x18] sm:$0xf]
        %v3101 = vld [vmem:[%s3093 + $0x1c] sm:$0xf]
        %v3102 = vld [vmem:[%s3093 + $0x20] sm:$0xf]
        %v3103 = vld [vmem:[%s3093 + $0x24] sm:$0xf]
        %v3104 = vld [vmem:[%s3093 + $0x28] sm:$0xf]
        %v3105 = vld [vmem:[%s3093 + $0x2c] sm:$0xf]
        %v3106 = vld [vmem:[%s3093 + $0x30] sm:$0xf]
        %v3107 = vld [vmem:[%s3093 + $0x34] sm:$0xf]
        %v3108 = vld [vmem:[%s3093 + $0x38] sm:$0xf]
        %v3109 = vld [vmem:[%s3093 + $0x3c] sm:$0xf]
        %s3110 = scalar_lea.vmem %s11, 1
        %v3111 = vld [vmem:[%s3110] sm:$0x1]
        %v3113 = vlaneseq
        %v3114 = vshrl.u32 %v3113, 7
        %v3115 = vsub.s32 0, %v3114
        %v3116 = vrot.slane %v3111, %v3115
        %v3134 = vunpack.c.l.b16 %v3094
        %v3135 = vunpack.c.l.b16 %v3095
        %v3136 = vunpack.c.l.b16 %v3096
        %v3137 = vunpack.c.l.b16 %v3097
        %v3138 = vunpack.c.l.b16 %v3098
        %v3139 = vunpack.c.l.b16 %v3099
        %v3140 = vunpack.c.l.b16 %v3100
        %v3141 = vunpack.c.l.b16 %v3101
        %v3142 = vunpack.c.l.b16 %v3102
        %v3143 = vunpack.c.l.b16 %v3103
        %v3144 = vunpack.c.l.b16 %v3104
        %v3145 = vunpack.c.l.b16 %v3105
        %v3146 = vunpack.c.l.b16 %v3106
        %v3147 = vunpack.c.l.b16 %v3107
        %v3148 = vunpack.c.l.b16 %v3108
        %v3149 = vunpack.c.l.b16 %v3109
        %v3150 = vpack.c.b16 %v3135, %v3134
        %v3151 = vpack.c.b16 %v3137, %v3136
        %v3152 = vpack.c.b16 %v3139, %v3138
        %v3153 = vpack.c.b16 %v3141, %v3140
        %v3154 = vpack.c.b16 %v3143, %v3142
        %v3155 = vpack.c.b16 %v3145, %v3144
        %v3156 = vpack.c.b16 %v3147, %v3146
        %v3157 = vpack.c.b16 %v3149, %v3148
        %3166 = vmatprep.subr.bf16.mxu0 0
        %3167 = vmatpush1.bf16.msra.mxu0 %v3157
        %3168 = vmatprep.subr.bf16.mxu0 0
        %3169 = vmatpush1.bf16.msra.mxu0 %v3156
        %3170 = vmatprep.subr.bf16.mxu0 0
        %3171 = vmatpush1.bf16.msra.mxu0 %v3155
        %3172 = vmatprep.subr.bf16.mxu0 0
        %3173 = vmatpush1.bf16.msra.mxu0 %v3154
        %3174 = vmatprep.subr.bf16.mxu0 0
        %3175 = vmatpush1.bf16.msra.mxu0 %v3153
        %3176 = vmatprep.subr.bf16.mxu0 0
        %3177 = vmatpush1.bf16.msra.mxu0 %v3152
        %3178 = vmatprep.subr.bf16.mxu0 0
        %3179 = vmatpush1.bf16.msra.mxu0 %v3151
        %3180 = vmatprep.subr.bf16.mxu0 0
        %3181 = vmatpush1.bf16.msra.mxu0 %v3150
        %3182 = vmatprep.subr.bf16.mxu0 0
        %3183 = vmatpush2.bf16.msra.mxu0 0
        %3184 = vmatprep.subr.bf16.mxu0 0
        %3185 = vmatpush2.bf16.msra.mxu0 0
        %3186 = vmatprep.subr.bf16.mxu0 0
        %3187 = vmatpush2.bf16.msra.mxu0 0
        %3188 = vmatprep.subr.bf16.mxu0 0
        %3189 = vmatpush2.bf16.msra.mxu0 0
        %3190 = vmatprep.subr.bf16.mxu0 0
        %3191 = vmatpush2.bf16.msra.mxu0 0
        %3192 = vmatprep.subr.bf16.mxu0 0
        %3193 = vmatpush2.bf16.msra.mxu0 0
        %3194 = vmatprep.subr.bf16.mxu0 0
        %3195 = vmatpush2.bf16.msra.mxu0 0
        %3196 = vmatprep.subr.bf16.mxu0 0
        %3197 = vmatpush2.bf16.msra.mxu0 0
        %3198 = vmatprep.mubr.bf16.mxu0 0
        %3199 = vmatmul.mubr.bf16.gmra.mxu0 %v3091
        %v3200 = vpop.f32.mrf.mxu0
        %v3201 = vadd.f32 %v3116, %v3200
        %v3202 = vpop.f32.mrf.mxu0
        %v3203 = vpop.f32.mrf.mxu0
        %v3204 = vadd.f32 %v3116, %v3203
        %v3205 = vpop.f32.mrf.mxu0
        %3206 = vmatprep.mubr.bf16.mxu0 0
        %3207 = vmatmul.mubr.bf16.gmra.mxu0 %v3092
        %v3208 = vpop.f32.mrf.mxu0
        %v3209 = vadd.f32 %v3116, %v3208
        %v3210 = vpop.f32.mrf.mxu0
        %v3211 = vpop.f32.mrf.mxu0
        %v3212 = vadd.f32 %v3116, %v3211
        %v3213 = vpop.f32.mrf.mxu0
        %3214 = vdwg.mxu0
        %v3215 = vmax.f32 %v3201, 0.0
        %v3216 = vmax.f32 %v3204, 0.0
        %v3217 = vmax.f32 %v3209, 0.0
        %v3218 = vmax.f32 %v3212, 0.0
        %v3219 = vpack.c.bf16 %v3216, %v3215
        %v3220 = vpack.c.bf16 %v3218, %v3217
        %s3221 = scalar_lea.vmem [#allocation17], 64
        %v3222 = vld [vmem:[%s3221] sm:$0xf]
        %v3223 = vld [vmem:[%s3221 + $0x4] sm:$0xf]
        %v3224 = vld [vmem:[%s3221 + $0x8] sm:$0xf]
        %v3225 = vld [vmem:[%s3221 + $0xc] sm:$0xf]
        %v3226 = vld [vmem:[%s3221 + $0x10] sm:$0xf]
        %v3227 = vld [vmem:[%s3221 + $0x14] sm:$0xf]
        %v3228 = vld [vmem:[%s3221 + $0x18] sm:$0xf]
        %v3229 = vld [vmem:[%s3221 + $0x1c] sm:$0xf]
        %v3230 = vld [vmem:[%s3221 + $0x20] sm:$0xf]
        %v3231 = vld [vmem:[%s3221 + $0x24] sm:$0xf]
        %v3232 = vld [vmem:[%s3221 + $0x28] sm:$0xf]
        %v3233 = vld [vmem:[%s3221 + $0x2c] sm:$0xf]
        %v3234 = vld [vmem:[%s3221 + $0x30] sm:$0xf]
        %v3235 = vld [vmem:[%s3221 + $0x34] sm:$0xf]
        %v3236 = vld [vmem:[%s3221 + $0x38] sm:$0xf]
        %v3237 = vld [vmem:[%s3221 + $0x3c] sm:$0xf]
        %s3238 = scalar_lea.vmem %s13, 1
        %v3239 = vld [vmem:[%s3238] sm:$0x1]
        %v3241 = vlaneseq
        %v3242 = vshrl.u32 %v3241, 7
        %v3243 = vsub.s32 0, %v3242
        %v3244 = vrot.slane %v3239, %v3243
        %v3262 = vunpack.c.l.b16 %v3222
        %v3263 = vunpack.c.l.b16 %v3223
        %v3264 = vunpack.c.l.b16 %v3224
        %v3265 = vunpack.c.l.b16 %v3225
        %v3266 = vunpack.c.l.b16 %v3226
        %v3267 = vunpack.c.l.b16 %v3227
        %v3268 = vunpack.c.l.b16 %v3228
        %v3269 = vunpack.c.l.b16 %v3229
        %v3270 = vunpack.c.l.b16 %v3230
        %v3271 = vunpack.c.l.b16 %v3231
        %v3272 = vunpack.c.l.b16 %v3232
        %v3273 = vunpack.c.l.b16 %v3233
        %v3274 = vunpack.c.l.b16 %v3234
        %v3275 = vunpack.c.l.b16 %v3235
        %v3276 = vunpack.c.l.b16 %v3236
        %v3277 = vunpack.c.l.b16 %v3237
        %v3278 = vpack.c.b16 %v3263, %v3262
        %v3279 = vpack.c.b16 %v3265, %v3264
        %v3280 = vpack.c.b16 %v3267, %v3266
        %v3281 = vpack.c.b16 %v3269, %v3268
        %v3282 = vpack.c.b16 %v3271, %v3270
        %v3283 = vpack.c.b16 %v3273, %v3272
        %v3284 = vpack.c.b16 %v3275, %v3274
        %v3285 = vpack.c.b16 %v3277, %v3276
        %3294 = vmatprep.subr.bf16.mxu0 0
        %3295 = vmatpush1.bf16.msra.mxu0 %v3285
        %3296 = vmatprep.subr.bf16.mxu0 0
        %3297 = vmatpush1.bf16.msra.mxu0 %v3284
        %3298 = vmatprep.subr.bf16.mxu0 0
        %3299 = vmatpush1.bf16.msra.mxu0 %v3283
        %3300 = vmatprep.subr.bf16.mxu0 0
        %3301 = vmatpush1.bf16.msra.mxu0 %v3282
        %3302 = vmatprep.subr.bf16.mxu0 0
        %3303 = vmatpush1.bf16.msra.mxu0 %v3281
        %3304 = vmatprep.subr.bf16.mxu0 0
        %3305 = vmatpush1.bf16.msra.mxu0 %v3280
        %3306 = vmatprep.subr.bf16.mxu0 0
        %3307 = vmatpush1.bf16.msra.mxu0 %v3279
        %3308 = vmatprep.subr.bf16.mxu0 0
        %3309 = vmatpush1.bf16.msra.mxu0 %v3278
        %3310 = vmatprep.subr.bf16.mxu0 0
        %3311 = vmatpush2.bf16.msra.mxu0 0
        %3312 = vmatprep.subr.bf16.mxu0 0
        %3313 = vmatpush2.bf16.msra.mxu0 0
        %3314 = vmatprep.subr.bf16.mxu0 0
        %3315 = vmatpush2.bf16.msra.mxu0 0
        %3316 = vmatprep.subr.bf16.mxu0 0
        %3317 = vmatpush2.bf16.msra.mxu0 0
        %3318 = vmatprep.subr.bf16.mxu0 0
        %3319 = vmatpush2.bf16.msra.mxu0 0
        %3320 = vmatprep.subr.bf16.mxu0 0
        %3321 = vmatpush2.bf16.msra.mxu0 0
        %3322 = vmatprep.subr.bf16.mxu0 0
        %3323 = vmatpush2.bf16.msra.mxu0 0
        %3324 = vmatprep.subr.bf16.mxu0 0
        %3325 = vmatpush2.bf16.msra.mxu0 0
        %3326 = vmatprep.mubr.bf16.mxu0 0
        %3327 = vmatmul.mubr.bf16.gmra.mxu0 %v3219
        %v3328 = vpop.f32.mrf.mxu0
        %v3329 = vadd.f32 %v3244, %v3328
        %v3330 = vpop.f32.mrf.mxu0
        %v3331 = vpop.f32.mrf.mxu0
        %v3332 = vadd.f32 %v3244, %v3331
        %v3333 = vpop.f32.mrf.mxu0
        %3334 = vmatprep.mubr.bf16.mxu0 0
        %3335 = vmatmul.mubr.bf16.gmra.mxu0 %v3220
        %v3336 = vpop.f32.mrf.mxu0
        %v3337 = vadd.f32 %v3244, %v3336
        %v3338 = vpop.f32.mrf.mxu0
        %v3339 = vpop.f32.mrf.mxu0
        %v3340 = vadd.f32 %v3244, %v3339
        %v3341 = vpop.f32.mrf.mxu0
        %3342 = vdwg.mxu0
        %v3343 = vadd.f32 %v3023, %v3329
        %v3344 = vadd.f32 %v3024, %v3332
        %v3345 = vadd.f32 %v3025, %v3337
        %v3346 = vadd.f32 %v3026, %v3340
        %v3347 = vld [vmem:[%s16] sm:$0x1]
        %v3348 = vld [vmem:[%s17] sm:$0x1]
        %3349 = vadd.xlane.f32.xlu0 %v3343
        %v3350 = vpop.xlane.xlu0 %3349
        %3351 = vadd.xlane.f32.xlu0 %v3344
        %v3352 = vpop.xlane.xlu0 %3351
        %3353 = vadd.xlane.f32.xlu0 %v3345
        %v3354 = vpop.xlane.xlu0 %3353
        %3355 = vadd.xlane.f32.xlu0 %v3346
        %v3356 = vpop.xlane.xlu0 %3355
        %v3357 = vmul.f32 %v3350, 0.03125
        %v3358 = vmul.f32 %v3352, 0.03125
        %v3359 = vmul.f32 %v3354, 0.03125
        %v3360 = vmul.f32 %v3356, 0.03125
        %v3361 = vsub.f32 %v3343, %v3357
        %v3362 = vsub.f32 %v3344, %v3358
        %v3363 = vsub.f32 %v3345, %v3359
        %v3364 = vsub.f32 %v3346, %v3360
        %v3365 = vsel %vm784, %v3361, 0.0
        %v3366 = vsel %vm784, %v3362, 0.0
        %v3367 = vsel %vm784, %v3363, 0.0
        %v3368 = vsel %vm784, %v3364, 0.0
        %v3369 = vmul.f32 %v3365, %v3365
        %v3370 = vmul.f32 %v3366, %v3366
        %v3371 = vmul.f32 %v3367, %v3367
        %v3372 = vmul.f32 %v3368, %v3368
        %3373 = vadd.xlane.f32.xlu0 %v3369
        %v3374 = vpop.xlane.xlu0 %3373
        %3375 = vadd.xlane.f32.xlu0 %v3370
        %v3376 = vpop.xlane.xlu0 %3375
        %3377 = vadd.xlane.f32.xlu0 %v3371
        %v3378 = vpop.xlane.xlu0 %3377
        %3379 = vadd.xlane.f32.xlu0 %v3372
        %v3380 = vpop.xlane.xlu0 %3379
        %v3381 = vmul.f32 %v3374, 0.03125
        %v3382 = vmul.f32 %v3376, 0.03125
        %v3383 = vmul.f32 %v3378, 0.03125
        %v3384 = vmul.f32 %v3380, 0.03125
        %v3385 = vadd.f32 %v3381, 1e-05
        %v3386 = vadd.f32 %v3382, 1e-05
        %v3387 = vadd.f32 %v3383, 1e-05
        %v3388 = vadd.f32 %v3384, 1e-05
        %v3389 = vrsqrt.pop %v3385
        %v3390 = vrsqrt.pop %v3386
        %v3391 = vrsqrt.pop %v3387
        %v3392 = vrsqrt.pop %v3388
        %v3393 = vmul.f32 %v3365, %v3389
        %v3394 = vmul.f32 %v3366, %v3390
        %v3395 = vmul.f32 %v3367, %v3391
        %v3396 = vmul.f32 %v3368, %v3392
        %v3398 = vlaneseq
        %v3399 = vshrl.u32 %v3398, 7
        %v3400 = vsub.s32 0, %v3399
        %v3401 = vrot.slane %v3347, %v3400
        %v3403 = vmul.f32 %v3393, %v3401
        %v3404 = vmul.f32 %v3394, %v3401
        %v3405 = vmul.f32 %v3395, %v3401
        %v3406 = vmul.f32 %v3396, %v3401
        %v3408 = vlaneseq
        %v3409 = vshrl.u32 %v3408, 7
        %v3410 = vsub.s32 0, %v3409
        %v3411 = vrot.slane %v3348, %v3410
        %v3413 = vadd.f32 %v3403, %v3411
        %v3414 = vadd.f32 %v3404, %v3411
        %v3415 = vadd.f32 %v3405, %v3411
        %v3416 = vadd.f32 %v3406, %v3411
        %3417 = vst [vmem:[%s749] sm:$0xff] %v3413
        %3418 = vst [vmem:[%s749 + $0x8] sm:$0xff] %v3414
        %3419 = vst [vmem:[%s749 + $0x10] sm:$0xff] %v3415
        %3420 = vst [vmem:[%s749 + $0x18] sm:$0xff] %v3416
        %s3421 = sand.u32 %s438, 1
        %s3422 = scalar_lea.sflag [#allocation4], %s3421
        %s3423 = sand.u32 %s438, 1
        %s3424 = smul.addr %s3423, 32
        %s3425 = scalar_lea.vmem [#allocation19], %s3424
        // Predicated region
        $region133: #{tpu_custom_call.1} parent=91 // pred_check
          %p3426 = pneg %p448
        $region134: #{tpu_custom_call.1} parent=91 // pred_check_branch
          %3428 = sbr.rel (%p3426) target = $region136
        $region135: #{tpu_custom_call.1} parent=91 // pred_region
          %s3429 = smul.u32 4, %s42
          %s3431 = ssub.s32 512, 512
          %3432 = vsyncadd %s3422, %s3431
          %s3433 = smul.addr %s3429, 128
          %s3434 = scalar_lea.hbm %s18, %s3433
          %s3435 = sshll.u32 %s3425, 4
          %s3436 = int_to_ptr.vmem [resolvable:$true] %s3435
          %3441 = dma.vmem_to_hbm [thread:$0]  %s3436, 512, %s3434, %s3422, 128, 128, 8
        $region136: #{tpu_custom_call.1} parent=91 // pred_fallthru
          _
      $region92: #{tpu_custom_call.1} parent=5 // pred_fallthru
        _
      %p3442 = scmp.le.s32.totalorder 2, %s37
      // Predicated region
      $region137: #{tpu_custom_call.1} parent=5 // pred_check
        %p3443 = pneg %p3442
      $region138: #{tpu_custom_call.1} parent=5 // pred_check_branch
        %3445 = sbr.rel (%p3443) target = $region140
      $region139: #{tpu_custom_call.1} parent=5 // pred_region
        %s3446 = ssub.s32 %s37, 2
        // Predicated region
        $region141: #{tpu_custom_call.1} parent=139 // pred_check
          %p3447 = pneg %p454
        $region142: #{tpu_custom_call.1} parent=139 // pred_check_branch
          %3449 = sbr.rel (%p3447) target = $region144
        $region143: #{tpu_custom_call.1} parent=139 // pred_region
          %s3450 = sand.u32 %s439, 1
          %s3451 = scalar_lea.sflag [#allocation4], %s3450
          %s3452 = sand.u32 %s439, 1
          %s3453 = smul.addr %s3452, 32
          %s3454 = scalar_lea.vmem [#allocation19], %s3453
          %3455 = dma.done %s3451, 512
        $region144: #{tpu_custom_call.1} parent=139 // pred_fallthru
          _
      $region140: #{tpu_custom_call.1} parent=5 // pred_fallthru
        _
    $region6: #{tpu_custom_call.1} parent=1 // loop_footer
      %s41 = sadd.s32 1, %s37
    $region7: #{tpu_custom_call.1} parent=1 // loop_footer_branch
      %36 = sbr.rel target = $region3
    $region8: #{tpu_custom_call.1} parent=1 // loop_exit
      _
    %3456 = vsyncpa [#allocation3], 1
    %s3457 = scalar_lea.sflag [#allocation3], 1
    %3458 = vsyncpa %s3457, 1
    %3459 = vsyncpa [#allocation6], 1
    %s3460 = scalar_lea.sflag [#allocation6], 1
    %3461 = vsyncpa %s3460, 1
    %3462 = vsyncpa [#allocation9], 1
    %3463 = vsyncpa [#allocation12], 1
    %3464 = vsyncpa [#allocation15], 1
    %3465 = vsyncpa [#allocation18], 1
    %3466 = vsyncpa [#allocation4], 1
    %s3467 = scalar_lea.sflag [#allocation4], 1
    %3468 = vsyncpa %s3467, 1

</llo_original>
